<compile_context>
chip_gen: v7x
topology: tpu7x:2x2x1
jax: 0.10.0
libtpu: 0.0.40
codegen_flags: <defaults>
</compile_context>

<pallas_src>
import math

import jax
import jax.numpy as jnp
from jax.experimental import pallas as pl
from jax.experimental.pallas import tpu as pltpu


# --------------------------- fused forward kernel --------------------------- #
def _caputo_lstm_kernel(xfull_ref, xchunk_ref, wcap_ref, rs_ref,
                        wih0_ref, whh0_ref, b0_ref, w1_ref, b1_ref,
                        wout_ref, bout_ref, out_ref,
                        h0_ref, c0_ref, h1_ref, c1_ref):
    tc = pl.program_id(1)

    BB, TC, N = xchunk_ref.shape
    T = xfull_ref.shape[1]
    A = wcap_ref.shape[0]
    H = whh0_ref.shape[0]

    @pl.when(tc == 0)
    def _init():
        h0_ref[...] = jnp.zeros_like(h0_ref)
        c0_ref[...] = jnp.zeros_like(c0_ref)
        h1_ref[...] = jnp.zeros_like(h1_ref)
        c1_ref[...] = jnp.zeros_like(c1_ref)

    x_full = xfull_ref[...]       # (BB, T, N)  full history (Caputo sum needs it)
    x_chunk = xchunk_ref[...]     # (BB, TC, N) timesteps of this chunk

    # ---- Caputo derivative fused with the LSTM layer-0 input projection ----
    #   D_a[b,t,:] = rowsum_a[t] * x[b,t,:] - sum_s W_a[t,s] * x[b,s,:]
    #   g0[(b,t),:] = sum_a D_a[b,t,:] @ Wih0_a + b0
    # One batched (lane-dense) mix + one (BB*TC, N)@(N, 4H) matmul per alpha,
    # all hoisted off the sequential recurrence chain.
    g0 = jnp.zeros((BB * TC, 4 * H), dtype=jnp.float32)
    for a in range(A):                                        # static unroll
        w_a = jnp.broadcast_to(wcap_ref[a][None], (BB, TC, T))
        conv = jnp.einsum("bts,bsn->btn", w_a, x_full,
                          preferred_element_type=jnp.float32)  # (BB, TC, N)
        d_a = x_chunk * rs_ref[a][None] - conv                 # (BB, TC, N)
        g0 = g0 + jnp.dot(d_a.reshape(BB * TC, N).astype(jnp.bfloat16),
                          wih0_ref[a],
                          preferred_element_type=jnp.float32)
    g0 = (g0 + b0_ref[...]).reshape(BB, TC, 4 * H)

    # ---- sequential 2-layer LSTM over the chunk (state in VMEM scratch) ----
    whh0 = whh0_ref[...]
    w1 = w1_ref[...]
    b1 = b1_ref[...]
    h0 = h0_ref[...]
    c0 = c0_ref[...]
    h1 = h1_ref[...]
    c1 = c1_ref[...]

    def gates(z):                       # PyTorch gate order: i, f, g, o
        return (jax.nn.sigmoid(z[:, 0 * H:1 * H]),
                jax.nn.sigmoid(z[:, 1 * H:2 * H]),
                jnp.tanh(z[:, 2 * H:3 * H]),
                jax.nn.sigmoid(z[:, 3 * H:4 * H]))

    for j in range(TC):                 # short, fixed trip count -> unrolled
        z0 = g0[:, j, :] + jnp.dot(h0.astype(jnp.bfloat16), whh0,
                                   preferred_element_type=jnp.float32)
        i0, f0, gg0, o0 = gates(z0)
        c0 = f0 * c0 + i0 * gg0
        h0 = o0 * jnp.tanh(c0)

        cat = jnp.concatenate([h0, h1], axis=1).astype(jnp.bfloat16)  # (BB,2H)
        z1 = jnp.dot(cat, w1, preferred_element_type=jnp.float32) + b1
        i1, f1, gg1, o1 = gates(z1)
        c1 = f1 * c1 + i1 * gg1
        h1 = o1 * jnp.tanh(c1)

    h0_ref[...] = h0
    c0_ref[...] = c0
    h1_ref[...] = h1
    c1_ref[...] = c1

    # ---- fused output Linear + ReLU on the final hidden state --------------
    @pl.when(tc == pl.num_programs(1) - 1)
    def _finish():
        y = jnp.dot(h1.astype(jnp.bfloat16), wout_ref[...],
                    preferred_element_type=jnp.float32) + bout_ref[...]
        out_ref[...] = jnp.maximum(y, 0.0)


def caputo_encoder_forward(x, params, *, block_b=8, time_chunk=None):
    """x: (B, T, N) -> (B, output_size); one fused pallas_call."""
    x = x.astype(jnp.float32)
    B, T, N = x.shape
    w_cap, rs = params["w_cap"], params["rs"]          # (A, T, T), (A, T, 1) f32
    wih0 = params["wih0"]                              # (A, N, 4H) bf16
    whh0 = params["whh0"]                              # (H, 4H)    bf16
    b0 = params["b0"]                                  # (1, 4H)    f32
    w1 = params["w1"]                                  # (2H, 4H)   bf16
    b1 = params["b1"]                                  # (1, 4H)    f32
    w_out = params["w_out"]                            # (H, O)     bf16
    b_out = params["b_out"]                            # (1, O)     f32

    A = w_cap.shape[0]
    H = whh0.shape[0]
    O = w_out.shape[1]

    BB = min(block_b, B)                               # batch block ("parallel")
    assert B % BB == 0
    TC = T if time_chunk is None else time_chunk       # time chunk ("arbitrary")
    assert T % TC == 0
    if TC != T:
        assert TC % 8 == 0

    grid = (B // BB, T // TC)

    return pl.pallas_call(
        _caputo_lstm_kernel,
        out_shape=jax.ShapeDtypeStruct((B, O), jnp.float32),
        grid=grid,
        in_specs=[
            pl.BlockSpec((BB, T, N), lambda b, tc: (b, 0, 0)),    # x, full history
            pl.BlockSpec((BB, TC, N), lambda b, tc: (b, tc, 0)),  # x, this chunk
            pl.BlockSpec((A, TC, T), lambda b, tc: (0, tc, 0)),   # Caputo W rows
            pl.BlockSpec((A, TC, 1), lambda b, tc: (0, tc, 0)),   # Caputo row sums
            pl.BlockSpec((A, N, 4 * H), lambda b, tc: (0, 0, 0)),  # Wih0 per alpha
            pl.BlockSpec((H, 4 * H), lambda b, tc: (0, 0)),        # Whh0
            pl.BlockSpec((1, 4 * H), lambda b, tc: (0, 0)),        # b0
            pl.BlockSpec((2 * H, 4 * H), lambda b, tc: (0, 0)),    # [Wih1; Whh1]
            pl.BlockSpec((1, 4 * H), lambda b, tc: (0, 0)),        # b1
            pl.BlockSpec((H, O), lambda b, tc: (0, 0)),            # W_out
            pl.BlockSpec((1, O), lambda b, tc: (0, 0)),            # b_out
        ],
        out_specs=pl.BlockSpec((BB, O), lambda b, tc: (b, 0)),
        scratch_shapes=[pltpu.VMEM((BB, H), jnp.float32)] * 4,     # h0,c0,h1,c1
        compiler_params=pltpu.CompilerParams(
            dimension_semantics=("parallel", "arbitrary")),
    )(x, x, w_cap, rs, wih0, whh0, b0, w1, b1, w_out, b_out)


# ------------------------------ parameter prep ------------------------------ #
def _caputo_coef(alpha):
    """coef = 1 / gamma(1 - alpha); at gamma poles (alpha = 1, 2, ...) -> 0."""
    try:
        return 1.0 / math.gamma(1.0 - alpha)
    except (ValueError, ZeroDivisionError):
        return 0.0


def caputo_weights(T, alphas):
    """Strictly-lower-triangular Caputo weights (coef folded in) + row sums."""
    t_idx = jnp.arange(T, dtype=jnp.float32)
    diff = jnp.abs(t_idx[:, None] - t_idx[None, :]) + 1e-6
    tril = jnp.tril(jnp.ones((T, T), dtype=bool), k=-1)
    ws, rss, coefs = [], [], []
    for alpha in alphas:
        coef = _caputo_coef(alpha)
        w = jnp.where(tril, diff ** (-alpha), 0.0) * jnp.float32(coef)
        ws.append(w)
        rss.append(jnp.sum(w, axis=1, keepdims=True))
        coefs.append(coef)
    return (jnp.stack(ws).astype(jnp.float32),
            jnp.stack(rss).astype(jnp.float32),
            coefs)


def init_params(key, T, input_size, lstm_size, output_size, alphas):
    A, N, H, O = len(alphas), input_size, lstm_size, output_size
    F = N * A
    w_all, rs_all, coefs = caputo_weights(T, alphas)

    bound = 1.0 / math.sqrt(H)                 # PyTorch default LSTM/Linear init
    keys = jax.random.split(key, 10)

    def u(k, shape):
        return jax.random.uniform(k, shape, jnp.float32, -bound, bound)

    wih0 = u(keys[0], (F, 4 * H))              # gate order i, f, g, o
    whh0 = u(keys[1], (H, 4 * H))
    b0 = u(keys[2], (1, 4 * H)) + u(keys[3], (1, 4 * H))     # b_ih + b_hh
    wih1 = u(keys[4], (H, 4 * H))
    whh1 = u(keys[5], (H, 4 * H))
    b1 = u(keys[6], (1, 4 * H)) + u(keys[7], (1, 4 * H))
    w_out = u(keys[8], (H, O))
    b_out = u(keys[9], (1, O))

    # Drop alphas whose coefficient is exactly 0 (their feature block is all
    # zeros) -- bit-exact, halves Caputo work for the default [0.5, 1.0].
    keep = [i for i, c in enumerate(coefs) if c != 0.0] or [0]
    kept = jnp.asarray(keep, dtype=jnp.int32)

    params = dict(
        w_cap=w_all[kept],
        rs=rs_all[kept],
        wih0=wih0.reshape(A, N, 4 * H)[kept].astype(jnp.bfloat16),
        whh0=whh0.astype(jnp.bfloat16),
        b0=b0,
        w1=jnp.concatenate([wih1, whh1], axis=0).astype(jnp.bfloat16),
        b1=b1,
        w_out=w_out.astype(jnp.bfloat16),
        b_out=b_out,
    )
    # bf16-rounded f32 copies for the pure-JAX reference.
    ref_params = dict(
        w_all=w_all, rs_all=rs_all,
        wih0=wih0.astype(jnp.bfloat16).astype(jnp.float32),
        whh0=whh0.astype(jnp.bfloat16).astype(jnp.float32), b0=b0,
        wih1=wih1.astype(jnp.bfloat16).astype(jnp.float32),
        whh1=whh1.astype(jnp.bfloat16).astype(jnp.float32), b1=b1,
        w_out=w_out.astype(jnp.bfloat16).astype(jnp.float32), b_out=b_out,
    )
    return params, ref_params


# --------------------------- pure-JAX reference ----------------------------- #
def reference_forward(x, rp):
    x = x.astype(jnp.float32)
    B, T, N = x.shape
    w_all, rs_all = rp["w_all"], rp["rs_all"]
    feats = [x * rs_all[a][None] - jnp.einsum("ts,bsn->btn", w_all[a], x)
             for a in range(w_all.shape[0])]
    feat = jnp.concatenate(feats, axis=-1)                     # (B, T, A*N)
    H = rp["whh0"].shape[0]

    def lstm(seq, wih, whh, b):
        h = jnp.zeros((B, H), jnp.float32)
        c = jnp.zeros((B, H), jnp.float32)
        outs = []
        for t in range(T):
            z = seq[:, t, :] @ wih + h @ whh + b
            i = jax.nn.sigmoid(z[:, 0 * H:1 * H])
            f = jax.nn.sigmoid(z[:, 1 * H:2 * H])
            g = jnp.tanh(z[:, 2 * H:3 * H])
            o = jax.nn.sigmoid(z[:, 3 * H:4 * H])
            c = f * c + i * g
            h = o * jnp.tanh(c)
            outs.append(h)
        return jnp.stack(outs, axis=1)

    h0_seq = lstm(feat, rp["wih0"], rp["whh0"], rp["b0"])
    h1_seq = lstm(h0_seq, rp["wih1"], rp["whh1"], rp["b1"])
    y = h1_seq[:, -1, :] @ rp["w_out"] + rp["b_out"]
    return jnp.maximum(y, 0.0)


# ------------------------------------ main ----------------------------------- #
if __name__ == "__main__":
    # Small shapes consistent with the module's forward semantics.
    B, T = 4, 8
    input_size = 64        # module default 250, scaled down
    lstm_size = 128        # module default 512, scaled down
    output_size = 256      # module default 1024, scaled down
    alphas = [0.5, 1.0]

    key = jax.random.PRNGKey(0)
    kx, kp = jax.random.split(key)
    x = jax.random.normal(kx, (B, T, input_size), dtype=jnp.float32)
    params, ref_params = init_params(kp, T, input_size, lstm_size,
                                     output_size, alphas)

    fwd = jax.jit(caputo_encoder_forward)
    out = jax.block_until_ready(fwd(x, params))

    assert out.shape == (B, output_size)
    assert bool(jnp.all(jnp.isfinite(out)))
    assert bool(jnp.all(out >= 0.0))                 # ReLU output

    ref = reference_forward(x, ref_params)
    max_err = float(jnp.max(jnp.abs(out - ref)))
    assert bool(jnp.allclose(out, ref, atol=5e-2, rtol=5e-2)), max_err

    print("KERNEL_OK")
</pallas_src>

<mosaic_0001>
module attributes {stable_mosaic.version = 11 : i64} {
  func.func @_caputo_lstm_kernel(%arg0: i32, %arg1: i32, %arg2: memref<4x8x64xf32, #tpu.memory_space<vmem>>, %arg3: memref<4x8x64xf32, #tpu.memory_space<vmem>>, %arg4: memref<1x8x8xf32, #tpu.memory_space<vmem>>, %arg5: memref<1x8x1xf32, #tpu.memory_space<vmem>>, %arg6: memref<1x64x512xbf16, #tpu.memory_space<vmem>>, %arg7: memref<128x512xbf16, #tpu.memory_space<vmem>>, %arg8: memref<1x512xf32, #tpu.memory_space<vmem>>, %arg9: memref<256x512xbf16, #tpu.memory_space<vmem>>, %arg10: memref<1x512xf32, #tpu.memory_space<vmem>>, %arg11: memref<128x256xbf16, #tpu.memory_space<vmem>>, %arg12: memref<1x256xf32, #tpu.memory_space<vmem>>, %arg13: memref<4x256xf32, #tpu.memory_space<vmem>>, %arg14: memref<4x128xf32, #tpu.memory_space<vmem>>, %arg15: memref<4x128xf32, #tpu.memory_space<vmem>>, %arg16: memref<4x128xf32, #tpu.memory_space<vmem>>, %arg17: memref<4x128xf32, #tpu.memory_space<vmem>>) attributes {dimension_semantics = [#tpu.dimension_semantics<parallel>, #tpu.dimension_semantics<arbitrary>], iteration_bounds = array<i64: 1, 1>, scalar_prefetch = 0 : i64, scratch_operands = 4 : i64, tpu.core_type = #tpu.core_type<tc>, window_params = [{transform_indices = @transform_0, window_bounds = array<i64: 4, 8, 64>}, {transform_indices = @transform_1, window_bounds = array<i64: 4, 8, 64>}, {transform_indices = @transform_2, window_bounds = array<i64: 1, 8, 8>}, {transform_indices = @transform_3, window_bounds = array<i64: 1, 8, 1>}, {pipeline_mode = #tpu.pipeline_mode<synchronous>, transform_indices = @transform_4, window_bounds = array<i64: 1, 64, 512>}, {pipeline_mode = #tpu.pipeline_mode<synchronous>, transform_indices = @transform_5, window_bounds = array<i64: 128, 512>}, {pipeline_mode = #tpu.pipeline_mode<synchronous>, transform_indices = @transform_6, window_bounds = array<i64: 1, 512>}, {pipeline_mode = #tpu.pipeline_mode<synchronous>, transform_indices = @transform_7, window_bounds = array<i64: 256, 512>}, {pipeline_mode = #tpu.pipeline_mode<synchronous>, transform_indices = @transform_8, window_bounds = array<i64: 1, 512>}, {pipeline_mode = #tpu.pipeline_mode<synchronous>, transform_indices = @transform_9, window_bounds = array<i64: 128, 256>}, {pipeline_mode = #tpu.pipeline_mode<synchronous>, transform_indices = @transform_10, window_bounds = array<i64: 1, 256>}, {transform_indices = @transform_11, window_bounds = array<i64: 4, 256>}]} {
    %c0_i32 = arith.constant 0 : i32
    %0 = arith.cmpi eq, %arg1, %c0_i32 : i32
    %1 = arith.extui %0 : i1 to i32
    %c0_i32_0 = arith.constant 0 : i32
    %2 = arith.cmpi ne, %1, %c0_i32_0 : i32
    scf.if %2 {
      %cst_107 = arith.constant 0.000000e+00 : f32
      %522 = vector.broadcast %cst_107 : f32 to vector<4x128xf32>
      %c0_108 = arith.constant 0 : index
      %c0_109 = arith.constant 0 : index
      %523 = vector.load %arg14[%c0_108, %c0_109] : memref<4x128xf32, #tpu.memory_space<vmem>>, vector<4x128xf32>
      tpu.vector_store %arg14[%c0_108, %c0_109], %522 {strides = array<i32>} : memref<4x128xf32, #tpu.memory_space<vmem>>, vector<4x128xf32>,
      %cst_110 = arith.constant 0.000000e+00 : f32
      %524 = vector.broadcast %cst_110 : f32 to vector<4x128xf32>
      %c0_111 = arith.constant 0 : index
      %c0_112 = arith.constant 0 : index
      %525 = vector.load %arg15[%c0_111, %c0_112] : memref<4x128xf32, #tpu.memory_space<vmem>>, vector<4x128xf32>
      tpu.vector_store %arg15[%c0_111, %c0_112], %524 {strides = array<i32>} : memref<4x128xf32, #tpu.memory_space<vmem>>, vector<4x128xf32>,
      %cst_113 = arith.constant 0.000000e+00 : f32
      %526 = vector.broadcast %cst_113 : f32 to vector<4x128xf32>
      %c0_114 = arith.constant 0 : index
      %c0_115 = arith.constant 0 : index
      %527 = vector.load %arg16[%c0_114, %c0_115] : memref<4x128xf32, #tpu.memory_space<vmem>>, vector<4x128xf32>
      tpu.vector_store %arg16[%c0_114, %c0_115], %526 {strides = array<i32>} : memref<4x128xf32, #tpu.memory_space<vmem>>, vector<4x128xf32>,
      %cst_116 = arith.constant 0.000000e+00 : f32
      %528 = vector.broadcast %cst_116 : f32 to vector<4x128xf32>
      %c0_117 = arith.constant 0 : index
      %c0_118 = arith.constant 0 : index
      %529 = vector.load %arg17[%c0_117, %c0_118] : memref<4x128xf32, #tpu.memory_space<vmem>>, vector<4x128xf32>
      tpu.vector_store %arg17[%c0_117, %c0_118], %528 {strides = array<i32>} : memref<4x128xf32, #tpu.memory_space<vmem>>, vector<4x128xf32>,
    } else {
    }
    %c0 = arith.constant 0 : index
    %c0_1 = arith.constant 0 : index
    %c0_2 = arith.constant 0 : index
    %3 = vector.load %arg2[%c0, %c0_1, %c0_2] : memref<4x8x64xf32, #tpu.memory_space<vmem>>, vector<4x8x64xf32>
    %c0_3 = arith.constant 0 : index
    %c0_4 = arith.constant 0 : index
    %c0_5 = arith.constant 0 : index
    %4 = vector.load %arg3[%c0_3, %c0_4, %c0_5] : memref<4x8x64xf32, #tpu.memory_space<vmem>>, vector<4x8x64xf32>
    %cst = arith.constant 0.000000e+00 : f32
    %5 = vector.broadcast %cst : f32 to vector<32x512xf32>
    %c0_6 = arith.constant 0 : index
    %c0_7 = arith.constant 0 : index
    %c0_8 = arith.constant 0 : index
    %6 = vector.load %arg4[%c0_6, %c0_7, %c0_8] : memref<1x8x8xf32, #tpu.memory_space<vmem>>, vector<1x8x8xf32>
    %7 = vector.shape_cast %6 : vector<1x8x8xf32> to vector<8x8xf32>
    %8 = vector.shape_cast %7 : vector<8x8xf32> to vector<1x8x8xf32>
    %9 = vector.shape_cast %8 : vector<1x8x8xf32> to vector<1x8x8xf32>
    %10 = vector.broadcast %9 : vector<1x8x8xf32> to vector<4x8x8xf32>
    "tpu.trace_start"() <{level = 10 : i32, message = "bts,bsn->btn"}> : () -> ()
    %cst_9 = arith.constant dense<0.000000e+00> : vector<4x8x64xf32>
    %11 = tpu.matmul %10, %3, %cst_9 {dimension_numbers = #tpu.dot_dimension_numbers<[2], [1], [1], [2], [0, 0, 0, 1, 1, 2], [0], [0]>} : vector<4x8x8xf32>, vector<4x8x64xf32>, vector<4x8x64xf32> -> vector<4x8x64xf32>
    "tpu.trace_stop"() : () -> ()
    %c0_10 = arith.constant 0 : index
    %c0_11 = arith.constant 0 : index
    %c0_12 = arith.constant 0 : index
    %12 = vector.load %arg5[%c0_10, %c0_11, %c0_12] : memref<1x8x1xf32, #tpu.memory_space<vmem>>, vector<1x8x1xf32>
    %13 = vector.shape_cast %12 : vector<1x8x1xf32> to vector<8x1xf32>
    %14 = vector.shape_cast %13 : vector<8x1xf32> to vector<1x8x1xf32>
    %15 = vector.broadcast %14 : vector<1x8x1xf32> to vector<4x8x64xf32>
    %16 = arith.mulf %4, %15 : vector<4x8x64xf32>
    %17 = arith.subf %16, %11 : vector<4x8x64xf32>
    %18 = vector.shape_cast %17 : vector<4x8x64xf32> to vector<32x64xf32>
    %19 = arith.truncf %18 : vector<32x64xf32> to vector<32x64xbf16>
    %c0_13 = arith.constant 0 : index
    %c0_14 = arith.constant 0 : index
    %c0_15 = arith.constant 0 : index
    %20 = vector.load %arg6[%c0_13, %c0_14, %c0_15] : memref<1x64x512xbf16, #tpu.memory_space<vmem>>, vector<1x64x512xbf16>
    %21 = vector.shape_cast %20 : vector<1x64x512xbf16> to vector<64x512xbf16>
    %cst_16 = arith.constant dense<0.000000e+00> : vector<32x512xf32>
    %22 = tpu.matmul %19, %21, %cst_16 {dimension_numbers = #tpu.dot_dimension_numbers<[1], [0], [0], [1], [0, 0, 1, 1], [], []>} : vector<32x64xbf16>, vector<64x512xbf16>, vector<32x512xf32> -> vector<32x512xf32>
    %23 = arith.addf %5, %22 : vector<32x512xf32>
    %c0_17 = arith.constant 0 : index
    %c0_18 = arith.constant 0 : index
    %24 = vector.load %arg8[%c0_17, %c0_18] : memref<1x512xf32, #tpu.memory_space<vmem>>, vector<1x512xf32>
    %25 = vector.broadcast %24 : vector<1x512xf32> to vector<32x512xf32>
    %26 = arith.addf %23, %25 : vector<32x512xf32>
    %27 = vector.shape_cast %26 : vector<32x512xf32> to vector<4x8x512xf32>
    %c0_19 = arith.constant 0 : index
    %c0_20 = arith.constant 0 : index
    %28 = vector.load %arg7[%c0_19, %c0_20] : memref<128x512xbf16, #tpu.memory_space<vmem>>, vector<128x512xbf16>
    %c0_21 = arith.constant 0 : index
    %c0_22 = arith.constant 0 : index
    %29 = vector.load %arg9[%c0_21, %c0_22] : memref<256x512xbf16, #tpu.memory_space<vmem>>, vector<256x512xbf16>
    %c0_23 = arith.constant 0 : index
    %c0_24 = arith.constant 0 : index
    %30 = vector.load %arg10[%c0_23, %c0_24] : memref<1x512xf32, #tpu.memory_space<vmem>>, vector<1x512xf32>
    %c0_25 = arith.constant 0 : index
    %c0_26 = arith.constant 0 : index
    %31 = vector.load %arg14[%c0_25, %c0_26] : memref<4x128xf32, #tpu.memory_space<vmem>>, vector<4x128xf32>
    %c0_27 = arith.constant 0 : index
    %c0_28 = arith.constant 0 : index
    %32 = vector.load %arg15[%c0_27, %c0_28] : memref<4x128xf32, #tpu.memory_space<vmem>>, vector<4x128xf32>
    %c0_29 = arith.constant 0 : index
    %c0_30 = arith.constant 0 : index
    %33 = vector.load %arg16[%c0_29, %c0_30] : memref<4x128xf32, #tpu.memory_space<vmem>>, vector<4x128xf32>
    %c0_31 = arith.constant 0 : index
    %c0_32 = arith.constant 0 : index
    %34 = vector.load %arg17[%c0_31, %c0_32] : memref<4x128xf32, #tpu.memory_space<vmem>>, vector<4x128xf32>
    %35 = vector.extract_strided_slice %27 {offsets = [0, 0, 0], sizes = [4, 1, 512], strides = [1, 1, 1]} : vector<4x8x512xf32> to vector<4x1x512xf32>
    %36 = vector.shape_cast %35 : vector<4x1x512xf32> to vector<4x512xf32>
    %37 = arith.truncf %31 : vector<4x128xf32> to vector<4x128xbf16>
    %cst_33 = arith.constant dense<0.000000e+00> : vector<4x512xf32>
    %38 = tpu.matmul %37, %28, %cst_33 {dimension_numbers = #tpu.dot_dimension_numbers<[1], [0], [0], [1], [0, 0, 1, 1], [], []>} : vector<4x128xbf16>, vector<128x512xbf16>, vector<4x512xf32> -> vector<4x512xf32>
    %39 = arith.addf %36, %38 : vector<4x512xf32>
    %40 = vector.extract_strided_slice %39 {offsets = [0, 0], sizes = [4, 128], strides = [1, 1]} : vector<4x512xf32> to vector<4x128xf32>
    %41 = arith.negf %40 : vector<4x128xf32>
    %42 = math.exp %41 : vector<4x128xf32>
    %cst_34 = arith.constant 1.000000e+00 : f32
    %43 = vector.broadcast %cst_34 : f32 to vector<4x128xf32>
    %44 = arith.addf %43, %42 : vector<4x128xf32>
    %45 = arith.divf %43, %44 : vector<4x128xf32>
    %46 = vector.extract_strided_slice %39 {offsets = [0, 128], sizes = [4, 128], strides = [1, 1]} : vector<4x512xf32> to vector<4x128xf32>
    %47 = arith.negf %46 : vector<4x128xf32>
    %48 = math.exp %47 : vector<4x128xf32>
    %cst_35 = arith.constant 1.000000e+00 : f32
    %49 = vector.broadcast %cst_35 : f32 to vector<4x128xf32>
    %50 = arith.addf %49, %48 : vector<4x128xf32>
    %51 = arith.divf %49, %50 : vector<4x128xf32>
    %52 = vector.extract_strided_slice %39 {offsets = [0, 256], sizes = [4, 128], strides = [1, 1]} : vector<4x512xf32> to vector<4x128xf32>
    %53 = math.tanh %52 : vector<4x128xf32>
    %54 = vector.extract_strided_slice %39 {offsets = [0, 384], sizes = [4, 128], strides = [1, 1]} : vector<4x512xf32> to vector<4x128xf32>
    %55 = arith.negf %54 : vector<4x128xf32>
    %56 = math.exp %55 : vector<4x128xf32>
    %cst_36 = arith.constant 1.000000e+00 : f32
    %57 = vector.broadcast %cst_36 : f32 to vector<4x128xf32>
    %58 = arith.addf %57, %56 : vector<4x128xf32>
    %59 = arith.divf %57, %58 : vector<4x128xf32>
    %60 = arith.mulf %51, %32 : vector<4x128xf32>
    %61 = arith.mulf %45, %53 : vector<4x128xf32>
    %62 = arith.addf %60, %61 : vector<4x128xf32>
    %63 = math.tanh %62 : vector<4x128xf32>
    %64 = arith.mulf %59, %63 : vector<4x128xf32>
    %65 = tpu.concatenate %64, %33 in 1 : vector<4x128xf32>, vector<4x128xf32> -> vector<4x256xf32>
    %66 = arith.truncf %65 : vector<4x256xf32> to vector<4x256xbf16>
    %cst_37 = arith.constant dense<0.000000e+00> : vector<4x512xf32>
    %67 = tpu.matmul %66, %29, %cst_37 {dimension_numbers = #tpu.dot_dimension_numbers<[1], [0], [0], [1], [0, 0, 1, 1], [], []>} : vector<4x256xbf16>, vector<256x512xbf16>, vector<4x512xf32> -> vector<4x512xf32>
    %68 = vector.broadcast %30 : vector<1x512xf32> to vector<4x512xf32>
    %69 = arith.addf %67, %68 : vector<4x512xf32>
    %70 = vector.extract_strided_slice %69 {offsets = [0, 0], sizes = [4, 128], strides = [1, 1]} : vector<4x512xf32> to vector<4x128xf32>
    %71 = arith.negf %70 : vector<4x128xf32>
    %72 = math.exp %71 : vector<4x128xf32>
    %cst_38 = arith.constant 1.000000e+00 : f32
    %73 = vector.broadcast %cst_38 : f32 to vector<4x128xf32>
    %74 = arith.addf %73, %72 : vector<4x128xf32>
    %75 = arith.divf %73, %74 : vector<4x128xf32>
    %76 = vector.extract_strided_slice %69 {offsets = [0, 128], sizes = [4, 128], strides = [1, 1]} : vector<4x512xf32> to vector<4x128xf32>
    %77 = arith.negf %76 : vector<4x128xf32>
    %78 = math.exp %77 : vector<4x128xf32>
    %cst_39 = arith.constant 1.000000e+00 : f32
    %79 = vector.broadcast %cst_39 : f32 to vector<4x128xf32>
    %80 = arith.addf %79, %78 : vector<4x128xf32>
    %81 = arith.divf %79, %80 : vector<4x128xf32>
    %82 = vector.extract_strided_slice %69 {offsets = [0, 256], sizes = [4, 128], strides = [1, 1]} : vector<4x512xf32> to vector<4x128xf32>
    %83 = math.tanh %82 : vector<4x128xf32>
    %84 = vector.extract_strided_slice %69 {offsets = [0, 384], sizes = [4, 128], strides = [1, 1]} : vector<4x512xf32> to vector<4x128xf32>
    %85 = arith.negf %84 : vector<4x128xf32>
    %86 = math.exp %85 : vector<4x128xf32>
    %cst_40 = arith.constant 1.000000e+00 : f32
    %87 = vector.broadcast %cst_40 : f32 to vector<4x128xf32>
    %88 = arith.addf %87, %86 : vector<4x128xf32>
    %89 = arith.divf %87, %88 : vector<4x128xf32>
    %90 = arith.mulf %81, %34 : vector<4x128xf32>
    %91 = arith.mulf %75, %83 : vector<4x128xf32>
    %92 = arith.addf %90, %91 : vector<4x128xf32>
    %93 = math.tanh %92 : vector<4x128xf32>
    %94 = arith.mulf %89, %93 : vector<4x128xf32>
    %95 = vector.extract_strided_slice %27 {offsets = [0, 1, 0], sizes = [4, 1, 512], strides = [1, 1, 1]} : vector<4x8x512xf32> to vector<4x1x512xf32>
    %96 = vector.shape_cast %95 : vector<4x1x512xf32> to vector<4x512xf32>
    %97 = arith.truncf %64 : vector<4x128xf32> to vector<4x128xbf16>
    %cst_41 = arith.constant dense<0.000000e+00> : vector<4x512xf32>
    %98 = tpu.matmul %97, %28, %cst_41 {dimension_numbers = #tpu.dot_dimension_numbers<[1], [0], [0], [1], [0, 0, 1, 1], [], []>} : vector<4x128xbf16>, vector<128x512xbf16>, vector<4x512xf32> -> vector<4x512xf32>
    %99 = arith.addf %96, %98 : vector<4x512xf32>
    %100 = vector.extract_strided_slice %99 {offsets = [0, 0], sizes = [4, 128], strides = [1, 1]} : vector<4x512xf32> to vector<4x128xf32>
    %101 = arith.negf %100 : vector<4x128xf32>
    %102 = math.exp %101 : vector<4x128xf32>
    %cst_42 = arith.constant 1.000000e+00 : f32
    %103 = vector.broadcast %cst_42 : f32 to vector<4x128xf32>
    %104 = arith.addf %103, %102 : vector<4x128xf32>
    %105 = arith.divf %103, %104 : vector<4x128xf32>
    %106 = vector.extract_strided_slice %99 {offsets = [0, 128], sizes = [4, 128], strides = [1, 1]} : vector<4x512xf32> to vector<4x128xf32>
    %107 = arith.negf %106 : vector<4x128xf32>
    %108 = math.exp %107 : vector<4x128xf32>
    %cst_43 = arith.constant 1.000000e+00 : f32
    %109 = vector.broadcast %cst_43 : f32 to vector<4x128xf32>
    %110 = arith.addf %109, %108 : vector<4x128xf32>
    %111 = arith.divf %109, %110 : vector<4x128xf32>
    %112 = vector.extract_strided_slice %99 {offsets = [0, 256], sizes = [4, 128], strides = [1, 1]} : vector<4x512xf32> to vector<4x128xf32>
    %113 = math.tanh %112 : vector<4x128xf32>
    %114 = vector.extract_strided_slice %99 {offsets = [0, 384], sizes = [4, 128], strides = [1, 1]} : vector<4x512xf32> to vector<4x128xf32>
    %115 = arith.negf %114 : vector<4x128xf32>
    %116 = math.exp %115 : vector<4x128xf32>
    %cst_44 = arith.constant 1.000000e+00 : f32
    %117 = vector.broadcast %cst_44 : f32 to vector<4x128xf32>
    %118 = arith.addf %117, %116 : vector<4x128xf32>
    %119 = arith.divf %117, %118 : vector<4x128xf32>
    %120 = arith.mulf %111, %62 : vector<4x128xf32>
    %121 = arith.mulf %105, %113 : vector<4x128xf32>
    %122 = arith.addf %120, %121 : vector<4x128xf32>
    %123 = math.tanh %122 : vector<4x128xf32>
    %124 = arith.mulf %119, %123 : vector<4x128xf32>
    %125 = tpu.concatenate %124, %94 in 1 : vector<4x128xf32>, vector<4x128xf32> -> vector<4x256xf32>
    %126 = arith.truncf %125 : vector<4x256xf32> to vector<4x256xbf16>
    %cst_45 = arith.constant dense<0.000000e+00> : vector<4x512xf32>
    %127 = tpu.matmul %126, %29, %cst_45 {dimension_numbers = #tpu.dot_dimension_numbers<[1], [0], [0], [1], [0, 0, 1, 1], [], []>} : vector<4x256xbf16>, vector<256x512xbf16>, vector<4x512xf32> -> vector<4x512xf32>
    %128 = vector.broadcast %30 : vector<1x512xf32> to vector<4x512xf32>
    %129 = arith.addf %127, %128 : vector<4x512xf32>
    %130 = vector.extract_strided_slice %129 {offsets = [0, 0], sizes = [4, 128], strides = [1, 1]} : vector<4x512xf32> to vector<4x128xf32>
    %131 = arith.negf %130 : vector<4x128xf32>
    %132 = math.exp %131 : vector<4x128xf32>
    %cst_46 = arith.constant 1.000000e+00 : f32
    %133 = vector.broadcast %cst_46 : f32 to vector<4x128xf32>
    %134 = arith.addf %133, %132 : vector<4x128xf32>
    %135 = arith.divf %133, %134 : vector<4x128xf32>
    %136 = vector.extract_strided_slice %129 {offsets = [0, 128], sizes = [4, 128], strides = [1, 1]} : vector<4x512xf32> to vector<4x128xf32>
    %137 = arith.negf %136 : vector<4x128xf32>
    %138 = math.exp %137 : vector<4x128xf32>
    %cst_47 = arith.constant 1.000000e+00 : f32
    %139 = vector.broadcast %cst_47 : f32 to vector<4x128xf32>
    %140 = arith.addf %139, %138 : vector<4x128xf32>
    %141 = arith.divf %139, %140 : vector<4x128xf32>
    %142 = vector.extract_strided_slice %129 {offsets = [0, 256], sizes = [4, 128], strides = [1, 1]} : vector<4x512xf32> to vector<4x128xf32>
    %143 = math.tanh %142 : vector<4x128xf32>
    %144 = vector.extract_strided_slice %129 {offsets = [0, 384], sizes = [4, 128], strides = [1, 1]} : vector<4x512xf32> to vector<4x128xf32>
    %145 = arith.negf %144 : vector<4x128xf32>
    %146 = math.exp %145 : vector<4x128xf32>
    %cst_48 = arith.constant 1.000000e+00 : f32
    %147 = vector.broadcast %cst_48 : f32 to vector<4x128xf32>
    %148 = arith.addf %147, %146 : vector<4x128xf32>
    %149 = arith.divf %147, %148 : vector<4x128xf32>
    %150 = arith.mulf %141, %92 : vector<4x128xf32>
    %151 = arith.mulf %135, %143 : vector<4x128xf32>
    %152 = arith.addf %150, %151 : vector<4x128xf32>
    %153 = math.tanh %152 : vector<4x128xf32>
    %154 = arith.mulf %149, %153 : vector<4x128xf32>
    %155 = vector.extract_strided_slice %27 {offsets = [0, 2, 0], sizes = [4, 1, 512], strides = [1, 1, 1]} : vector<4x8x512xf32> to vector<4x1x512xf32>
    %156 = vector.shape_cast %155 : vector<4x1x512xf32> to vector<4x512xf32>
    %157 = arith.truncf %124 : vector<4x128xf32> to vector<4x128xbf16>
    %cst_49 = arith.constant dense<0.000000e+00> : vector<4x512xf32>
    %158 = tpu.matmul %157, %28, %cst_49 {dimension_numbers = #tpu.dot_dimension_numbers<[1], [0], [0], [1], [0, 0, 1, 1], [], []>} : vector<4x128xbf16>, vector<128x512xbf16>, vector<4x512xf32> -> vector<4x512xf32>
    %159 = arith.addf %156, %158 : vector<4x512xf32>
    %160 = vector.extract_strided_slice %159 {offsets = [0, 0], sizes = [4, 128], strides = [1, 1]} : vector<4x512xf32> to vector<4x128xf32>
    %161 = arith.negf %160 : vector<4x128xf32>
    %162 = math.exp %161 : vector<4x128xf32>
    %cst_50 = arith.constant 1.000000e+00 : f32
    %163 = vector.broadcast %cst_50 : f32 to vector<4x128xf32>
    %164 = arith.addf %163, %162 : vector<4x128xf32>
    %165 = arith.divf %163, %164 : vector<4x128xf32>
    %166 = vector.extract_strided_slice %159 {offsets = [0, 128], sizes = [4, 128], strides = [1, 1]} : vector<4x512xf32> to vector<4x128xf32>
    %167 = arith.negf %166 : vector<4x128xf32>
    %168 = math.exp %167 : vector<4x128xf32>
    %cst_51 = arith.constant 1.000000e+00 : f32
    %169 = vector.broadcast %cst_51 : f32 to vector<4x128xf32>
    %170 = arith.addf %169, %168 : vector<4x128xf32>
    %171 = arith.divf %169, %170 : vector<4x128xf32>
    %172 = vector.extract_strided_slice %159 {offsets = [0, 256], sizes = [4, 128], strides = [1, 1]} : vector<4x512xf32> to vector<4x128xf32>
    %173 = math.tanh %172 : vector<4x128xf32>
    %174 = vector.extract_strided_slice %159 {offsets = [0, 384], sizes = [4, 128], strides = [1, 1]} : vector<4x512xf32> to vector<4x128xf32>
    %175 = arith.negf %174 : vector<4x128xf32>
    %176 = math.exp %175 : vector<4x128xf32>
    %cst_52 = arith.constant 1.000000e+00 : f32
    %177 = vector.broadcast %cst_52 : f32 to vector<4x128xf32>
    %178 = arith.addf %177, %176 : vector<4x128xf32>
    %179 = arith.divf %177, %178 : vector<4x128xf32>
    %180 = arith.mulf %171, %122 : vector<4x128xf32>
    %181 = arith.mulf %165, %173 : vector<4x128xf32>
    %182 = arith.addf %180, %181 : vector<4x128xf32>
    %183 = math.tanh %182 : vector<4x128xf32>
    %184 = arith.mulf %179, %183 : vector<4x128xf32>
    %185 = tpu.concatenate %184, %154 in 1 : vector<4x128xf32>, vector<4x128xf32> -> vector<4x256xf32>
    %186 = arith.truncf %185 : vector<4x256xf32> to vector<4x256xbf16>
    %cst_53 = arith.constant dense<0.000000e+00> : vector<4x512xf32>
    %187 = tpu.matmul %186, %29, %cst_53 {dimension_numbers = #tpu.dot_dimension_numbers<[1], [0], [0], [1], [0, 0, 1, 1], [], []>} : vector<4x256xbf16>, vector<256x512xbf16>, vector<4x512xf32> -> vector<4x512xf32>
    %188 = vector.broadcast %30 : vector<1x512xf32> to vector<4x512xf32>
    %189 = arith.addf %187, %188 : vector<4x512xf32>
    %190 = vector.extract_strided_slice %189 {offsets = [0, 0], sizes = [4, 128], strides = [1, 1]} : vector<4x512xf32> to vector<4x128xf32>
    %191 = arith.negf %190 : vector<4x128xf32>
    %192 = math.exp %191 : vector<4x128xf32>
    %cst_54 = arith.constant 1.000000e+00 : f32
    %193 = vector.broadcast %cst_54 : f32 to vector<4x128xf32>
    %194 = arith.addf %193, %192 : vector<4x128xf32>
    %195 = arith.divf %193, %194 : vector<4x128xf32>
    %196 = vector.extract_strided_slice %189 {offsets = [0, 128], sizes = [4, 128], strides = [1, 1]} : vector<4x512xf32> to vector<4x128xf32>
    %197 = arith.negf %196 : vector<4x128xf32>
    %198 = math.exp %197 : vector<4x128xf32>
    %cst_55 = arith.constant 1.000000e+00 : f32
    %199 = vector.broadcast %cst_55 : f32 to vector<4x128xf32>
    %200 = arith.addf %199, %198 : vector<4x128xf32>
    %201 = arith.divf %199, %200 : vector<4x128xf32>
    %202 = vector.extract_strided_slice %189 {offsets = [0, 256], sizes = [4, 128], strides = [1, 1]} : vector<4x512xf32> to vector<4x128xf32>
    %203 = math.tanh %202 : vector<4x128xf32>
    %204 = vector.extract_strided_slice %189 {offsets = [0, 384], sizes = [4, 128], strides = [1, 1]} : vector<4x512xf32> to vector<4x128xf32>
    %205 = arith.negf %204 : vector<4x128xf32>
    %206 = math.exp %205 : vector<4x128xf32>
    %cst_56 = arith.constant 1.000000e+00 : f32
    %207 = vector.broadcast %cst_56 : f32 to vector<4x128xf32>
    %208 = arith.addf %207, %206 : vector<4x128xf32>
    %209 = arith.divf %207, %208 : vector<4x128xf32>
    %210 = arith.mulf %201, %152 : vector<4x128xf32>
    %211 = arith.mulf %195, %203 : vector<4x128xf32>
    %212 = arith.addf %210, %211 : vector<4x128xf32>
    %213 = math.tanh %212 : vector<4x128xf32>
    %214 = arith.mulf %209, %213 : vector<4x128xf32>
    %215 = vector.extract_strided_slice %27 {offsets = [0, 3, 0], sizes = [4, 1, 512], strides = [1, 1, 1]} : vector<4x8x512xf32> to vector<4x1x512xf32>
    %216 = vector.shape_cast %215 : vector<4x1x512xf32> to vector<4x512xf32>
    %217 = arith.truncf %184 : vector<4x128xf32> to vector<4x128xbf16>
    %cst_57 = arith.constant dense<0.000000e+00> : vector<4x512xf32>
    %218 = tpu.matmul %217, %28, %cst_57 {dimension_numbers = #tpu.dot_dimension_numbers<[1], [0], [0], [1], [0, 0, 1, 1], [], []>} : vector<4x128xbf16>, vector<128x512xbf16>, vector<4x512xf32> -> vector<4x512xf32>
    %219 = arith.addf %216, %218 : vector<4x512xf32>
    %220 = vector.extract_strided_slice %219 {offsets = [0, 0], sizes = [4, 128], strides = [1, 1]} : vector<4x512xf32> to vector<4x128xf32>
    %221 = arith.negf %220 : vector<4x128xf32>
    %222 = math.exp %221 : vector<4x128xf32>
    %cst_58 = arith.constant 1.000000e+00 : f32
    %223 = vector.broadcast %cst_58 : f32 to vector<4x128xf32>
    %224 = arith.addf %223, %222 : vector<4x128xf32>
    %225 = arith.divf %223, %224 : vector<4x128xf32>
    %226 = vector.extract_strided_slice %219 {offsets = [0, 128], sizes = [4, 128], strides = [1, 1]} : vector<4x512xf32> to vector<4x128xf32>
    %227 = arith.negf %226 : vector<4x128xf32>
    %228 = math.exp %227 : vector<4x128xf32>
    %cst_59 = arith.constant 1.000000e+00 : f32
    %229 = vector.broadcast %cst_59 : f32 to vector<4x128xf32>
    %230 = arith.addf %229, %228 : vector<4x128xf32>
    %231 = arith.divf %229, %230 : vector<4x128xf32>
    %232 = vector.extract_strided_slice %219 {offsets = [0, 256], sizes = [4, 128], strides = [1, 1]} : vector<4x512xf32> to vector<4x128xf32>
    %233 = math.tanh %232 : vector<4x128xf32>
    %234 = vector.extract_strided_slice %219 {offsets = [0, 384], sizes = [4, 128], strides = [1, 1]} : vector<4x512xf32> to vector<4x128xf32>
    %235 = arith.negf %234 : vector<4x128xf32>
    %236 = math.exp %235 : vector<4x128xf32>
    %cst_60 = arith.constant 1.000000e+00 : f32
    %237 = vector.broadcast %cst_60 : f32 to vector<4x128xf32>
    %238 = arith.addf %237, %236 : vector<4x128xf32>
    %239 = arith.divf %237, %238 : vector<4x128xf32>
    %240 = arith.mulf %231, %182 : vector<4x128xf32>
    %241 = arith.mulf %225, %233 : vector<4x128xf32>
    %242 = arith.addf %240, %241 : vector<4x128xf32>
    %243 = math.tanh %242 : vector<4x128xf32>
    %244 = arith.mulf %239, %243 : vector<4x128xf32>
    %245 = tpu.concatenate %244, %214 in 1 : vector<4x128xf32>, vector<4x128xf32> -> vector<4x256xf32>
    %246 = arith.truncf %245 : vector<4x256xf32> to vector<4x256xbf16>
    %cst_61 = arith.constant dense<0.000000e+00> : vector<4x512xf32>
    %247 = tpu.matmul %246, %29, %cst_61 {dimension_numbers = #tpu.dot_dimension_numbers<[1], [0], [0], [1], [0, 0, 1, 1], [], []>} : vector<4x256xbf16>, vector<256x512xbf16>, vector<4x512xf32> -> vector<4x512xf32>
    %248 = vector.broadcast %30 : vector<1x512xf32> to vector<4x512xf32>
    %249 = arith.addf %247, %248 : vector<4x512xf32>
    %250 = vector.extract_strided_slice %249 {offsets = [0, 0], sizes = [4, 128], strides = [1, 1]} : vector<4x512xf32> to vector<4x128xf32>
    %251 = arith.negf %250 : vector<4x128xf32>
    %252 = math.exp %251 : vector<4x128xf32>
    %cst_62 = arith.constant 1.000000e+00 : f32
    %253 = vector.broadcast %cst_62 : f32 to vector<4x128xf32>
    %254 = arith.addf %253, %252 : vector<4x128xf32>
    %255 = arith.divf %253, %254 : vector<4x128xf32>
    %256 = vector.extract_strided_slice %249 {offsets = [0, 128], sizes = [4, 128], strides = [1, 1]} : vector<4x512xf32> to vector<4x128xf32>
    %257 = arith.negf %256 : vector<4x128xf32>
    %258 = math.exp %257 : vector<4x128xf32>
    %cst_63 = arith.constant 1.000000e+00 : f32
    %259 = vector.broadcast %cst_63 : f32 to vector<4x128xf32>
    %260 = arith.addf %259, %258 : vector<4x128xf32>
    %261 = arith.divf %259, %260 : vector<4x128xf32>
    %262 = vector.extract_strided_slice %249 {offsets = [0, 256], sizes = [4, 128], strides = [1, 1]} : vector<4x512xf32> to vector<4x128xf32>
    %263 = math.tanh %262 : vector<4x128xf32>
    %264 = vector.extract_strided_slice %249 {offsets = [0, 384], sizes = [4, 128], strides = [1, 1]} : vector<4x512xf32> to vector<4x128xf32>
    %265 = arith.negf %264 : vector<4x128xf32>
    %266 = math.exp %265 : vector<4x128xf32>
    %cst_64 = arith.constant 1.000000e+00 : f32
    %267 = vector.broadcast %cst_64 : f32 to vector<4x128xf32>
    %268 = arith.addf %267, %266 : vector<4x128xf32>
    %269 = arith.divf %267, %268 : vector<4x128xf32>
    %270 = arith.mulf %261, %212 : vector<4x128xf32>
    %271 = arith.mulf %255, %263 : vector<4x128xf32>
    %272 = arith.addf %270, %271 : vector<4x128xf32>
    %273 = math.tanh %272 : vector<4x128xf32>
    %274 = arith.mulf %269, %273 : vector<4x128xf32>
    %275 = vector.extract_strided_slice %27 {offsets = [0, 4, 0], sizes = [4, 1, 512], strides = [1, 1, 1]} : vector<4x8x512xf32> to vector<4x1x512xf32>
    %276 = vector.shape_cast %275 : vector<4x1x512xf32> to vector<4x512xf32>
    %277 = arith.truncf %244 : vector<4x128xf32> to vector<4x128xbf16>
    %cst_65 = arith.constant dense<0.000000e+00> : vector<4x512xf32>
    %278 = tpu.matmul %277, %28, %cst_65 {dimension_numbers = #tpu.dot_dimension_numbers<[1], [0], [0], [1], [0, 0, 1, 1], [], []>} : vector<4x128xbf16>, vector<128x512xbf16>, vector<4x512xf32> -> vector<4x512xf32>
    %279 = arith.addf %276, %278 : vector<4x512xf32>
    %280 = vector.extract_strided_slice %279 {offsets = [0, 0], sizes = [4, 128], strides = [1, 1]} : vector<4x512xf32> to vector<4x128xf32>
    %281 = arith.negf %280 : vector<4x128xf32>
    %282 = math.exp %281 : vector<4x128xf32>
    %cst_66 = arith.constant 1.000000e+00 : f32
    %283 = vector.broadcast %cst_66 : f32 to vector<4x128xf32>
    %284 = arith.addf %283, %282 : vector<4x128xf32>
    %285 = arith.divf %283, %284 : vector<4x128xf32>
    %286 = vector.extract_strided_slice %279 {offsets = [0, 128], sizes = [4, 128], strides = [1, 1]} : vector<4x512xf32> to vector<4x128xf32>
    %287 = arith.negf %286 : vector<4x128xf32>
    %288 = math.exp %287 : vector<4x128xf32>
    %cst_67 = arith.constant 1.000000e+00 : f32
    %289 = vector.broadcast %cst_67 : f32 to vector<4x128xf32>
    %290 = arith.addf %289, %288 : vector<4x128xf32>
    %291 = arith.divf %289, %290 : vector<4x128xf32>
    %292 = vector.extract_strided_slice %279 {offsets = [0, 256], sizes = [4, 128], strides = [1, 1]} : vector<4x512xf32> to vector<4x128xf32>
    %293 = math.tanh %292 : vector<4x128xf32>
    %294 = vector.extract_strided_slice %279 {offsets = [0, 384], sizes = [4, 128], strides = [1, 1]} : vector<4x512xf32> to vector<4x128xf32>
    %295 = arith.negf %294 : vector<4x128xf32>
    %296 = math.exp %295 : vector<4x128xf32>
    %cst_68 = arith.constant 1.000000e+00 : f32
    %297 = vector.broadcast %cst_68 : f32 to vector<4x128xf32>
    %298 = arith.addf %297, %296 : vector<4x128xf32>
    %299 = arith.divf %297, %298 : vector<4x128xf32>
    %300 = arith.mulf %291, %242 : vector<4x128xf32>
    %301 = arith.mulf %285, %293 : vector<4x128xf32>
    %302 = arith.addf %300, %301 : vector<4x128xf32>
    %303 = math.tanh %302 : vector<4x128xf32>
    %304 = arith.mulf %299, %303 : vector<4x128xf32>
    %305 = tpu.concatenate %304, %274 in 1 : vector<4x128xf32>, vector<4x128xf32> -> vector<4x256xf32>
    %306 = arith.truncf %305 : vector<4x256xf32> to vector<4x256xbf16>
    %cst_69 = arith.constant dense<0.000000e+00> : vector<4x512xf32>
    %307 = tpu.matmul %306, %29, %cst_69 {dimension_numbers = #tpu.dot_dimension_numbers<[1], [0], [0], [1], [0, 0, 1, 1], [], []>} : vector<4x256xbf16>, vector<256x512xbf16>, vector<4x512xf32> -> vector<4x512xf32>
    %308 = vector.broadcast %30 : vector<1x512xf32> to vector<4x512xf32>
    %309 = arith.addf %307, %308 : vector<4x512xf32>
    %310 = vector.extract_strided_slice %309 {offsets = [0, 0], sizes = [4, 128], strides = [1, 1]} : vector<4x512xf32> to vector<4x128xf32>
    %311 = arith.negf %310 : vector<4x128xf32>
    %312 = math.exp %311 : vector<4x128xf32>
    %cst_70 = arith.constant 1.000000e+00 : f32
    %313 = vector.broadcast %cst_70 : f32 to vector<4x128xf32>
    %314 = arith.addf %313, %312 : vector<4x128xf32>
    %315 = arith.divf %313, %314 : vector<4x128xf32>
    %316 = vector.extract_strided_slice %309 {offsets = [0, 128], sizes = [4, 128], strides = [1, 1]} : vector<4x512xf32> to vector<4x128xf32>
    %317 = arith.negf %316 : vector<4x128xf32>
    %318 = math.exp %317 : vector<4x128xf32>
    %cst_71 = arith.constant 1.000000e+00 : f32
    %319 = vector.broadcast %cst_71 : f32 to vector<4x128xf32>
    %320 = arith.addf %319, %318 : vector<4x128xf32>
    %321 = arith.divf %319, %320 : vector<4x128xf32>
    %322 = vector.extract_strided_slice %309 {offsets = [0, 256], sizes = [4, 128], strides = [1, 1]} : vector<4x512xf32> to vector<4x128xf32>
    %323 = math.tanh %322 : vector<4x128xf32>
    %324 = vector.extract_strided_slice %309 {offsets = [0, 384], sizes = [4, 128], strides = [1, 1]} : vector<4x512xf32> to vector<4x128xf32>
    %325 = arith.negf %324 : vector<4x128xf32>
    %326 = math.exp %325 : vector<4x128xf32>
    %cst_72 = arith.constant 1.000000e+00 : f32
    %327 = vector.broadcast %cst_72 : f32 to vector<4x128xf32>
    %328 = arith.addf %327, %326 : vector<4x128xf32>
    %329 = arith.divf %327, %328 : vector<4x128xf32>
    %330 = arith.mulf %321, %272 : vector<4x128xf32>
    %331 = arith.mulf %315, %323 : vector<4x128xf32>
    %332 = arith.addf %330, %331 : vector<4x128xf32>
    %333 = math.tanh %332 : vector<4x128xf32>
    %334 = arith.mulf %329, %333 : vector<4x128xf32>
    %335 = vector.extract_strided_slice %27 {offsets = [0, 5, 0], sizes = [4, 1, 512], strides = [1, 1, 1]} : vector<4x8x512xf32> to vector<4x1x512xf32>
    %336 = vector.shape_cast %335 : vector<4x1x512xf32> to vector<4x512xf32>
    %337 = arith.truncf %304 : vector<4x128xf32> to vector<4x128xbf16>
    %cst_73 = arith.constant dense<0.000000e+00> : vector<4x512xf32>
    %338 = tpu.matmul %337, %28, %cst_73 {dimension_numbers = #tpu.dot_dimension_numbers<[1], [0], [0], [1], [0, 0, 1, 1], [], []>} : vector<4x128xbf16>, vector<128x512xbf16>, vector<4x512xf32> -> vector<4x512xf32>
    %339 = arith.addf %336, %338 : vector<4x512xf32>
    %340 = vector.extract_strided_slice %339 {offsets = [0, 0], sizes = [4, 128], strides = [1, 1]} : vector<4x512xf32> to vector<4x128xf32>
    %341 = arith.negf %340 : vector<4x128xf32>
    %342 = math.exp %341 : vector<4x128xf32>
    %cst_74 = arith.constant 1.000000e+00 : f32
    %343 = vector.broadcast %cst_74 : f32 to vector<4x128xf32>
    %344 = arith.addf %343, %342 : vector<4x128xf32>
    %345 = arith.divf %343, %344 : vector<4x128xf32>
    %346 = vector.extract_strided_slice %339 {offsets = [0, 128], sizes = [4, 128], strides = [1, 1]} : vector<4x512xf32> to vector<4x128xf32>
    %347 = arith.negf %346 : vector<4x128xf32>
    %348 = math.exp %347 : vector<4x128xf32>
    %cst_75 = arith.constant 1.000000e+00 : f32
    %349 = vector.broadcast %cst_75 : f32 to vector<4x128xf32>
    %350 = arith.addf %349, %348 : vector<4x128xf32>
    %351 = arith.divf %349, %350 : vector<4x128xf32>
    %352 = vector.extract_strided_slice %339 {offsets = [0, 256], sizes = [4, 128], strides = [1, 1]} : vector<4x512xf32> to vector<4x128xf32>
    %353 = math.tanh %352 : vector<4x128xf32>
    %354 = vector.extract_strided_slice %339 {offsets = [0, 384], sizes = [4, 128], strides = [1, 1]} : vector<4x512xf32> to vector<4x128xf32>
    %355 = arith.negf %354 : vector<4x128xf32>
    %356 = math.exp %355 : vector<4x128xf32>
    %cst_76 = arith.constant 1.000000e+00 : f32
    %357 = vector.broadcast %cst_76 : f32 to vector<4x128xf32>
    %358 = arith.addf %357, %356 : vector<4x128xf32>
    %359 = arith.divf %357, %358 : vector<4x128xf32>
    %360 = arith.mulf %351, %302 : vector<4x128xf32>
    %361 = arith.mulf %345, %353 : vector<4x128xf32>
    %362 = arith.addf %360, %361 : vector<4x128xf32>
    %363 = math.tanh %362 : vector<4x128xf32>
    %364 = arith.mulf %359, %363 : vector<4x128xf32>
    %365 = tpu.concatenate %364, %334 in 1 : vector<4x128xf32>, vector<4x128xf32> -> vector<4x256xf32>
    %366 = arith.truncf %365 : vector<4x256xf32> to vector<4x256xbf16>
    %cst_77 = arith.constant dense<0.000000e+00> : vector<4x512xf32>
    %367 = tpu.matmul %366, %29, %cst_77 {dimension_numbers = #tpu.dot_dimension_numbers<[1], [0], [0], [1], [0, 0, 1, 1], [], []>} : vector<4x256xbf16>, vector<256x512xbf16>, vector<4x512xf32> -> vector<4x512xf32>
    %368 = vector.broadcast %30 : vector<1x512xf32> to vector<4x512xf32>
    %369 = arith.addf %367, %368 : vector<4x512xf32>
    %370 = vector.extract_strided_slice %369 {offsets = [0, 0], sizes = [4, 128], strides = [1, 1]} : vector<4x512xf32> to vector<4x128xf32>
    %371 = arith.negf %370 : vector<4x128xf32>
    %372 = math.exp %371 : vector<4x128xf32>
    %cst_78 = arith.constant 1.000000e+00 : f32
    %373 = vector.broadcast %cst_78 : f32 to vector<4x128xf32>
    %374 = arith.addf %373, %372 : vector<4x128xf32>
    %375 = arith.divf %373, %374 : vector<4x128xf32>
    %376 = vector.extract_strided_slice %369 {offsets = [0, 128], sizes = [4, 128], strides = [1, 1]} : vector<4x512xf32> to vector<4x128xf32>
    %377 = arith.negf %376 : vector<4x128xf32>
    %378 = math.exp %377 : vector<4x128xf32>
    %cst_79 = arith.constant 1.000000e+00 : f32
    %379 = vector.broadcast %cst_79 : f32 to vector<4x128xf32>
    %380 = arith.addf %379, %378 : vector<4x128xf32>
    %381 = arith.divf %379, %380 : vector<4x128xf32>
    %382 = vector.extract_strided_slice %369 {offsets = [0, 256], sizes = [4, 128], strides = [1, 1]} : vector<4x512xf32> to vector<4x128xf32>
    %383 = math.tanh %382 : vector<4x128xf32>
    %384 = vector.extract_strided_slice %369 {offsets = [0, 384], sizes = [4, 128], strides = [1, 1]} : vector<4x512xf32> to vector<4x128xf32>
    %385 = arith.negf %384 : vector<4x128xf32>
    %386 = math.exp %385 : vector<4x128xf32>
    %cst_80 = arith.constant 1.000000e+00 : f32
    %387 = vector.broadcast %cst_80 : f32 to vector<4x128xf32>
    %388 = arith.addf %387, %386 : vector<4x128xf32>
    %389 = arith.divf %387, %388 : vector<4x128xf32>
    %390 = arith.mulf %381, %332 : vector<4x128xf32>
    %391 = arith.mulf %375, %383 : vector<4x128xf32>
    %392 = arith.addf %390, %391 : vector<4x128xf32>
    %393 = math.tanh %392 : vector<4x128xf32>
    %394 = arith.mulf %389, %393 : vector<4x128xf32>
    %395 = vector.extract_strided_slice %27 {offsets = [0, 6, 0], sizes = [4, 1, 512], strides = [1, 1, 1]} : vector<4x8x512xf32> to vector<4x1x512xf32>
    %396 = vector.shape_cast %395 : vector<4x1x512xf32> to vector<4x512xf32>
    %397 = arith.truncf %364 : vector<4x128xf32> to vector<4x128xbf16>
    %cst_81 = arith.constant dense<0.000000e+00> : vector<4x512xf32>
    %398 = tpu.matmul %397, %28, %cst_81 {dimension_numbers = #tpu.dot_dimension_numbers<[1], [0], [0], [1], [0, 0, 1, 1], [], []>} : vector<4x128xbf16>, vector<128x512xbf16>, vector<4x512xf32> -> vector<4x512xf32>
    %399 = arith.addf %396, %398 : vector<4x512xf32>
    %400 = vector.extract_strided_slice %399 {offsets = [0, 0], sizes = [4, 128], strides = [1, 1]} : vector<4x512xf32> to vector<4x128xf32>
    %401 = arith.negf %400 : vector<4x128xf32>
    %402 = math.exp %401 : vector<4x128xf32>
    %cst_82 = arith.constant 1.000000e+00 : f32
    %403 = vector.broadcast %cst_82 : f32 to vector<4x128xf32>
    %404 = arith.addf %403, %402 : vector<4x128xf32>
    %405 = arith.divf %403, %404 : vector<4x128xf32>
    %406 = vector.extract_strided_slice %399 {offsets = [0, 128], sizes = [4, 128], strides = [1, 1]} : vector<4x512xf32> to vector<4x128xf32>
    %407 = arith.negf %406 : vector<4x128xf32>
    %408 = math.exp %407 : vector<4x128xf32>
    %cst_83 = arith.constant 1.000000e+00 : f32
    %409 = vector.broadcast %cst_83 : f32 to vector<4x128xf32>
    %410 = arith.addf %409, %408 : vector<4x128xf32>
    %411 = arith.divf %409, %410 : vector<4x128xf32>
    %412 = vector.extract_strided_slice %399 {offsets = [0, 256], sizes = [4, 128], strides = [1, 1]} : vector<4x512xf32> to vector<4x128xf32>
    %413 = math.tanh %412 : vector<4x128xf32>
    %414 = vector.extract_strided_slice %399 {offsets = [0, 384], sizes = [4, 128], strides = [1, 1]} : vector<4x512xf32> to vector<4x128xf32>
    %415 = arith.negf %414 : vector<4x128xf32>
    %416 = math.exp %415 : vector<4x128xf32>
    %cst_84 = arith.constant 1.000000e+00 : f32
    %417 = vector.broadcast %cst_84 : f32 to vector<4x128xf32>
    %418 = arith.addf %417, %416 : vector<4x128xf32>
    %419 = arith.divf %417, %418 : vector<4x128xf32>
    %420 = arith.mulf %411, %362 : vector<4x128xf32>
    %421 = arith.mulf %405, %413 : vector<4x128xf32>
    %422 = arith.addf %420, %421 : vector<4x128xf32>
    %423 = math.tanh %422 : vector<4x128xf32>
    %424 = arith.mulf %419, %423 : vector<4x128xf32>
    %425 = tpu.concatenate %424, %394 in 1 : vector<4x128xf32>, vector<4x128xf32> -> vector<4x256xf32>
    %426 = arith.truncf %425 : vector<4x256xf32> to vector<4x256xbf16>
    %cst_85 = arith.constant dense<0.000000e+00> : vector<4x512xf32>
    %427 = tpu.matmul %426, %29, %cst_85 {dimension_numbers = #tpu.dot_dimension_numbers<[1], [0], [0], [1], [0, 0, 1, 1], [], []>} : vector<4x256xbf16>, vector<256x512xbf16>, vector<4x512xf32> -> vector<4x512xf32>
    %428 = vector.broadcast %30 : vector<1x512xf32> to vector<4x512xf32>
    %429 = arith.addf %427, %428 : vector<4x512xf32>
    %430 = vector.extract_strided_slice %429 {offsets = [0, 0], sizes = [4, 128], strides = [1, 1]} : vector<4x512xf32> to vector<4x128xf32>
    %431 = arith.negf %430 : vector<4x128xf32>
    %432 = math.exp %431 : vector<4x128xf32>
    %cst_86 = arith.constant 1.000000e+00 : f32
    %433 = vector.broadcast %cst_86 : f32 to vector<4x128xf32>
    %434 = arith.addf %433, %432 : vector<4x128xf32>
    %435 = arith.divf %433, %434 : vector<4x128xf32>
    %436 = vector.extract_strided_slice %429 {offsets = [0, 128], sizes = [4, 128], strides = [1, 1]} : vector<4x512xf32> to vector<4x128xf32>
    %437 = arith.negf %436 : vector<4x128xf32>
    %438 = math.exp %437 : vector<4x128xf32>
    %cst_87 = arith.constant 1.000000e+00 : f32
    %439 = vector.broadcast %cst_87 : f32 to vector<4x128xf32>
    %440 = arith.addf %439, %438 : vector<4x128xf32>
    %441 = arith.divf %439, %440 : vector<4x128xf32>
    %442 = vector.extract_strided_slice %429 {offsets = [0, 256], sizes = [4, 128], strides = [1, 1]} : vector<4x512xf32> to vector<4x128xf32>
    %443 = math.tanh %442 : vector<4x128xf32>
    %444 = vector.extract_strided_slice %429 {offsets = [0, 384], sizes = [4, 128], strides = [1, 1]} : vector<4x512xf32> to vector<4x128xf32>
    %445 = arith.negf %444 : vector<4x128xf32>
    %446 = math.exp %445 : vector<4x128xf32>
    %cst_88 = arith.constant 1.000000e+00 : f32
    %447 = vector.broadcast %cst_88 : f32 to vector<4x128xf32>
    %448 = arith.addf %447, %446 : vector<4x128xf32>
    %449 = arith.divf %447, %448 : vector<4x128xf32>
    %450 = arith.mulf %441, %392 : vector<4x128xf32>
    %451 = arith.mulf %435, %443 : vector<4x128xf32>
    %452 = arith.addf %450, %451 : vector<4x128xf32>
    %453 = math.tanh %452 : vector<4x128xf32>
    %454 = arith.mulf %449, %453 : vector<4x128xf32>
    %455 = vector.extract_strided_slice %27 {offsets = [0, 7, 0], sizes = [4, 1, 512], strides = [1, 1, 1]} : vector<4x8x512xf32> to vector<4x1x512xf32>
    %456 = vector.shape_cast %455 : vector<4x1x512xf32> to vector<4x512xf32>
    %457 = arith.truncf %424 : vector<4x128xf32> to vector<4x128xbf16>
    %cst_89 = arith.constant dense<0.000000e+00> : vector<4x512xf32>
    %458 = tpu.matmul %457, %28, %cst_89 {dimension_numbers = #tpu.dot_dimension_numbers<[1], [0], [0], [1], [0, 0, 1, 1], [], []>} : vector<4x128xbf16>, vector<128x512xbf16>, vector<4x512xf32> -> vector<4x512xf32>
    %459 = arith.addf %456, %458 : vector<4x512xf32>
    %460 = vector.extract_strided_slice %459 {offsets = [0, 0], sizes = [4, 128], strides = [1, 1]} : vector<4x512xf32> to vector<4x128xf32>
    %461 = arith.negf %460 : vector<4x128xf32>
    %462 = math.exp %461 : vector<4x128xf32>
    %cst_90 = arith.constant 1.000000e+00 : f32
    %463 = vector.broadcast %cst_90 : f32 to vector<4x128xf32>
    %464 = arith.addf %463, %462 : vector<4x128xf32>
    %465 = arith.divf %463, %464 : vector<4x128xf32>
    %466 = vector.extract_strided_slice %459 {offsets = [0, 128], sizes = [4, 128], strides = [1, 1]} : vector<4x512xf32> to vector<4x128xf32>
    %467 = arith.negf %466 : vector<4x128xf32>
    %468 = math.exp %467 : vector<4x128xf32>
    %cst_91 = arith.constant 1.000000e+00 : f32
    %469 = vector.broadcast %cst_91 : f32 to vector<4x128xf32>
    %470 = arith.addf %469, %468 : vector<4x128xf32>
    %471 = arith.divf %469, %470 : vector<4x128xf32>
    %472 = vector.extract_strided_slice %459 {offsets = [0, 256], sizes = [4, 128], strides = [1, 1]} : vector<4x512xf32> to vector<4x128xf32>
    %473 = math.tanh %472 : vector<4x128xf32>
    %474 = vector.extract_strided_slice %459 {offsets = [0, 384], sizes = [4, 128], strides = [1, 1]} : vector<4x512xf32> to vector<4x128xf32>
    %475 = arith.negf %474 : vector<4x128xf32>
    %476 = math.exp %475 : vector<4x128xf32>
    %cst_92 = arith.constant 1.000000e+00 : f32
    %477 = vector.broadcast %cst_92 : f32 to vector<4x128xf32>
    %478 = arith.addf %477, %476 : vector<4x128xf32>
    %479 = arith.divf %477, %478 : vector<4x128xf32>
    %480 = arith.mulf %471, %422 : vector<4x128xf32>
    %481 = arith.mulf %465, %473 : vector<4x128xf32>
    %482 = arith.addf %480, %481 : vector<4x128xf32>
    %483 = math.tanh %482 : vector<4x128xf32>
    %484 = arith.mulf %479, %483 : vector<4x128xf32>
    %485 = tpu.concatenate %484, %454 in 1 : vector<4x128xf32>, vector<4x128xf32> -> vector<4x256xf32>
    %486 = arith.truncf %485 : vector<4x256xf32> to vector<4x256xbf16>
    %cst_93 = arith.constant dense<0.000000e+00> : vector<4x512xf32>
    %487 = tpu.matmul %486, %29, %cst_93 {dimension_numbers = #tpu.dot_dimension_numbers<[1], [0], [0], [1], [0, 0, 1, 1], [], []>} : vector<4x256xbf16>, vector<256x512xbf16>, vector<4x512xf32> -> vector<4x512xf32>
    %488 = vector.broadcast %30 : vector<1x512xf32> to vector<4x512xf32>
    %489 = arith.addf %487, %488 : vector<4x512xf32>
    %490 = vector.extract_strided_slice %489 {offsets = [0, 0], sizes = [4, 128], strides = [1, 1]} : vector<4x512xf32> to vector<4x128xf32>
    %491 = arith.negf %490 : vector<4x128xf32>
    %492 = math.exp %491 : vector<4x128xf32>
    %cst_94 = arith.constant 1.000000e+00 : f32
    %493 = vector.broadcast %cst_94 : f32 to vector<4x128xf32>
    %494 = arith.addf %493, %492 : vector<4x128xf32>
    %495 = arith.divf %493, %494 : vector<4x128xf32>
    %496 = vector.extract_strided_slice %489 {offsets = [0, 128], sizes = [4, 128], strides = [1, 1]} : vector<4x512xf32> to vector<4x128xf32>
    %497 = arith.negf %496 : vector<4x128xf32>
    %498 = math.exp %497 : vector<4x128xf32>
    %cst_95 = arith.constant 1.000000e+00 : f32
    %499 = vector.broadcast %cst_95 : f32 to vector<4x128xf32>
    %500 = arith.addf %499, %498 : vector<4x128xf32>
    %501 = arith.divf %499, %500 : vector<4x128xf32>
    %502 = vector.extract_strided_slice %489 {offsets = [0, 256], sizes = [4, 128], strides = [1, 1]} : vector<4x512xf32> to vector<4x128xf32>
    %503 = math.tanh %502 : vector<4x128xf32>
    %504 = vector.extract_strided_slice %489 {offsets = [0, 384], sizes = [4, 128], strides = [1, 1]} : vector<4x512xf32> to vector<4x128xf32>
    %505 = arith.negf %504 : vector<4x128xf32>
    %506 = math.exp %505 : vector<4x128xf32>
    %cst_96 = arith.constant 1.000000e+00 : f32
    %507 = vector.broadcast %cst_96 : f32 to vector<4x128xf32>
    %508 = arith.addf %507, %506 : vector<4x128xf32>
    %509 = arith.divf %507, %508 : vector<4x128xf32>
    %510 = arith.mulf %501, %452 : vector<4x128xf32>
    %511 = arith.mulf %495, %503 : vector<4x128xf32>
    %512 = arith.addf %510, %511 : vector<4x128xf32>
    %513 = math.tanh %512 : vector<4x128xf32>
    %514 = arith.mulf %509, %513 : vector<4x128xf32>
    %c0_97 = arith.constant 0 : index
    %c0_98 = arith.constant 0 : index
    %515 = vector.load %arg14[%c0_97, %c0_98] : memref<4x128xf32, #tpu.memory_space<vmem>>, vector<4x128xf32>
    tpu.vector_store %arg14[%c0_97, %c0_98], %484 {strides = array<i32>} : memref<4x128xf32, #tpu.memory_space<vmem>>, vector<4x128xf32>,
    %c0_99 = arith.constant 0 : index
    %c0_100 = arith.constant 0 : index
    %516 = vector.load %arg15[%c0_99, %c0_100] : memref<4x128xf32, #tpu.memory_space<vmem>>, vector<4x128xf32>
    tpu.vector_store %arg15[%c0_99, %c0_100], %482 {strides = array<i32>} : memref<4x128xf32, #tpu.memory_space<vmem>>, vector<4x128xf32>,
    %c0_101 = arith.constant 0 : index
    %c0_102 = arith.constant 0 : index
    %517 = vector.load %arg16[%c0_101, %c0_102] : memref<4x128xf32, #tpu.memory_space<vmem>>, vector<4x128xf32>
    tpu.vector_store %arg16[%c0_101, %c0_102], %514 {strides = array<i32>} : memref<4x128xf32, #tpu.memory_space<vmem>>, vector<4x128xf32>,
    %c0_103 = arith.constant 0 : index
    %c0_104 = arith.constant 0 : index
    %518 = vector.load %arg17[%c0_103, %c0_104] : memref<4x128xf32, #tpu.memory_space<vmem>>, vector<4x128xf32>
    tpu.vector_store %arg17[%c0_103, %c0_104], %512 {strides = array<i32>} : memref<4x128xf32, #tpu.memory_space<vmem>>, vector<4x128xf32>,
    %c0_i32_105 = arith.constant 0 : i32
    %519 = arith.cmpi eq, %arg1, %c0_i32_105 : i32
    %520 = arith.extui %519 : i1 to i32
    %c0_i32_106 = arith.constant 0 : i32
    %521 = arith.cmpi ne, %520, %c0_i32_106 : i32
    scf.if %521 {
      %522 = arith.truncf %514 : vector<4x128xf32> to vector<4x128xbf16>
      %c0_107 = arith.constant 0 : index
      %c0_108 = arith.constant 0 : index
      %523 = vector.load %arg11[%c0_107, %c0_108] : memref<128x256xbf16, #tpu.memory_space<vmem>>, vector<128x256xbf16>
      %cst_109 = arith.constant dense<0.000000e+00> : vector<4x256xf32>
      %524 = tpu.matmul %522, %523, %cst_109 {dimension_numbers = #tpu.dot_dimension_numbers<[1], [0], [0], [1], [0, 0, 1, 1], [], []>} : vector<4x128xbf16>, vector<128x256xbf16>, vector<4x256xf32> -> vector<4x256xf32>
      %c0_110 = arith.constant 0 : index
      %c0_111 = arith.constant 0 : index
      %525 = vector.load %arg12[%c0_110, %c0_111] : memref<1x256xf32, #tpu.memory_space<vmem>>, vector<1x256xf32>
      %526 = vector.broadcast %525 : vector<1x256xf32> to vector<4x256xf32>
      %527 = arith.addf %524, %526 : vector<4x256xf32>
      %cst_112 = arith.constant 0.000000e+00 : f32
      %528 = vector.broadcast %cst_112 : f32 to vector<4x256xf32>
      %529 = arith.maximumf %527, %528 : vector<4x256xf32>
      %c0_113 = arith.constant 0 : index
      %c0_114 = arith.constant 0 : index
      %530 = vector.load %arg13[%c0_113, %c0_114] : memref<4x256xf32, #tpu.memory_space<vmem>>, vector<4x256xf32>
      tpu.vector_store %arg13[%c0_113, %c0_114], %529 {strides = array<i32>} : memref<4x256xf32, #tpu.memory_space<vmem>>, vector<4x256xf32>,
    } else {
    }
    return
  }
  func.func @transform_0(%arg0: i32, %arg1: i32) -> (i32, i32, i32) {
    %c0_i32 = arith.constant 0 : i32
    %c0_i32_0 = arith.constant 0 : i32
    %c0_i32_1 = arith.constant 0 : i32
    return %arg0, %c0_i32, %c0_i32_0 : i32, i32, i32
  }
  func.func @transform_1(%arg0: i32, %arg1: i32) -> (i32, i32, i32) {
    %c0_i32 = arith.constant 0 : i32
    %c0_i32_0 = arith.constant 0 : i32
    return %arg0, %arg1, %c0_i32 : i32, i32, i32
  }
  func.func @transform_2(%arg0: i32, %arg1: i32) -> (i32, i32, i32) {
    %c0_i32 = arith.constant 0 : i32
    %c0_i32_0 = arith.constant 0 : i32
    %c0_i32_1 = arith.constant 0 : i32
    return %c0_i32, %arg1, %c0_i32_0 : i32, i32, i32
  }
  func.func @transform_3(%arg0: i32, %arg1: i32) -> (i32, i32, i32) {
    %c0_i32 = arith.constant 0 : i32
    %c0_i32_0 = arith.constant 0 : i32
    %c0_i32_1 = arith.constant 0 : i32
    return %c0_i32, %arg1, %c0_i32_0 : i32, i32, i32
  }
  func.func @transform_4(%arg0: i32, %arg1: i32) -> (i32, i32, i32) {
    %c0_i32 = arith.constant 0 : i32
    %c0_i32_0 = arith.constant 0 : i32
    %c0_i32_1 = arith.constant 0 : i32
    %c0_i32_2 = arith.constant 0 : i32
    return %c0_i32, %c0_i32_0, %c0_i32_1 : i32, i32, i32
  }
  func.func @transform_5(%arg0: i32, %arg1: i32) -> (i32, i32) {
    %c0_i32 = arith.constant 0 : i32
    %c0_i32_0 = arith.constant 0 : i32
    %c0_i32_1 = arith.constant 0 : i32
    return %c0_i32, %c0_i32_0 : i32, i32
  }
  func.func @transform_6(%arg0: i32, %arg1: i32) -> (i32, i32) {
    %c0_i32 = arith.constant 0 : i32
    %c0_i32_0 = arith.constant 0 : i32
    %c0_i32_1 = arith.constant 0 : i32
    return %c0_i32, %c0_i32_0 : i32, i32
  }
  func.func @transform_7(%arg0: i32, %arg1: i32) -> (i32, i32) {
    %c0_i32 = arith.constant 0 : i32
    %c0_i32_0 = arith.constant 0 : i32
    %c0_i32_1 = arith.constant 0 : i32
    return %c0_i32, %c0_i32_0 : i32, i32
  }
  func.func @transform_8(%arg0: i32, %arg1: i32) -> (i32, i32) {
    %c0_i32 = arith.constant 0 : i32
    %c0_i32_0 = arith.constant 0 : i32
    %c0_i32_1 = arith.constant 0 : i32
    return %c0_i32, %c0_i32_0 : i32, i32
  }
  func.func @transform_9(%arg0: i32, %arg1: i32) -> (i32, i32) {
    %c0_i32 = arith.constant 0 : i32
    %c0_i32_0 = arith.constant 0 : i32
    %c0_i32_1 = arith.constant 0 : i32
    return %c0_i32, %c0_i32_0 : i32, i32
  }
  func.func @transform_10(%arg0: i32, %arg1: i32) -> (i32, i32) {
    %c0_i32 = arith.constant 0 : i32
    %c0_i32_0 = arith.constant 0 : i32
    %c0_i32_1 = arith.constant 0 : i32
    return %c0_i32, %c0_i32_0 : i32, i32
  }
  func.func @transform_11(%arg0: i32, %arg1: i32) -> (i32, i32) {
    %c0_i32 = arith.constant 0 : i32
    %c0_i32_0 = arith.constant 0 : i32
    return %arg0, %c0_i32 : i32, i32
  }
}

</mosaic_0001>

<llo_original>
// kernel: caputo_encoder_forward.1
$region0: #{caputo_encoder_forward.1}
  #allocation0 [shape = 'u32[]', space=smem, size = 0x4, offset = 0x4, fixed_abs, tag = 'smem constant byte address 0x4 - core index']
  #allocation1 [shape = 'u32[144,128]{1,0:T(1,128)}', space=vmem, size = 0x12000, scoped, tag = 'internal scratch']
  #allocation2 [shape = 'f32[4,128]{1,0:T(4,128)}', space=vmem, size = 0x800, scoped, tag = 'scratch operand']
  #allocation3 [shape = 'f32[4,128]{1,0:T(4,128)}', space=vmem, size = 0x800, scoped, tag = 'scratch operand']
  #allocation4 [shape = 'f32[4,128]{1,0:T(4,128)}', space=vmem, size = 0x800, scoped, tag = 'scratch operand']
  #allocation5 [shape = 'f32[4,128]{1,0:T(4,128)}', space=vmem, size = 0x800, scoped, tag = 'scratch operand']
  %s0 = inlined_call_operand.hbm [shape: f32[4,8,64], index: 0, kind: input, shape index: {}, may-alias: {0,1}]
  %s1 = inlined_call_operand.hbm [shape: f32[4,8,64], index: 1, kind: input, shape index: {}, may-alias: {0,1}]
  %s2 = inlined_call_operand.vmem [shape: f32[1,8,8], index: 2, kind: input, shape index: {}]
  %s3 = inlined_call_operand.vmem [shape: f32[1,8,1], index: 3, kind: input, shape index: {}]
  %s4 = inlined_call_operand.hbm [shape: bf16[1,64,512], index: 4, kind: input, shape index: {}]
  %s5 = inlined_call_operand.hbm [shape: bf16[128,512], index: 5, kind: input, shape index: {}]
  %s6 = inlined_call_operand.vmem [shape: f32[1,512], index: 6, kind: input, shape index: {}]
  %s7 = inlined_call_operand.hbm [shape: bf16[256,512], index: 7, kind: input, shape index: {}]
  %s8 = inlined_call_operand.vmem [shape: f32[1,512], index: 8, kind: input, shape index: {}]
  %s9 = inlined_call_operand.hbm [shape: bf16[128,256], index: 9, kind: input, shape index: {}]
  %s10 = inlined_call_operand.vmem [shape: f32[1,256], index: 10, kind: input, shape index: {}]
  %s11 = inlined_call_operand.hbm [shape: f32[4,256], index: 11, kind: output, shape index: {}]
  %s12 = sld [smem:[#allocation0]]
  $region86: #{caputo_encoder_forward.1} parent=0
    _
  %s14 = ssub.s32 1, %s12
  %s15 = scalar_select 0, %s14, %s12
  $region1: #{caputo_encoder_forward.1} parent=0
    #allocation6 [shape = 'u8[16384]{0}', space=vmem, size = 0x4000, scoped, tag = 'input window, operand 0, single buffered']
    #allocation7 [shape = 's32[1]{0}', space=sflag, size = 0x4, scoped, tag = 'scoped memory for caputo_encoder_forward.1']
    #allocation8 [shape = 's32[1]{0}', space=sflag, size = 0x4, scoped, tag = 'scoped memory for caputo_encoder_forward.1']
    #allocation9 [shape = 'u8[16384]{0}', space=vmem, size = 0x4000, scoped, tag = 'input window, operand 1, single buffered']
    #allocation10 [shape = 's32[1]{0}', space=sflag, size = 0x4, scoped, tag = 'scoped memory for caputo_encoder_forward.1']
    #allocation11 [shape = 'u8[65536]{0}', space=vmem, size = 0x10000, scoped, tag = 'input window, operand 4, single buffered']
    #allocation12 [shape = 'u8[131072]{0}', space=vmem, size = 0x20000, scoped, tag = 'input window, operand 5, single buffered']
    #allocation13 [shape = 's32[1]{0}', space=sflag, size = 0x4, scoped, tag = 'scoped memory for caputo_encoder_forward.1']
    #allocation14 [shape = 'u8[262144]{0}', space=vmem, size = 0x40000, scoped, tag = 'input window, operand 7, single buffered']
    #allocation15 [shape = 'u8[65536]{0}', space=vmem, size = 0x10000, scoped, tag = 'input window, operand 9, single buffered']
    #allocation16 [shape = 's32[1]{0}', space=sflag, size = 0x4, scoped, tag = 'scoped memory for caputo_encoder_forward.1']
    #allocation17 [shape = 'u8[4096]{0}', space=vmem, size = 0x1000, scoped, tag = 'output window, operand 0, single buffered']
    %16 = vsyncpa [#allocation7], 0
    %17 = vsyncpa [#allocation10], 0
    %18 = vsyncpa [#allocation13], 0
    %19 = vsyncpa [#allocation16], 0
    %20 = vsyncpa [#allocation8], 0
    // Predicated region
    $region2: #{caputo_encoder_forward.1} parent=1 // pred_check
      _
    $region3: #{caputo_encoder_forward.1} parent=1 // pred_check_branch
      %22 = sbr.rel (0) target = $region5
    $region4: #{caputo_encoder_forward.1} parent=1 // pred_region
      %s24 = ssub.s32 512, 512
      %25 = vsyncadd [#allocation7], %s24
      %s26 = sshll.u32 [#allocation6], 4
      %s27 = int_to_ptr.vmem [resolvable:$true] %s26
      %32 = dma.hbm_to_vmem [thread:$0]  %s0, 512, %s27, [#allocation7], 128, 128, 8
    $region5: #{caputo_encoder_forward.1} parent=1 // pred_fallthru
      _
    // Predicated region
    $region6: #{caputo_encoder_forward.1} parent=1 // pred_check
      _
    $region7: #{caputo_encoder_forward.1} parent=1 // pred_check_branch
      %34 = sbr.rel (0) target = $region9
    $region8: #{caputo_encoder_forward.1} parent=1 // pred_region
      %s36 = ssub.s32 512, 512
      %37 = vsyncadd [#allocation10], %s36
      %s38 = sshll.u32 [#allocation9], 4
      %s39 = int_to_ptr.vmem [resolvable:$true] %s38
      %44 = dma.hbm_to_vmem [thread:$0]  %s1, 512, %s39, [#allocation10], 128, 128, 8
    $region9: #{caputo_encoder_forward.1} parent=1 // pred_fallthru
      _
    // Predicated region
    $region10: #{caputo_encoder_forward.1} parent=1 // pred_check
      _
    $region11: #{caputo_encoder_forward.1} parent=1 // pred_check_branch
      %46 = sbr.rel (0) target = $region13
    $region12: #{caputo_encoder_forward.1} parent=1 // pred_region
      _
    $region13: #{caputo_encoder_forward.1} parent=1 // pred_fallthru
      _
    // Predicated region
    $region14: #{caputo_encoder_forward.1} parent=1 // pred_check
      _
    $region15: #{caputo_encoder_forward.1} parent=1 // pred_check_branch
      %48 = sbr.rel (0) target = $region17
    $region16: #{caputo_encoder_forward.1} parent=1 // pred_region
      _
    $region17: #{caputo_encoder_forward.1} parent=1 // pred_fallthru
      _
    // Predicated region
    $region18: #{caputo_encoder_forward.1} parent=1 // pred_check
      _
    $region19: #{caputo_encoder_forward.1} parent=1 // pred_check_branch
      %50 = sbr.rel (0) target = $region21
    $region20: #{caputo_encoder_forward.1} parent=1 // pred_region
      %s52 = ssub.s32 2048, 2048
      %53 = vsyncadd [#allocation10], %s52
      %s54 = sshll.u32 [#allocation11], 4
      %s55 = int_to_ptr.vmem [resolvable:$true] %s54
      %60 = dma.hbm_to_vmem [thread:$0]  %s4, 2048, %s55, [#allocation10], 256, 256, 16
    $region21: #{caputo_encoder_forward.1} parent=1 // pred_fallthru
      _
    // Predicated region
    $region22: #{caputo_encoder_forward.1} parent=1 // pred_check
      _
    $region23: #{caputo_encoder_forward.1} parent=1 // pred_check_branch
      %62 = sbr.rel (0) target = $region25
    $region24: #{caputo_encoder_forward.1} parent=1 // pred_region
      %s64 = ssub.s32 4096, 4096
      %65 = vsyncadd [#allocation13], %s64
      %s66 = sshll.u32 [#allocation12], 4
      %s67 = int_to_ptr.vmem [resolvable:$true] %s66
      %72 = dma.hbm_to_vmem [thread:$0]  %s5, 4096, %s67, [#allocation13], 256, 256, 16
    $region25: #{caputo_encoder_forward.1} parent=1 // pred_fallthru
      _
    // Predicated region
    $region26: #{caputo_encoder_forward.1} parent=1 // pred_check
      _
    $region27: #{caputo_encoder_forward.1} parent=1 // pred_check_branch
      %74 = sbr.rel (0) target = $region29
    $region28: #{caputo_encoder_forward.1} parent=1 // pred_region
      _
    $region29: #{caputo_encoder_forward.1} parent=1 // pred_fallthru
      _
    // Predicated region
    $region30: #{caputo_encoder_forward.1} parent=1 // pred_check
      _
    $region31: #{caputo_encoder_forward.1} parent=1 // pred_check_branch
      %76 = sbr.rel (0) target = $region33
    $region32: #{caputo_encoder_forward.1} parent=1 // pred_region
      %s78 = ssub.s32 8192, 8192
      %79 = vsyncadd [#allocation13], %s78
      %s80 = sshll.u32 [#allocation14], 4
      %s81 = int_to_ptr.vmem [resolvable:$true] %s80
      %86 = dma.hbm_to_vmem [thread:$0]  %s7, 8192, %s81, [#allocation13], 256, 256, 16
    $region33: #{caputo_encoder_forward.1} parent=1 // pred_fallthru
      _
    // Predicated region
    $region34: #{caputo_encoder_forward.1} parent=1 // pred_check
      _
    $region35: #{caputo_encoder_forward.1} parent=1 // pred_check_branch
      %88 = sbr.rel (0) target = $region37
    $region36: #{caputo_encoder_forward.1} parent=1 // pred_region
      _
    $region37: #{caputo_encoder_forward.1} parent=1 // pred_fallthru
      _
    // Predicated region
    $region38: #{caputo_encoder_forward.1} parent=1 // pred_check
      _
    $region39: #{caputo_encoder_forward.1} parent=1 // pred_check_branch
      %90 = sbr.rel (0) target = $region41
    $region40: #{caputo_encoder_forward.1} parent=1 // pred_region
      %s92 = ssub.s32 2048, 2048
      %93 = vsyncadd [#allocation16], %s92
      %s94 = sshll.u32 [#allocation15], 4
      %s95 = int_to_ptr.vmem [resolvable:$true] %s94
      %100 = dma.hbm_to_vmem [thread:$0]  %s9, 2048, %s95, [#allocation16], 128, 128, 8
    $region41: #{caputo_encoder_forward.1} parent=1 // pred_fallthru
      _
    // Predicated region
    $region42: #{caputo_encoder_forward.1} parent=1 // pred_check
      _
    $region43: #{caputo_encoder_forward.1} parent=1 // pred_check_branch
      %102 = sbr.rel (0) target = $region45
    $region44: #{caputo_encoder_forward.1} parent=1 // pred_region
      _
    $region45: #{caputo_encoder_forward.1} parent=1 // pred_fallthru
      _
    // Predicated region
    $region46: #{caputo_encoder_forward.1} parent=1 // pred_check
      _
    $region47: #{caputo_encoder_forward.1} parent=1 // pred_check_branch
      %104 = sbr.rel (0) target = $region49
    $region48: #{caputo_encoder_forward.1} parent=1 // pred_region
      %105 = dma.done [#allocation7], 512
    $region49: #{caputo_encoder_forward.1} parent=1 // pred_fallthru
      _
    // Predicated region
    $region50: #{caputo_encoder_forward.1} parent=1 // pred_check
      _
    $region51: #{caputo_encoder_forward.1} parent=1 // pred_check_branch
      %107 = sbr.rel (0) target = $region53
    $region52: #{caputo_encoder_forward.1} parent=1 // pred_region
      %108 = dma.done [#allocation10], 512
    $region53: #{caputo_encoder_forward.1} parent=1 // pred_fallthru
      _
    // Predicated region
    $region54: #{caputo_encoder_forward.1} parent=1 // pred_check
      _
    $region55: #{caputo_encoder_forward.1} parent=1 // pred_check_branch
      %110 = sbr.rel (0) target = $region57
    $region56: #{caputo_encoder_forward.1} parent=1 // pred_region
      %111 = dma.done [#allocation10], 2048
    $region57: #{caputo_encoder_forward.1} parent=1 // pred_fallthru
      _
    // Predicated region
    $region58: #{caputo_encoder_forward.1} parent=1 // pred_check
      _
    $region59: #{caputo_encoder_forward.1} parent=1 // pred_check_branch
      %113 = sbr.rel (0) target = $region61
    $region60: #{caputo_encoder_forward.1} parent=1 // pred_region
      %114 = dma.done [#allocation13], 4096
    $region61: #{caputo_encoder_forward.1} parent=1 // pred_fallthru
      _
    // Predicated region
    $region62: #{caputo_encoder_forward.1} parent=1 // pred_check
      _
    $region63: #{caputo_encoder_forward.1} parent=1 // pred_check_branch
      %116 = sbr.rel (0) target = $region65
    $region64: #{caputo_encoder_forward.1} parent=1 // pred_region
      %117 = dma.done [#allocation13], 8192
    $region65: #{caputo_encoder_forward.1} parent=1 // pred_fallthru
      _
    // Predicated region
    $region66: #{caputo_encoder_forward.1} parent=1 // pred_check
      _
    $region67: #{caputo_encoder_forward.1} parent=1 // pred_check_branch
      %119 = sbr.rel (0) target = $region69
    $region68: #{caputo_encoder_forward.1} parent=1 // pred_region
      %120 = dma.done [#allocation16], 2048
    $region69: #{caputo_encoder_forward.1} parent=1 // pred_fallthru
      _
    %p122 = scmp.eq.s32.totalorder 0, 0
    // Predicated region
    $region70: #{caputo_encoder_forward.1} parent=1 // pred_check
      %p123 = pneg %p122
    $region71: #{caputo_encoder_forward.1} parent=1 // pred_check_branch
      %125 = sbr.rel (%p123) target = $region73
    $region72: #{caputo_encoder_forward.1} parent=1 // pred_region
      %126 = vst [vmem:[#allocation2] sm:$0xf] 0.0
      %127 = vst [vmem:[#allocation3] sm:$0xf] 0.0
      %128 = vst [vmem:[#allocation4] sm:$0xf] 0.0
      %129 = vst [vmem:[#allocation5] sm:$0xf] 0.0
    $region73: #{caputo_encoder_forward.1} parent=1 // pred_fallthru
      _
    %v130 = vld [vmem:[#allocation6] sm:$0xff]
    %v131 = vld [vmem:[#allocation6 + $0x8] sm:$0xff]
    %v132 = vld [vmem:[#allocation6 + $0x10] sm:$0xff]
    %v133 = vld [vmem:[#allocation6 + $0x18] sm:$0xff]
    %v134 = vld [vmem:[#allocation9] sm:$0xff]
    %v135 = vld [vmem:[#allocation9 + $0x8] sm:$0xff]
    %v136 = vld [vmem:[#allocation9 + $0x10] sm:$0xff]
    %v137 = vld [vmem:[#allocation9 + $0x18] sm:$0xff]
    %v138 = vld [vmem:[%s2] sm:$0xff]
    %vm139 = vcmask 64512
    %v141 = vsel %vm139, %v138, 0
    %143 = vmatprep.subr.mxu0 0.0
    %144 = vmatpush1.msra.mxu0 %v130
    %145 = vmatprep.subr.mxu0 0.0
    %146 = vmatpush1.msra.mxu0 0.0
    %147 = vmatprep.subr.mxu0 0.0
    %148 = vmatpush1.msra.mxu0 0.0
    %149 = vmatprep.subr.mxu0 0.0
    %150 = vmatpush1.msra.mxu0 0.0
    %151 = vmatprep.subr.mxu0 0.0
    %152 = vmatpush1.msra.mxu0 0.0
    %153 = vmatprep.subr.mxu0 0.0
    %154 = vmatpush1.msra.mxu0 0.0
    %155 = vmatprep.subr.mxu0 0.0
    %156 = vmatpush1.msra.mxu0 0.0
    %157 = vmatprep.subr.mxu0 0.0
    %158 = vmatpush1.msra.mxu0 0.0
    %159 = vmatprep.subr.mxu0 0.0
    %160 = vmatpush1.msra.mxu0 0.0
    %161 = vmatprep.subr.mxu0 0.0
    %162 = vmatpush1.msra.mxu0 0.0
    %163 = vmatprep.subr.mxu0 0.0
    %164 = vmatpush1.msra.mxu0 0.0
    %165 = vmatprep.subr.mxu0 0.0
    %166 = vmatpush1.msra.mxu0 0.0
    %167 = vmatprep.subr.mxu0 0.0
    %168 = vmatpush1.msra.mxu0 0.0
    %169 = vmatprep.subr.mxu0 0.0
    %170 = vmatpush1.msra.mxu0 0.0
    %171 = vmatprep.subr.mxu0 0.0
    %172 = vmatpush1.msra.mxu0 0.0
    %173 = vmatprep.subr.mxu0 0.0
    %174 = vmatpush1.msra.mxu0 0.0
    %175 = vmatprep.subr.mxu0 0.0
    %176 = vmatpush1.msra.mxu0 0.0
    %177 = vmatprep.subr.mxu0 0.0
    %178 = vmatpush1.msra.mxu0 0.0
    %179 = vmatprep.subr.mxu0 0.0
    %180 = vmatpush1.msra.mxu0 0.0
    %181 = vmatprep.subr.mxu0 0.0
    %182 = vmatpush1.msra.mxu0 0.0
    %183 = vmatprep.subr.mxu0 0.0
    %184 = vmatpush1.msra.mxu0 0.0
    %185 = vmatprep.subr.mxu0 0.0
    %186 = vmatpush1.msra.mxu0 0.0
    %187 = vmatprep.subr.mxu0 0.0
    %188 = vmatpush1.msra.mxu0 0.0
    %189 = vmatprep.subr.mxu0 0.0
    %190 = vmatpush1.msra.mxu0 0.0
    %191 = vmatprep.subr.mxu0 0.0
    %192 = vmatpush1.msra.mxu0 0.0
    %193 = vmatprep.subr.mxu0 0.0
    %194 = vmatpush1.msra.mxu0 0.0
    %195 = vmatprep.subr.mxu0 0.0
    %196 = vmatpush1.msra.mxu0 0.0
    %197 = vmatprep.subr.mxu0 0.0
    %198 = vmatpush1.msra.mxu0 0.0
    %199 = vmatprep.subr.mxu0 0.0
    %200 = vmatpush1.msra.mxu0 0.0
    %201 = vmatprep.subr.mxu0 0.0
    %202 = vmatpush1.msra.mxu0 0.0
    %203 = vmatprep.subr.mxu0 0.0
    %204 = vmatpush1.msra.mxu0 0.0
    %205 = vmatprep.subr.mxu0 0.0
    %206 = vmatpush1.msra.mxu0 0.0
    %207 = vmatprep.mubr.f32.mxu0 0.0
    %208 = vmatmul.mubr.f32.gmra.mrb[0].mxu0 %v141
    %v209 = vpop.f32.mrb[0].mxu0
    %v210 = vadd.f32 0.0, %v209
    %v211 = vpop.f32.mrb[0].mxu0
    %212 = vdwg.mxu0
    %213 = vmatprep.subr.mxu0 0.0
    %214 = vmatpush1.msra.mxu0 %v131
    %215 = vmatprep.subr.mxu0 0.0
    %216 = vmatpush1.msra.mxu0 0.0
    %217 = vmatprep.subr.mxu0 0.0
    %218 = vmatpush1.msra.mxu0 0.0
    %219 = vmatprep.subr.mxu0 0.0
    %220 = vmatpush1.msra.mxu0 0.0
    %221 = vmatprep.subr.mxu0 0.0
    %222 = vmatpush1.msra.mxu0 0.0
    %223 = vmatprep.subr.mxu0 0.0
    %224 = vmatpush1.msra.mxu0 0.0
    %225 = vmatprep.subr.mxu0 0.0
    %226 = vmatpush1.msra.mxu0 0.0
    %227 = vmatprep.subr.mxu0 0.0
    %228 = vmatpush1.msra.mxu0 0.0
    %229 = vmatprep.subr.mxu0 0.0
    %230 = vmatpush1.msra.mxu0 0.0
    %231 = vmatprep.subr.mxu0 0.0
    %232 = vmatpush1.msra.mxu0 0.0
    %233 = vmatprep.subr.mxu0 0.0
    %234 = vmatpush1.msra.mxu0 0.0
    %235 = vmatprep.subr.mxu0 0.0
    %236 = vmatpush1.msra.mxu0 0.0
    %237 = vmatprep.subr.mxu0 0.0
    %238 = vmatpush1.msra.mxu0 0.0
    %239 = vmatprep.subr.mxu0 0.0
    %240 = vmatpush1.msra.mxu0 0.0
    %241 = vmatprep.subr.mxu0 0.0
    %242 = vmatpush1.msra.mxu0 0.0
    %243 = vmatprep.subr.mxu0 0.0
    %244 = vmatpush1.msra.mxu0 0.0
    %245 = vmatprep.subr.mxu0 0.0
    %246 = vmatpush1.msra.mxu0 0.0
    %247 = vmatprep.subr.mxu0 0.0
    %248 = vmatpush1.msra.mxu0 0.0
    %249 = vmatprep.subr.mxu0 0.0
    %250 = vmatpush1.msra.mxu0 0.0
    %251 = vmatprep.subr.mxu0 0.0
    %252 = vmatpush1.msra.mxu0 0.0
    %253 = vmatprep.subr.mxu0 0.0
    %254 = vmatpush1.msra.mxu0 0.0
    %255 = vmatprep.subr.mxu0 0.0
    %256 = vmatpush1.msra.mxu0 0.0
    %257 = vmatprep.subr.mxu0 0.0
    %258 = vmatpush1.msra.mxu0 0.0
    %259 = vmatprep.subr.mxu0 0.0
    %260 = vmatpush1.msra.mxu0 0.0
    %261 = vmatprep.subr.mxu0 0.0
    %262 = vmatpush1.msra.mxu0 0.0
    %263 = vmatprep.subr.mxu0 0.0
    %264 = vmatpush1.msra.mxu0 0.0
    %265 = vmatprep.subr.mxu0 0.0
    %266 = vmatpush1.msra.mxu0 0.0
    %267 = vmatprep.subr.mxu0 0.0
    %268 = vmatpush1.msra.mxu0 0.0
    %269 = vmatprep.subr.mxu0 0.0
    %270 = vmatpush1.msra.mxu0 0.0
    %271 = vmatprep.subr.mxu0 0.0
    %272 = vmatpush1.msra.mxu0 0.0
    %273 = vmatprep.subr.mxu0 0.0
    %274 = vmatpush1.msra.mxu0 0.0
    %275 = vmatprep.subr.mxu0 0.0
    %276 = vmatpush1.msra.mxu0 0.0
    %277 = vmatprep.mubr.f32.mxu0 0.0
    %278 = vmatmul.mubr.f32.gmra.mrb[0].mxu0 %v141
    %v279 = vpop.f32.mrb[0].mxu0
    %v280 = vadd.f32 0.0, %v279
    %v281 = vpop.f32.mrb[0].mxu0
    %282 = vdwg.mxu0
    %283 = vmatprep.subr.mxu0 0.0
    %284 = vmatpush1.msra.mxu0 %v132
    %285 = vmatprep.subr.mxu0 0.0
    %286 = vmatpush1.msra.mxu0 0.0
    %287 = vmatprep.subr.mxu0 0.0
    %288 = vmatpush1.msra.mxu0 0.0
    %289 = vmatprep.subr.mxu0 0.0
    %290 = vmatpush1.msra.mxu0 0.0
    %291 = vmatprep.subr.mxu0 0.0
    %292 = vmatpush1.msra.mxu0 0.0
    %293 = vmatprep.subr.mxu0 0.0
    %294 = vmatpush1.msra.mxu0 0.0
    %295 = vmatprep.subr.mxu0 0.0
    %296 = vmatpush1.msra.mxu0 0.0
    %297 = vmatprep.subr.mxu0 0.0
    %298 = vmatpush1.msra.mxu0 0.0
    %299 = vmatprep.subr.mxu0 0.0
    %300 = vmatpush1.msra.mxu0 0.0
    %301 = vmatprep.subr.mxu0 0.0
    %302 = vmatpush1.msra.mxu0 0.0
    %303 = vmatprep.subr.mxu0 0.0
    %304 = vmatpush1.msra.mxu0 0.0
    %305 = vmatprep.subr.mxu0 0.0
    %306 = vmatpush1.msra.mxu0 0.0
    %307 = vmatprep.subr.mxu0 0.0
    %308 = vmatpush1.msra.mxu0 0.0
    %309 = vmatprep.subr.mxu0 0.0
    %310 = vmatpush1.msra.mxu0 0.0
    %311 = vmatprep.subr.mxu0 0.0
    %312 = vmatpush1.msra.mxu0 0.0
    %313 = vmatprep.subr.mxu0 0.0
    %314 = vmatpush1.msra.mxu0 0.0
    %315 = vmatprep.subr.mxu0 0.0
    %316 = vmatpush1.msra.mxu0 0.0
    %317 = vmatprep.subr.mxu0 0.0
    %318 = vmatpush1.msra.mxu0 0.0
    %319 = vmatprep.subr.mxu0 0.0
    %320 = vmatpush1.msra.mxu0 0.0
    %321 = vmatprep.subr.mxu0 0.0
    %322 = vmatpush1.msra.mxu0 0.0
    %323 = vmatprep.subr.mxu0 0.0
    %324 = vmatpush1.msra.mxu0 0.0
    %325 = vmatprep.subr.mxu0 0.0
    %326 = vmatpush1.msra.mxu0 0.0
    %327 = vmatprep.subr.mxu0 0.0
    %328 = vmatpush1.msra.mxu0 0.0
    %329 = vmatprep.subr.mxu0 0.0
    %330 = vmatpush1.msra.mxu0 0.0
    %331 = vmatprep.subr.mxu0 0.0
    %332 = vmatpush1.msra.mxu0 0.0
    %333 = vmatprep.subr.mxu0 0.0
    %334 = vmatpush1.msra.mxu0 0.0
    %335 = vmatprep.subr.mxu0 0.0
    %336 = vmatpush1.msra.mxu0 0.0
    %337 = vmatprep.subr.mxu0 0.0
    %338 = vmatpush1.msra.mxu0 0.0
    %339 = vmatprep.subr.mxu0 0.0
    %340 = vmatpush1.msra.mxu0 0.0
    %341 = vmatprep.subr.mxu0 0.0
    %342 = vmatpush1.msra.mxu0 0.0
    %343 = vmatprep.subr.mxu0 0.0
    %344 = vmatpush1.msra.mxu0 0.0
    %345 = vmatprep.subr.mxu0 0.0
    %346 = vmatpush1.msra.mxu0 0.0
    %347 = vmatprep.mubr.f32.mxu0 0.0
    %348 = vmatmul.mubr.f32.gmra.mrb[0].mxu0 %v141
    %v349 = vpop.f32.mrb[0].mxu0
    %v350 = vadd.f32 0.0, %v349
    %v351 = vpop.f32.mrb[0].mxu0
    %352 = vdwg.mxu0
    %353 = vmatprep.subr.mxu0 0.0
    %354 = vmatpush1.msra.mxu0 %v133
    %355 = vmatprep.subr.mxu0 0.0
    %356 = vmatpush1.msra.mxu0 0.0
    %357 = vmatprep.subr.mxu0 0.0
    %358 = vmatpush1.msra.mxu0 0.0
    %359 = vmatprep.subr.mxu0 0.0
    %360 = vmatpush1.msra.mxu0 0.0
    %361 = vmatprep.subr.mxu0 0.0
    %362 = vmatpush1.msra.mxu0 0.0
    %363 = vmatprep.subr.mxu0 0.0
    %364 = vmatpush1.msra.mxu0 0.0
    %365 = vmatprep.subr.mxu0 0.0
    %366 = vmatpush1.msra.mxu0 0.0
    %367 = vmatprep.subr.mxu0 0.0
    %368 = vmatpush1.msra.mxu0 0.0
    %369 = vmatprep.subr.mxu0 0.0
    %370 = vmatpush1.msra.mxu0 0.0
    %371 = vmatprep.subr.mxu0 0.0
    %372 = vmatpush1.msra.mxu0 0.0
    %373 = vmatprep.subr.mxu0 0.0
    %374 = vmatpush1.msra.mxu0 0.0
    %375 = vmatprep.subr.mxu0 0.0
    %376 = vmatpush1.msra.mxu0 0.0
    %377 = vmatprep.subr.mxu0 0.0
    %378 = vmatpush1.msra.mxu0 0.0
    %379 = vmatprep.subr.mxu0 0.0
    %380 = vmatpush1.msra.mxu0 0.0
    %381 = vmatprep.subr.mxu0 0.0
    %382 = vmatpush1.msra.mxu0 0.0
    %383 = vmatprep.subr.mxu0 0.0
    %384 = vmatpush1.msra.mxu0 0.0
    %385 = vmatprep.subr.mxu0 0.0
    %386 = vmatpush1.msra.mxu0 0.0
    %387 = vmatprep.subr.mxu0 0.0
    %388 = vmatpush1.msra.mxu0 0.0
    %389 = vmatprep.subr.mxu0 0.0
    %390 = vmatpush1.msra.mxu0 0.0
    %391 = vmatprep.subr.mxu0 0.0
    %392 = vmatpush1.msra.mxu0 0.0
    %393 = vmatprep.subr.mxu0 0.0
    %394 = vmatpush1.msra.mxu0 0.0
    %395 = vmatprep.subr.mxu0 0.0
    %396 = vmatpush1.msra.mxu0 0.0
    %397 = vmatprep.subr.mxu0 0.0
    %398 = vmatpush1.msra.mxu0 0.0
    %399 = vmatprep.subr.mxu0 0.0
    %400 = vmatpush1.msra.mxu0 0.0
    %401 = vmatprep.subr.mxu0 0.0
    %402 = vmatpush1.msra.mxu0 0.0
    %403 = vmatprep.subr.mxu0 0.0
    %404 = vmatpush1.msra.mxu0 0.0
    %405 = vmatprep.subr.mxu0 0.0
    %406 = vmatpush1.msra.mxu0 0.0
    %407 = vmatprep.subr.mxu0 0.0
    %408 = vmatpush1.msra.mxu0 0.0
    %409 = vmatprep.subr.mxu0 0.0
    %410 = vmatpush1.msra.mxu0 0.0
    %411 = vmatprep.subr.mxu0 0.0
    %412 = vmatpush1.msra.mxu0 0.0
    %413 = vmatprep.subr.mxu0 0.0
    %414 = vmatpush1.msra.mxu0 0.0
    %415 = vmatprep.subr.mxu0 0.0
    %416 = vmatpush1.msra.mxu0 0.0
    %417 = vmatprep.mubr.f32.mxu0 0.0
    %418 = vmatmul.mubr.f32.gmra.mrb[0].mxu0 %v141
    %v419 = vpop.f32.mrb[0].mxu0
    %v420 = vadd.f32 0.0, %v419
    %v421 = vpop.f32.mrb[0].mxu0
    %422 = vdwg.mxu0
    %v423 = vld [vmem:[%s3] sm:$0xff]
    %425 = vset.pattern.permute.xlu0 0
    %426 = vperm.xlu0 %425, %v423
    %v427 = vpop.permute.xlu0 %426
    %v429 = vmul.f32 %v134, %v427
    %v430 = vmul.f32 %v135, %v427
    %v431 = vmul.f32 %v136, %v427
    %v432 = vmul.f32 %v137, %v427
    %v433 = vsub.f32 %v429, %v210
    %v434 = vsub.f32 %v430, %v280
    %v435 = vsub.f32 %v431, %v350
    %v436 = vsub.f32 %v432, %v420
    %v437 = vpack.c.bf16 %v434, %v433
    %v438 = vpack.c.bf16 %v436, %v435
    %v439 = vld [vmem:[#allocation11] sm:$0xff]
    %v440 = vld [vmem:[#allocation11 + $0x8] sm:$0xff]
    %v441 = vld [vmem:[#allocation11 + $0x10] sm:$0xff]
    %v442 = vld [vmem:[#allocation11 + $0x18] sm:$0xff]
    %v443 = vld [vmem:[#allocation11 + $0x20] sm:$0xff]
    %v444 = vld [vmem:[#allocation11 + $0x28] sm:$0xff]
    %v445 = vld [vmem:[#allocation11 + $0x30] sm:$0xff]
    %v446 = vld [vmem:[#allocation11 + $0x38] sm:$0xff]
    %v447 = vld [vmem:[#allocation11 + $0x40] sm:$0xff]
    %v448 = vld [vmem:[#allocation11 + $0x48] sm:$0xff]
    %v449 = vld [vmem:[#allocation11 + $0x50] sm:$0xff]
    %v450 = vld [vmem:[#allocation11 + $0x58] sm:$0xff]
    %v451 = vld [vmem:[#allocation11 + $0x60] sm:$0xff]
    %v452 = vld [vmem:[#allocation11 + $0x68] sm:$0xff]
    %v453 = vld [vmem:[#allocation11 + $0x70] sm:$0xff]
    %v454 = vld [vmem:[#allocation11 + $0x78] sm:$0xff]
    %v455 = vld [vmem:[%s6] sm:$0xf]
    %v457 = vlaneseq
    %v458 = vshrl.u32 %v457, 7
    %v459 = vsub.s32 0, %v458
    %v460 = vrot.slane %v455, %v459
    %v461 = vlaneseq
    %v462 = vshrl.u32 %v461, 7
    %v463 = vsub.s32 1, %v462
    %v464 = vrot.slane %v455, %v463
    %v465 = vlaneseq
    %v466 = vshrl.u32 %v465, 7
    %v467 = vsub.s32 2, %v466
    %v468 = vrot.slane %v455, %v467
    %v469 = vlaneseq
    %v470 = vshrl.u32 %v469, 7
    %v471 = vsub.s32 3, %v470
    %v472 = vrot.slane %v455, %v471
    %v493 = vunpack.c.l.b16 %v439
    %v494 = vunpack.c.h.b16 %v439
    %v495 = vunpack.c.l.b16 %v440
    %v496 = vunpack.c.h.b16 %v440
    %v497 = vunpack.c.l.b16 %v441
    %v498 = vunpack.c.h.b16 %v441
    %v499 = vunpack.c.l.b16 %v442
    %v500 = vunpack.c.h.b16 %v442
    %v501 = vunpack.c.l.b16 %v443
    %v502 = vunpack.c.h.b16 %v443
    %v503 = vunpack.c.l.b16 %v444
    %v504 = vunpack.c.h.b16 %v444
    %v505 = vunpack.c.l.b16 %v445
    %v506 = vunpack.c.h.b16 %v445
    %v507 = vunpack.c.l.b16 %v446
    %v508 = vunpack.c.h.b16 %v446
    %v509 = vunpack.c.l.b16 %v447
    %v510 = vunpack.c.h.b16 %v447
    %v511 = vunpack.c.l.b16 %v448
    %v512 = vunpack.c.h.b16 %v448
    %v513 = vunpack.c.l.b16 %v449
    %v514 = vunpack.c.h.b16 %v449
    %v515 = vunpack.c.l.b16 %v450
    %v516 = vunpack.c.h.b16 %v450
    %v517 = vunpack.c.l.b16 %v451
    %v518 = vunpack.c.h.b16 %v451
    %v519 = vunpack.c.l.b16 %v452
    %v520 = vunpack.c.h.b16 %v452
    %v521 = vunpack.c.l.b16 %v453
    %v522 = vunpack.c.h.b16 %v453
    %v523 = vunpack.c.l.b16 %v454
    %v524 = vunpack.c.h.b16 %v454
    %v525 = vpack.c.b16 %v497, %v493
    %v526 = vpack.c.b16 %v498, %v494
    %v527 = vpack.c.b16 %v499, %v495
    %v528 = vpack.c.b16 %v500, %v496
    %v529 = vpack.c.b16 %v505, %v501
    %v530 = vpack.c.b16 %v506, %v502
    %v531 = vpack.c.b16 %v507, %v503
    %v532 = vpack.c.b16 %v508, %v504
    %v533 = vpack.c.b16 %v513, %v509
    %v534 = vpack.c.b16 %v514, %v510
    %v535 = vpack.c.b16 %v515, %v511
    %v536 = vpack.c.b16 %v516, %v512
    %v537 = vpack.c.b16 %v521, %v517
    %v538 = vpack.c.b16 %v522, %v518
    %v539 = vpack.c.b16 %v523, %v519
    %v540 = vpack.c.b16 %v524, %v520
    %vm557 = vcmask 523264
    %v559 = vsel %vm557, %v437, 0
    %v562 = vsel %vm557, %v438, 0
    %564 = vmatprep.subr.bf16.mxu0 %v526
    %565 = vmatpush1.bf16.msra.mxu0 %v525
    %566 = vmatprep.subr.bf16.mxu0 %v530
    %567 = vmatpush1.bf16.msra.mxu0 %v529
    %568 = vmatprep.subr.bf16.mxu0 %v534
    %569 = vmatpush1.bf16.msra.mxu0 %v533
    %570 = vmatprep.subr.bf16.mxu0 %v538
    %571 = vmatpush1.bf16.msra.mxu0 %v537
    %572 = vmatprep.subr.bf16.mxu0 0
    %573 = vmatpush1.bf16.msra.mxu0 0
    %574 = vmatprep.subr.bf16.mxu0 0
    %575 = vmatpush1.bf16.msra.mxu0 0
    %576 = vmatprep.subr.bf16.mxu0 0
    %577 = vmatpush1.bf16.msra.mxu0 0
    %578 = vmatprep.subr.bf16.mxu0 0
    %579 = vmatpush1.bf16.msra.mxu0 0
    %580 = vmatprep.subr.bf16.mxu0 0
    %581 = vmatpush1.bf16.msra.mxu0 0
    %582 = vmatprep.subr.bf16.mxu0 0
    %583 = vmatpush1.bf16.msra.mxu0 0
    %584 = vmatprep.subr.bf16.mxu0 0
    %585 = vmatpush1.bf16.msra.mxu0 0
    %586 = vmatprep.subr.bf16.mxu0 0
    %587 = vmatpush1.bf16.msra.mxu0 0
    %588 = vmatprep.subr.bf16.mxu0 0
    %589 = vmatpush1.bf16.msra.mxu0 0
    %590 = vmatprep.subr.bf16.mxu0 0
    %591 = vmatpush1.bf16.msra.mxu0 0
    %592 = vmatprep.subr.bf16.mxu0 0
    %593 = vmatpush1.bf16.msra.mxu0 0
    %594 = vmatprep.subr.bf16.mxu0 0
    %595 = vmatpush1.bf16.msra.mxu0 0
    %596 = vmatprep.mubr.bf16.mxu0 0
    %597 = vmatmul.mubr.bf16.gmra.mrb[0].mxu0 %v559
    %v598 = vpop.f32.mrb[0].mxu0
    %v599 = vadd.f32 %v460, %v598
    %v600 = vpop.f32.mrb[0].mxu0
    %v601 = vadd.f32 %v464, %v600
    %v602 = vpop.f32.mrb[0].mxu0
    %v603 = vadd.f32 %v460, %v602
    %v604 = vpop.f32.mrb[0].mxu0
    %v605 = vadd.f32 %v464, %v604
    %606 = vmatprep.mubr.bf16.mxu0 0
    %607 = vmatmul.mubr.bf16.gmra.mrb[0].mxu0 %v562
    %v608 = vpop.f32.mrb[0].mxu0
    %v609 = vadd.f32 %v460, %v608
    %v610 = vpop.f32.mrb[0].mxu0
    %v611 = vadd.f32 %v464, %v610
    %v612 = vpop.f32.mrb[0].mxu0
    %v613 = vadd.f32 %v460, %v612
    %v614 = vpop.f32.mrb[0].mxu0
    %v615 = vadd.f32 %v464, %v614
    %616 = vdwg.mxu0
    %617 = vmatprep.subr.bf16.mxu0 %v528
    %618 = vmatpush1.bf16.msra.mxu0 %v527
    %619 = vmatprep.subr.bf16.mxu0 %v532
    %620 = vmatpush1.bf16.msra.mxu0 %v531
    %621 = vmatprep.subr.bf16.mxu0 %v536
    %622 = vmatpush1.bf16.msra.mxu0 %v535
    %623 = vmatprep.subr.bf16.mxu0 %v540
    %624 = vmatpush1.bf16.msra.mxu0 %v539
    %625 = vmatprep.subr.bf16.mxu0 0
    %626 = vmatpush1.bf16.msra.mxu0 0
    %627 = vmatprep.subr.bf16.mxu0 0
    %628 = vmatpush1.bf16.msra.mxu0 0
    %629 = vmatprep.subr.bf16.mxu0 0
    %630 = vmatpush1.bf16.msra.mxu0 0
    %631 = vmatprep.subr.bf16.mxu0 0
    %632 = vmatpush1.bf16.msra.mxu0 0
    %633 = vmatprep.subr.bf16.mxu0 0
    %634 = vmatpush1.bf16.msra.mxu0 0
    %635 = vmatprep.subr.bf16.mxu0 0
    %636 = vmatpush1.bf16.msra.mxu0 0
    %637 = vmatprep.subr.bf16.mxu0 0
    %638 = vmatpush1.bf16.msra.mxu0 0
    %639 = vmatprep.subr.bf16.mxu0 0
    %640 = vmatpush1.bf16.msra.mxu0 0
    %641 = vmatprep.subr.bf16.mxu0 0
    %642 = vmatpush1.bf16.msra.mxu0 0
    %643 = vmatprep.subr.bf16.mxu0 0
    %644 = vmatpush1.bf16.msra.mxu0 0
    %645 = vmatprep.subr.bf16.mxu0 0
    %646 = vmatpush1.bf16.msra.mxu0 0
    %647 = vmatprep.subr.bf16.mxu0 0
    %648 = vmatpush1.bf16.msra.mxu0 0
    %649 = vmatprep.mubr.bf16.mxu0 0
    %650 = vmatmul.mubr.bf16.gmra.mrb[0].mxu0 %v559
    %v651 = vpop.f32.mrb[0].mxu0
    %v652 = vadd.f32 %v468, %v651
    %v653 = vpop.f32.mrb[0].mxu0
    %v654 = vadd.f32 %v472, %v653
    %v655 = vpop.f32.mrb[0].mxu0
    %v656 = vadd.f32 %v468, %v655
    %v657 = vpop.f32.mrb[0].mxu0
    %v658 = vadd.f32 %v472, %v657
    %659 = vmatprep.mubr.bf16.mxu0 0
    %660 = vmatmul.mubr.bf16.gmra.mrb[0].mxu0 %v562
    %v661 = vpop.f32.mrb[0].mxu0
    %v662 = vadd.f32 %v468, %v661
    %v663 = vpop.f32.mrb[0].mxu0
    %v664 = vadd.f32 %v472, %v663
    %v665 = vpop.f32.mrb[0].mxu0
    %v666 = vadd.f32 %v468, %v665
    %v667 = vpop.f32.mrb[0].mxu0
    %v668 = vadd.f32 %v472, %v667
    %669 = vdwg.mxu0
    %v670 = vld [vmem:[#allocation12] sm:$0xff]
    %v671 = vld [vmem:[#allocation12 + $0x8] sm:$0xff]
    %v672 = vld [vmem:[#allocation12 + $0x10] sm:$0xff]
    %v673 = vld [vmem:[#allocation12 + $0x18] sm:$0xff]
    %v674 = vld [vmem:[#allocation12 + $0x20] sm:$0xff]
    %v675 = vld [vmem:[#allocation12 + $0x28] sm:$0xff]
    %v676 = vld [vmem:[#allocation12 + $0x30] sm:$0xff]
    %v677 = vld [vmem:[#allocation12 + $0x38] sm:$0xff]
    %v678 = vld [vmem:[#allocation12 + $0x40] sm:$0xff]
    %v679 = vld [vmem:[#allocation12 + $0x48] sm:$0xff]
    %v680 = vld [vmem:[#allocation12 + $0x50] sm:$0xff]
    %v681 = vld [vmem:[#allocation12 + $0x58] sm:$0xff]
    %v682 = vld [vmem:[#allocation12 + $0x60] sm:$0xff]
    %v683 = vld [vmem:[#allocation12 + $0x68] sm:$0xff]
    %v684 = vld [vmem:[#allocation12 + $0x70] sm:$0xff]
    %v685 = vld [vmem:[#allocation12 + $0x78] sm:$0xff]
    %v686 = vld [vmem:[#allocation12 + $0x80] sm:$0xff]
    %v687 = vld [vmem:[#allocation12 + $0x88] sm:$0xff]
    %v688 = vld [vmem:[#allocation12 + $0x90] sm:$0xff]
    %v689 = vld [vmem:[#allocation12 + $0x98] sm:$0xff]
    %v690 = vld [vmem:[#allocation12 + $0xa0] sm:$0xff]
    %v691 = vld [vmem:[#allocation12 + $0xa8] sm:$0xff]
    %v692 = vld [vmem:[#allocation12 + $0xb0] sm:$0xff]
    %v693 = vld [vmem:[#allocation12 + $0xb8] sm:$0xff]
    %v694 = vld [vmem:[#allocation12 + $0xc0] sm:$0xff]
    %v695 = vld [vmem:[#allocation12 + $0xc8] sm:$0xff]
    %v696 = vld [vmem:[#allocation12 + $0xd0] sm:$0xff]
    %v697 = vld [vmem:[#allocation12 + $0xd8] sm:$0xff]
    %v698 = vld [vmem:[#allocation12 + $0xe0] sm:$0xff]
    %v699 = vld [vmem:[#allocation12 + $0xe8] sm:$0xff]
    %v700 = vld [vmem:[#allocation12 + $0xf0] sm:$0xff]
    %v701 = vld [vmem:[#allocation12 + $0xf8] sm:$0xff]
    %v702 = vld [vmem:[#allocation14] sm:$0xff]
    %v703 = vld [vmem:[#allocation14 + $0x8] sm:$0xff]
    %v704 = vld [vmem:[#allocation14 + $0x10] sm:$0xff]
    %v705 = vld [vmem:[#allocation14 + $0x18] sm:$0xff]
    %v706 = vld [vmem:[#allocation14 + $0x20] sm:$0xff]
    %v707 = vld [vmem:[#allocation14 + $0x28] sm:$0xff]
    %v708 = vld [vmem:[#allocation14 + $0x30] sm:$0xff]
    %v709 = vld [vmem:[#allocation14 + $0x38] sm:$0xff]
    %v710 = vld [vmem:[#allocation14 + $0x40] sm:$0xff]
    %v711 = vld [vmem:[#allocation14 + $0x48] sm:$0xff]
    %v712 = vld [vmem:[#allocation14 + $0x50] sm:$0xff]
    %v713 = vld [vmem:[#allocation14 + $0x58] sm:$0xff]
    %v714 = vld [vmem:[#allocation14 + $0x60] sm:$0xff]
    %v715 = vld [vmem:[#allocation14 + $0x68] sm:$0xff]
    %v716 = vld [vmem:[#allocation14 + $0x70] sm:$0xff]
    %v717 = vld [vmem:[#allocation14 + $0x78] sm:$0xff]
    %v718 = vld [vmem:[#allocation14 + $0x80] sm:$0xff]
    %v719 = vld [vmem:[#allocation14 + $0x88] sm:$0xff]
    %v720 = vld [vmem:[#allocation14 + $0x90] sm:$0xff]
    %v721 = vld [vmem:[#allocation14 + $0x98] sm:$0xff]
    %v722 = vld [vmem:[#allocation14 + $0xa0] sm:$0xff]
    %v723 = vld [vmem:[#allocation14 + $0xa8] sm:$0xff]
    %v724 = vld [vmem:[#allocation14 + $0xb0] sm:$0xff]
    %v725 = vld [vmem:[#allocation14 + $0xb8] sm:$0xff]
    %v726 = vld [vmem:[#allocation14 + $0xc0] sm:$0xff]
    %v727 = vld [vmem:[#allocation14 + $0xc8] sm:$0xff]
    %v728 = vld [vmem:[#allocation14 + $0xd0] sm:$0xff]
    %v729 = vld [vmem:[#allocation14 + $0xd8] sm:$0xff]
    %v730 = vld [vmem:[#allocation14 + $0xe0] sm:$0xff]
    %v731 = vld [vmem:[#allocation14 + $0xe8] sm:$0xff]
    %v732 = vld [vmem:[#allocation14 + $0xf0] sm:$0xff]
    %v733 = vld [vmem:[#allocation14 + $0xf8] sm:$0xff]
    %v734 = vld [vmem:[#allocation14 + $0x100] sm:$0xff]
    %v735 = vld [vmem:[#allocation14 + $0x108] sm:$0xff]
    %v736 = vld [vmem:[#allocation14 + $0x110] sm:$0xff]
    %v737 = vld [vmem:[#allocation14 + $0x118] sm:$0xff]
    %v738 = vld [vmem:[#allocation14 + $0x120] sm:$0xff]
    %v739 = vld [vmem:[#allocation14 + $0x128] sm:$0xff]
    %v740 = vld [vmem:[#allocation14 + $0x130] sm:$0xff]
    %v741 = vld [vmem:[#allocation14 + $0x138] sm:$0xff]
    %v742 = vld [vmem:[#allocation14 + $0x140] sm:$0xff]
    %v743 = vld [vmem:[#allocation14 + $0x148] sm:$0xff]
    %v744 = vld [vmem:[#allocation14 + $0x150] sm:$0xff]
    %v745 = vld [vmem:[#allocation14 + $0x158] sm:$0xff]
    %v746 = vld [vmem:[#allocation14 + $0x160] sm:$0xff]
    %v747 = vld [vmem:[#allocation14 + $0x168] sm:$0xff]
    %v748 = vld [vmem:[#allocation14 + $0x170] sm:$0xff]
    %v749 = vld [vmem:[#allocation14 + $0x178] sm:$0xff]
    %v750 = vld [vmem:[#allocation14 + $0x180] sm:$0xff]
    %v751 = vld [vmem:[#allocation14 + $0x188] sm:$0xff]
    %v752 = vld [vmem:[#allocation14 + $0x190] sm:$0xff]
    %v753 = vld [vmem:[#allocation14 + $0x198] sm:$0xff]
    %v754 = vld [vmem:[#allocation14 + $0x1a0] sm:$0xff]
    %v755 = vld [vmem:[#allocation14 + $0x1a8] sm:$0xff]
    %v756 = vld [vmem:[#allocation14 + $0x1b0] sm:$0xff]
    %v757 = vld [vmem:[#allocation14 + $0x1b8] sm:$0xff]
    %v758 = vld [vmem:[#allocation14 + $0x1c0] sm:$0xff]
    %v759 = vld [vmem:[#allocation14 + $0x1c8] sm:$0xff]
    %v760 = vld [vmem:[#allocation14 + $0x1d0] sm:$0xff]
    %v761 = vld [vmem:[#allocation14 + $0x1d8] sm:$0xff]
    %v762 = vld [vmem:[#allocation14 + $0x1e0] sm:$0xff]
    %v763 = vld [vmem:[#allocation14 + $0x1e8] sm:$0xff]
    %v764 = vld [vmem:[#allocation14 + $0x1f0] sm:$0xff]
    %v765 = vld [vmem:[#allocation14 + $0x1f8] sm:$0xff]
    %v766 = vld [vmem:[%s8] sm:$0xf]
    %v767 = vld [vmem:[#allocation2] sm:$0xf]
    %v768 = vld [vmem:[#allocation3] sm:$0xf]
    %v769 = vld [vmem:[#allocation4] sm:$0xf]
    %v770 = vld [vmem:[#allocation5] sm:$0xf]
    %v771 = vpack.c.bf16 %v767, %v767
    %v804 = vunpack.c.l.b16 %v670
    %v805 = vunpack.c.h.b16 %v670
    %v806 = vunpack.c.l.b16 %v671
    %v807 = vunpack.c.h.b16 %v671
    %v808 = vunpack.c.l.b16 %v672
    %v809 = vunpack.c.h.b16 %v672
    %v810 = vunpack.c.l.b16 %v673
    %v811 = vunpack.c.h.b16 %v673
    %v812 = vunpack.c.l.b16 %v674
    %v813 = vunpack.c.h.b16 %v674
    %v814 = vunpack.c.l.b16 %v675
    %v815 = vunpack.c.h.b16 %v675
    %v816 = vunpack.c.l.b16 %v676
    %v817 = vunpack.c.h.b16 %v676
    %v818 = vunpack.c.l.b16 %v677
    %v819 = vunpack.c.h.b16 %v677
    %v820 = vunpack.c.l.b16 %v678
    %v821 = vunpack.c.h.b16 %v678
    %v822 = vunpack.c.l.b16 %v679
    %v823 = vunpack.c.h.b16 %v679
    %v824 = vunpack.c.l.b16 %v680
    %v825 = vunpack.c.h.b16 %v680
    %v826 = vunpack.c.l.b16 %v681
    %v827 = vunpack.c.h.b16 %v681
    %v828 = vunpack.c.l.b16 %v682
    %v829 = vunpack.c.h.b16 %v682
    %v830 = vunpack.c.l.b16 %v683
    %v831 = vunpack.c.h.b16 %v683
    %v832 = vunpack.c.l.b16 %v684
    %v833 = vunpack.c.h.b16 %v684
    %v834 = vunpack.c.l.b16 %v685
    %v835 = vunpack.c.h.b16 %v685
    %v836 = vunpack.c.l.b16 %v686
    %v837 = vunpack.c.h.b16 %v686
    %v838 = vunpack.c.l.b16 %v687
    %v839 = vunpack.c.h.b16 %v687
    %v840 = vunpack.c.l.b16 %v688
    %v841 = vunpack.c.h.b16 %v688
    %v842 = vunpack.c.l.b16 %v689
    %v843 = vunpack.c.h.b16 %v689
    %v844 = vunpack.c.l.b16 %v690
    %v845 = vunpack.c.h.b16 %v690
    %v846 = vunpack.c.l.b16 %v691
    %v847 = vunpack.c.h.b16 %v691
    %v848 = vunpack.c.l.b16 %v692
    %v849 = vunpack.c.h.b16 %v692
    %v850 = vunpack.c.l.b16 %v693
    %v851 = vunpack.c.h.b16 %v693
    %v852 = vunpack.c.l.b16 %v694
    %v853 = vunpack.c.h.b16 %v694
    %v854 = vunpack.c.l.b16 %v695
    %v855 = vunpack.c.h.b16 %v695
    %v856 = vunpack.c.l.b16 %v696
    %v857 = vunpack.c.h.b16 %v696
    %v858 = vunpack.c.l.b16 %v697
    %v859 = vunpack.c.h.b16 %v697
    %v860 = vunpack.c.l.b16 %v698
    %v861 = vunpack.c.h.b16 %v698
    %v862 = vunpack.c.l.b16 %v699
    %v863 = vunpack.c.h.b16 %v699
    %v864 = vunpack.c.l.b16 %v700
    %v865 = vunpack.c.h.b16 %v700
    %v866 = vunpack.c.l.b16 %v701
    %v867 = vunpack.c.h.b16 %v701
    %v868 = vpack.c.b16 %v808, %v804
    %v869 = vpack.c.b16 %v809, %v805
    %v870 = vpack.c.b16 %v810, %v806
    %v871 = vpack.c.b16 %v811, %v807
    %v872 = vpack.c.b16 %v816, %v812
    %v873 = vpack.c.b16 %v817, %v813
    %v874 = vpack.c.b16 %v818, %v814
    %v875 = vpack.c.b16 %v819, %v815
    %v876 = vpack.c.b16 %v824, %v820
    %v877 = vpack.c.b16 %v825, %v821
    %v878 = vpack.c.b16 %v826, %v822
    %v879 = vpack.c.b16 %v827, %v823
    %v880 = vpack.c.b16 %v832, %v828
    %v881 = vpack.c.b16 %v833, %v829
    %v882 = vpack.c.b16 %v834, %v830
    %v883 = vpack.c.b16 %v835, %v831
    %v884 = vpack.c.b16 %v840, %v836
    %v885 = vpack.c.b16 %v841, %v837
    %v886 = vpack.c.b16 %v842, %v838
    %v887 = vpack.c.b16 %v843, %v839
    %v888 = vpack.c.b16 %v848, %v844
    %v889 = vpack.c.b16 %v849, %v845
    %v890 = vpack.c.b16 %v850, %v846
    %v891 = vpack.c.b16 %v851, %v847
    %v892 = vpack.c.b16 %v856, %v852
    %v893 = vpack.c.b16 %v857, %v853
    %v894 = vpack.c.b16 %v858, %v854
    %v895 = vpack.c.b16 %v859, %v855
    %v896 = vpack.c.b16 %v864, %v860
    %v897 = vpack.c.b16 %v865, %v861
    %v898 = vpack.c.b16 %v866, %v862
    %v899 = vpack.c.b16 %v867, %v863
    %932 = vmatprep.subr.bf16.mxu0 %v869
    %933 = vmatpush1.bf16.msra.mxu0 %v868
    %934 = vmatprep.subr.bf16.mxu0 %v873
    %935 = vmatpush1.bf16.msra.mxu0 %v872
    %936 = vmatprep.subr.bf16.mxu0 %v877
    %937 = vmatpush1.bf16.msra.mxu0 %v876
    %938 = vmatprep.subr.bf16.mxu0 %v881
    %939 = vmatpush1.bf16.msra.mxu0 %v880
    %940 = vmatprep.subr.bf16.mxu0 %v885
    %941 = vmatpush1.bf16.msra.mxu0 %v884
    %942 = vmatprep.subr.bf16.mxu0 %v889
    %943 = vmatpush1.bf16.msra.mxu0 %v888
    %944 = vmatprep.subr.bf16.mxu0 %v893
    %945 = vmatpush1.bf16.msra.mxu0 %v892
    %946 = vmatprep.subr.bf16.mxu0 %v897
    %947 = vmatpush1.bf16.msra.mxu0 %v896
    %948 = vmatprep.subr.bf16.mxu0 0
    %949 = vmatpush1.bf16.msra.mxu0 0
    %950 = vmatprep.subr.bf16.mxu0 0
    %951 = vmatpush1.bf16.msra.mxu0 0
    %952 = vmatprep.subr.bf16.mxu0 0
    %953 = vmatpush1.bf16.msra.mxu0 0
    %954 = vmatprep.subr.bf16.mxu0 0
    %955 = vmatpush1.bf16.msra.mxu0 0
    %956 = vmatprep.subr.bf16.mxu0 0
    %957 = vmatpush1.bf16.msra.mxu0 0
    %958 = vmatprep.subr.bf16.mxu0 0
    %959 = vmatpush1.bf16.msra.mxu0 0
    %960 = vmatprep.subr.bf16.mxu0 0
    %961 = vmatpush1.bf16.msra.mxu0 0
    %962 = vmatprep.subr.bf16.mxu0 0
    %963 = vmatpush1.bf16.msra.mxu0 0
    %964 = vmatprep.mubr.bf16.mxu0 0
    %965 = vmatmul.mubr.bf16.gmra.mrb[0].mxu0 %v771
    %v966 = vpop.f32.mrb[0].mxu0
    %v967 = vadd.f32 0.0, %v966
    %v968 = vpop.f32.mrb[0].mxu0
    %v969 = vadd.f32 0.0, %v968
    %v970 = vpop.f32.mrb[0].mxu0
    %v971 = vpop.f32.mrb[0].mxu0
    %972 = vdwg.mxu0
    %973 = vmatprep.subr.bf16.mxu0 %v871
    %974 = vmatpush1.bf16.msra.mxu0 %v870
    %975 = vmatprep.subr.bf16.mxu0 %v875
    %976 = vmatpush1.bf16.msra.mxu0 %v874
    %977 = vmatprep.subr.bf16.mxu0 %v879
    %978 = vmatpush1.bf16.msra.mxu0 %v878
    %979 = vmatprep.subr.bf16.mxu0 %v883
    %980 = vmatpush1.bf16.msra.mxu0 %v882
    %981 = vmatprep.subr.bf16.mxu0 %v887
    %982 = vmatpush1.bf16.msra.mxu0 %v886
    %983 = vmatprep.subr.bf16.mxu0 %v891
    %984 = vmatpush1.bf16.msra.mxu0 %v890
    %985 = vmatprep.subr.bf16.mxu0 %v895
    %986 = vmatpush1.bf16.msra.mxu0 %v894
    %987 = vmatprep.subr.bf16.mxu0 %v899
    %988 = vmatpush1.bf16.msra.mxu0 %v898
    %989 = vmatprep.subr.bf16.mxu0 0
    %990 = vmatpush1.bf16.msra.mxu0 0
    %991 = vmatprep.subr.bf16.mxu0 0
    %992 = vmatpush1.bf16.msra.mxu0 0
    %993 = vmatprep.subr.bf16.mxu0 0
    %994 = vmatpush1.bf16.msra.mxu0 0
    %995 = vmatprep.subr.bf16.mxu0 0
    %996 = vmatpush1.bf16.msra.mxu0 0
    %997 = vmatprep.subr.bf16.mxu0 0
    %998 = vmatpush1.bf16.msra.mxu0 0
    %999 = vmatprep.subr.bf16.mxu0 0
    %1000 = vmatpush1.bf16.msra.mxu0 0
    %1001 = vmatprep.subr.bf16.mxu0 0
    %1002 = vmatpush1.bf16.msra.mxu0 0
    %1003 = vmatprep.subr.bf16.mxu0 0
    %1004 = vmatpush1.bf16.msra.mxu0 0
    %1005 = vmatprep.mubr.bf16.mxu0 0
    %1006 = vmatmul.mubr.bf16.gmra.mrb[0].mxu0 %v771
    %v1007 = vpop.f32.mrb[0].mxu0
    %v1008 = vadd.f32 0.0, %v1007
    %v1009 = vpop.f32.mrb[0].mxu0
    %v1010 = vadd.f32 0.0, %v1009
    %v1011 = vpop.f32.mrb[0].mxu0
    %v1012 = vpop.f32.mrb[0].mxu0
    %1013 = vdwg.mxu0
    %v1018 = vrot.slane %v967, 1
    %v1019 = vrot.slane %v969, 1
    %v1020 = vrot.slane %v1008, 1
    %v1021 = vrot.slane %v1010, 1
    %v1022 = vrot.slane %v967, 2
    %v1023 = vrot.slane %v969, 2
    %v1024 = vrot.slane %v1008, 2
    %v1025 = vrot.slane %v1010, 2
    %v1026 = vrot.slane %v967, 3
    %v1027 = vrot.slane %v969, 3
    %v1028 = vrot.slane %v1008, 3
    %v1029 = vrot.slane %v1010, 3
    %v1046 = vadd.f32 %v599, %v967
    %v1047 = vadd.f32 %v601, %v969
    %v1048 = vadd.f32 %v652, %v1008
    %v1049 = vadd.f32 %v654, %v1010
    %v1050 = vadd.f32 %v603, %v1018
    %v1051 = vadd.f32 %v605, %v1019
    %v1052 = vadd.f32 %v656, %v1020
    %v1053 = vadd.f32 %v658, %v1021
    %v1054 = vadd.f32 %v609, %v1022
    %v1055 = vadd.f32 %v611, %v1023
    %v1056 = vadd.f32 %v662, %v1024
    %v1057 = vadd.f32 %v664, %v1025
    %v1058 = vadd.f32 %v613, %v1026
    %v1059 = vadd.f32 %v615, %v1027
    %v1060 = vadd.f32 %v666, %v1028
    %v1061 = vadd.f32 %v668, %v1029
    %v1062 = vxor.u32 %v1046, 2147483648
    %v1063 = vxor.u32 %v1050, 2147483648
    %v1064 = vxor.u32 %v1054, 2147483648
    %v1065 = vxor.u32 %v1058, 2147483648
    %v1066 = vmul.f32 %v1062, 1.442695
    %v1067 = vpow.pop %v1066
    %v1068 = vmul.f32 %v1063, 1.442695
    %v1069 = vpow.pop %v1068
    %v1070 = vmul.f32 %v1064, 1.442695
    %v1071 = vpow.pop %v1070
    %v1072 = vmul.f32 %v1065, 1.442695
    %v1073 = vpow.pop %v1072
    %v1074 = vadd.f32 %v1067, 1.0
    %v1075 = vadd.f32 %v1069, 1.0
    %v1076 = vadd.f32 %v1071, 1.0
    %v1077 = vadd.f32 %v1073, 1.0
    %v1078 = vrcp.pop %v1074
    %v1079 = vmul.f32 1.0, %v1078
    %v1080 = vrcp.pop %v1075
    %v1081 = vmul.f32 1.0, %v1080
    %v1082 = vrcp.pop %v1076
    %v1083 = vmul.f32 1.0, %v1082
    %v1084 = vrcp.pop %v1077
    %v1085 = vmul.f32 1.0, %v1084
    %v1086 = vxor.u32 %v1047, 2147483648
    %v1087 = vxor.u32 %v1051, 2147483648
    %v1088 = vxor.u32 %v1055, 2147483648
    %v1089 = vxor.u32 %v1059, 2147483648
    %v1090 = vmul.f32 %v1086, 1.442695
    %v1091 = vpow.pop %v1090
    %v1092 = vmul.f32 %v1087, 1.442695
    %v1093 = vpow.pop %v1092
    %v1094 = vmul.f32 %v1088, 1.442695
    %v1095 = vpow.pop %v1094
    %v1096 = vmul.f32 %v1089, 1.442695
    %v1097 = vpow.pop %v1096
    %v1098 = vadd.f32 %v1091, 1.0
    %v1099 = vadd.f32 %v1093, 1.0
    %v1100 = vadd.f32 %v1095, 1.0
    %v1101 = vadd.f32 %v1097, 1.0
    %v1102 = vrcp.pop %v1098
    %v1103 = vmul.f32 1.0, %v1102
    %v1104 = vrcp.pop %v1099
    %v1105 = vmul.f32 1.0, %v1104
    %v1106 = vrcp.pop %v1100
    %v1107 = vmul.f32 1.0, %v1106
    %v1108 = vrcp.pop %v1101
    %v1109 = vmul.f32 1.0, %v1108
    %v1110 = vtanh.pop %v1048
    %v1111 = vtanh.pop %v1052
    %v1112 = vtanh.pop %v1056
    %v1113 = vtanh.pop %v1060
    %v1114 = vxor.u32 %v1049, 2147483648
    %v1115 = vxor.u32 %v1053, 2147483648
    %v1116 = vxor.u32 %v1057, 2147483648
    %v1117 = vxor.u32 %v1061, 2147483648
    %v1118 = vmul.f32 %v1114, 1.442695
    %v1119 = vpow.pop %v1118
    %v1120 = vmul.f32 %v1115, 1.442695
    %v1121 = vpow.pop %v1120
    %v1122 = vmul.f32 %v1116, 1.442695
    %v1123 = vpow.pop %v1122
    %v1124 = vmul.f32 %v1117, 1.442695
    %v1125 = vpow.pop %v1124
    %v1126 = vadd.f32 %v1119, 1.0
    %v1127 = vadd.f32 %v1121, 1.0
    %v1128 = vadd.f32 %v1123, 1.0
    %v1129 = vadd.f32 %v1125, 1.0
    %v1130 = vrcp.pop %v1126
    %v1131 = vmul.f32 1.0, %v1130
    %v1132 = vrcp.pop %v1127
    %v1133 = vmul.f32 1.0, %v1132
    %v1134 = vrcp.pop %v1128
    %v1135 = vmul.f32 1.0, %v1134
    %v1136 = vrcp.pop %v1129
    %v1137 = vmul.f32 1.0, %v1136
    %v1139 = vrot.slane %v768, 1
    %v1140 = vrot.slane %v768, 2
    %v1141 = vrot.slane %v768, 3
    %v1146 = vmul.f32 %v1103, %v768
    %v1147 = vmul.f32 %v1105, %v1139
    %v1148 = vmul.f32 %v1107, %v1140
    %v1149 = vmul.f32 %v1109, %v1141
    %v1150 = vmul.f32 %v1079, %v1110
    %v1151 = vmul.f32 %v1081, %v1111
    %v1152 = vmul.f32 %v1083, %v1112
    %v1153 = vmul.f32 %v1085, %v1113
    %v1154 = vadd.f32 %v1146, %v1150
    %v1155 = vadd.f32 %v1147, %v1151
    %v1156 = vadd.f32 %v1148, %v1152
    %v1157 = vadd.f32 %v1149, %v1153
    %v1158 = vtanh.pop %v1154
    %v1159 = vtanh.pop %v1155
    %v1160 = vtanh.pop %v1156
    %v1161 = vtanh.pop %v1157
    %v1162 = vmul.f32 %v1131, %v1158
    %v1163 = vmul.f32 %v1133, %v1159
    %v1164 = vmul.f32 %v1135, %v1160
    %v1165 = vmul.f32 %v1137, %v1161
    %v1170 = vrot.slane %v1163, 7
    %vm1171 = vcmask 1041409
    %v1172 = vsel %vm1171, %v1170, %v1162
    %v1173 = vrot.slane %v1164, 6
    %vm1174 = vcmask 1042434
    %v1175 = vsel %vm1174, %v1173, %v1172
    %v1176 = vrot.slane %v1165, 5
    %vm1177 = vcmask 1043459
    %v1178 = vsel %vm1177, %v1176, %v1175
    %v1180 = vpack.c.bf16 %v1178, %v1178
    %v1181 = vpack.c.bf16 %v769, %v769
    %v1183 = vlaneseq
    %v1184 = vshrl.u32 %v1183, 7
    %v1185 = vsub.s32 0, %v1184
    %v1186 = vrot.slane %v766, %v1185
    %v1187 = vlaneseq
    %v1188 = vshrl.u32 %v1187, 7
    %v1189 = vsub.s32 1, %v1188
    %v1190 = vrot.slane %v766, %v1189
    %v1191 = vlaneseq
    %v1192 = vshrl.u32 %v1191, 7
    %v1193 = vsub.s32 2, %v1192
    %v1194 = vrot.slane %v766, %v1193
    %v1195 = vlaneseq
    %v1196 = vshrl.u32 %v1195, 7
    %v1197 = vsub.s32 3, %v1196
    %v1198 = vrot.slane %v766, %v1197
    %v1267 = vunpack.c.l.b16 %v702
    %v1268 = vunpack.c.h.b16 %v702
    %v1269 = vunpack.c.l.b16 %v703
    %v1270 = vunpack.c.h.b16 %v703
    %v1271 = vunpack.c.l.b16 %v704
    %v1272 = vunpack.c.h.b16 %v704
    %v1273 = vunpack.c.l.b16 %v705
    %v1274 = vunpack.c.h.b16 %v705
    %v1275 = vunpack.c.l.b16 %v706
    %v1276 = vunpack.c.h.b16 %v706
    %v1277 = vunpack.c.l.b16 %v707
    %v1278 = vunpack.c.h.b16 %v707
    %v1279 = vunpack.c.l.b16 %v708
    %v1280 = vunpack.c.h.b16 %v708
    %v1281 = vunpack.c.l.b16 %v709
    %v1282 = vunpack.c.h.b16 %v709
    %v1283 = vunpack.c.l.b16 %v710
    %v1284 = vunpack.c.h.b16 %v710
    %v1285 = vunpack.c.l.b16 %v711
    %v1286 = vunpack.c.h.b16 %v711
    %v1287 = vunpack.c.l.b16 %v712
    %v1288 = vunpack.c.h.b16 %v712
    %v1289 = vunpack.c.l.b16 %v713
    %v1290 = vunpack.c.h.b16 %v713
    %v1291 = vunpack.c.l.b16 %v714
    %v1292 = vunpack.c.h.b16 %v714
    %v1293 = vunpack.c.l.b16 %v715
    %v1294 = vunpack.c.h.b16 %v715
    %v1295 = vunpack.c.l.b16 %v716
    %v1296 = vunpack.c.h.b16 %v716
    %v1297 = vunpack.c.l.b16 %v717
    %v1298 = vunpack.c.h.b16 %v717
    %v1299 = vunpack.c.l.b16 %v718
    %v1300 = vunpack.c.h.b16 %v718
    %v1301 = vunpack.c.l.b16 %v719
    %v1302 = vunpack.c.h.b16 %v719
    %v1303 = vunpack.c.l.b16 %v720
    %v1304 = vunpack.c.h.b16 %v720
    %v1305 = vunpack.c.l.b16 %v721
    %v1306 = vunpack.c.h.b16 %v721
    %v1307 = vunpack.c.l.b16 %v722
    %v1308 = vunpack.c.h.b16 %v722
    %v1309 = vunpack.c.l.b16 %v723
    %v1310 = vunpack.c.h.b16 %v723
    %v1311 = vunpack.c.l.b16 %v724
    %v1312 = vunpack.c.h.b16 %v724
    %v1313 = vunpack.c.l.b16 %v725
    %v1314 = vunpack.c.h.b16 %v725
    %v1315 = vunpack.c.l.b16 %v726
    %v1316 = vunpack.c.h.b16 %v726
    %v1317 = vunpack.c.l.b16 %v727
    %v1318 = vunpack.c.h.b16 %v727
    %v1319 = vunpack.c.l.b16 %v728
    %v1320 = vunpack.c.h.b16 %v728
    %v1321 = vunpack.c.l.b16 %v729
    %v1322 = vunpack.c.h.b16 %v729
    %v1323 = vunpack.c.l.b16 %v730
    %v1324 = vunpack.c.h.b16 %v730
    %v1325 = vunpack.c.l.b16 %v731
    %v1326 = vunpack.c.h.b16 %v731
    %v1327 = vunpack.c.l.b16 %v732
    %v1328 = vunpack.c.h.b16 %v732
    %v1329 = vunpack.c.l.b16 %v733
    %v1330 = vunpack.c.h.b16 %v733
    %v1331 = vunpack.c.l.b16 %v734
    %v1332 = vunpack.c.h.b16 %v734
    %v1333 = vunpack.c.l.b16 %v735
    %v1334 = vunpack.c.h.b16 %v735
    %v1335 = vunpack.c.l.b16 %v736
    %v1336 = vunpack.c.h.b16 %v736
    %v1337 = vunpack.c.l.b16 %v737
    %v1338 = vunpack.c.h.b16 %v737
    %v1339 = vunpack.c.l.b16 %v738
    %v1340 = vunpack.c.h.b16 %v738
    %v1341 = vunpack.c.l.b16 %v739
    %v1342 = vunpack.c.h.b16 %v739
    %v1343 = vunpack.c.l.b16 %v740
    %v1344 = vunpack.c.h.b16 %v740
    %v1345 = vunpack.c.l.b16 %v741
    %v1346 = vunpack.c.h.b16 %v741
    %v1347 = vunpack.c.l.b16 %v742
    %v1348 = vunpack.c.h.b16 %v742
    %v1349 = vunpack.c.l.b16 %v743
    %v1350 = vunpack.c.h.b16 %v743
    %v1351 = vunpack.c.l.b16 %v744
    %v1352 = vunpack.c.h.b16 %v744
    %v1353 = vunpack.c.l.b16 %v745
    %v1354 = vunpack.c.h.b16 %v745
    %v1355 = vunpack.c.l.b16 %v746
    %v1356 = vunpack.c.h.b16 %v746
    %v1357 = vunpack.c.l.b16 %v747
    %v1358 = vunpack.c.h.b16 %v747
    %v1359 = vunpack.c.l.b16 %v748
    %v1360 = vunpack.c.h.b16 %v748
    %v1361 = vunpack.c.l.b16 %v749
    %v1362 = vunpack.c.h.b16 %v749
    %v1363 = vunpack.c.l.b16 %v750
    %v1364 = vunpack.c.h.b16 %v750
    %v1365 = vunpack.c.l.b16 %v751
    %v1366 = vunpack.c.h.b16 %v751
    %v1367 = vunpack.c.l.b16 %v752
    %v1368 = vunpack.c.h.b16 %v752
    %v1369 = vunpack.c.l.b16 %v753
    %v1370 = vunpack.c.h.b16 %v753
    %v1371 = vunpack.c.l.b16 %v754
    %v1372 = vunpack.c.h.b16 %v754
    %v1373 = vunpack.c.l.b16 %v755
    %v1374 = vunpack.c.h.b16 %v755
    %v1375 = vunpack.c.l.b16 %v756
    %v1376 = vunpack.c.h.b16 %v756
    %v1377 = vunpack.c.l.b16 %v757
    %v1378 = vunpack.c.h.b16 %v757
    %v1379 = vunpack.c.l.b16 %v758
    %v1380 = vunpack.c.h.b16 %v758
    %v1381 = vunpack.c.l.b16 %v759
    %v1382 = vunpack.c.h.b16 %v759
    %v1383 = vunpack.c.l.b16 %v760
    %v1384 = vunpack.c.h.b16 %v760
    %v1385 = vunpack.c.l.b16 %v761
    %v1386 = vunpack.c.h.b16 %v761
    %v1387 = vunpack.c.l.b16 %v762
    %v1388 = vunpack.c.h.b16 %v762
    %v1389 = vunpack.c.l.b16 %v763
    %v1390 = vunpack.c.h.b16 %v763
    %v1391 = vunpack.c.l.b16 %v764
    %v1392 = vunpack.c.h.b16 %v764
    %v1393 = vunpack.c.l.b16 %v765
    %v1394 = vunpack.c.h.b16 %v765
    %v1395 = vpack.c.b16 %v1271, %v1267
    %v1396 = vpack.c.b16 %v1272, %v1268
    %v1397 = vpack.c.b16 %v1273, %v1269
    %v1398 = vpack.c.b16 %v1274, %v1270
    %v1399 = vpack.c.b16 %v1279, %v1275
    %v1400 = vpack.c.b16 %v1280, %v1276
    %v1401 = vpack.c.b16 %v1281, %v1277
    %v1402 = vpack.c.b16 %v1282, %v1278
    %v1403 = vpack.c.b16 %v1287, %v1283
    %v1404 = vpack.c.b16 %v1288, %v1284
    %v1405 = vpack.c.b16 %v1289, %v1285
    %v1406 = vpack.c.b16 %v1290, %v1286
    %v1407 = vpack.c.b16 %v1295, %v1291
    %v1408 = vpack.c.b16 %v1296, %v1292
    %v1409 = vpack.c.b16 %v1297, %v1293
    %v1410 = vpack.c.b16 %v1298, %v1294
    %v1411 = vpack.c.b16 %v1303, %v1299
    %v1412 = vpack.c.b16 %v1304, %v1300
    %v1413 = vpack.c.b16 %v1305, %v1301
    %v1414 = vpack.c.b16 %v1306, %v1302
    %v1415 = vpack.c.b16 %v1311, %v1307
    %v1416 = vpack.c.b16 %v1312, %v1308
    %v1417 = vpack.c.b16 %v1313, %v1309
    %v1418 = vpack.c.b16 %v1314, %v1310
    %v1419 = vpack.c.b16 %v1319, %v1315
    %v1420 = vpack.c.b16 %v1320, %v1316
    %v1421 = vpack.c.b16 %v1321, %v1317
    %v1422 = vpack.c.b16 %v1322, %v1318
    %v1423 = vpack.c.b16 %v1327, %v1323
    %v1424 = vpack.c.b16 %v1328, %v1324
    %v1425 = vpack.c.b16 %v1329, %v1325
    %v1426 = vpack.c.b16 %v1330, %v1326
    %v1427 = vpack.c.b16 %v1335, %v1331
    %v1428 = vpack.c.b16 %v1336, %v1332
    %v1429 = vpack.c.b16 %v1337, %v1333
    %v1430 = vpack.c.b16 %v1338, %v1334
    %v1431 = vpack.c.b16 %v1343, %v1339
    %v1432 = vpack.c.b16 %v1344, %v1340
    %v1433 = vpack.c.b16 %v1345, %v1341
    %v1434 = vpack.c.b16 %v1346, %v1342
    %v1435 = vpack.c.b16 %v1351, %v1347
    %v1436 = vpack.c.b16 %v1352, %v1348
    %v1437 = vpack.c.b16 %v1353, %v1349
    %v1438 = vpack.c.b16 %v1354, %v1350
    %v1439 = vpack.c.b16 %v1359, %v1355
    %v1440 = vpack.c.b16 %v1360, %v1356
    %v1441 = vpack.c.b16 %v1361, %v1357
    %v1442 = vpack.c.b16 %v1362, %v1358
    %v1443 = vpack.c.b16 %v1367, %v1363
    %v1444 = vpack.c.b16 %v1368, %v1364
    %v1445 = vpack.c.b16 %v1369, %v1365
    %v1446 = vpack.c.b16 %v1370, %v1366
    %v1447 = vpack.c.b16 %v1375, %v1371
    %v1448 = vpack.c.b16 %v1376, %v1372
    %v1449 = vpack.c.b16 %v1377, %v1373
    %v1450 = vpack.c.b16 %v1378, %v1374
    %v1451 = vpack.c.b16 %v1383, %v1379
    %v1452 = vpack.c.b16 %v1384, %v1380
    %v1453 = vpack.c.b16 %v1385, %v1381
    %v1454 = vpack.c.b16 %v1386, %v1382
    %v1455 = vpack.c.b16 %v1391, %v1387
    %v1456 = vpack.c.b16 %v1392, %v1388
    %v1457 = vpack.c.b16 %v1393, %v1389
    %v1458 = vpack.c.b16 %v1394, %v1390
    %1523 = vmatprep.subr.bf16.mxu0 %v1396
    %1524 = vmatpush1.bf16.msra.mxu0 %v1395
    %1525 = vmatprep.subr.bf16.mxu0 %v1400
    %1526 = vmatpush1.bf16.msra.mxu0 %v1399
    %1527 = vmatprep.subr.bf16.mxu0 %v1404
    %1528 = vmatpush1.bf16.msra.mxu0 %v1403
    %1529 = vmatprep.subr.bf16.mxu0 %v1408
    %1530 = vmatpush1.bf16.msra.mxu0 %v1407
    %1531 = vmatprep.subr.bf16.mxu0 %v1412
    %1532 = vmatpush1.bf16.msra.mxu0 %v1411
    %1533 = vmatprep.subr.bf16.mxu0 %v1416
    %1534 = vmatpush1.bf16.msra.mxu0 %v1415
    %1535 = vmatprep.subr.bf16.mxu0 %v1420
    %1536 = vmatpush1.bf16.msra.mxu0 %v1419
    %1537 = vmatprep.subr.bf16.mxu0 %v1424
    %1538 = vmatpush1.bf16.msra.mxu0 %v1423
    %1539 = vmatprep.subr.bf16.mxu0 %v1428
    %1540 = vmatpush1.bf16.msra.mxu0 %v1427
    %1541 = vmatprep.subr.bf16.mxu0 %v1432
    %1542 = vmatpush1.bf16.msra.mxu0 %v1431
    %1543 = vmatprep.subr.bf16.mxu0 %v1436
    %1544 = vmatpush1.bf16.msra.mxu0 %v1435
    %1545 = vmatprep.subr.bf16.mxu0 %v1440
    %1546 = vmatpush1.bf16.msra.mxu0 %v1439
    %1547 = vmatprep.subr.bf16.mxu0 %v1444
    %1548 = vmatpush1.bf16.msra.mxu0 %v1443
    %1549 = vmatprep.subr.bf16.mxu0 %v1448
    %1550 = vmatpush1.bf16.msra.mxu0 %v1447
    %1551 = vmatprep.subr.bf16.mxu0 %v1452
    %1552 = vmatpush1.bf16.msra.mxu0 %v1451
    %1553 = vmatprep.subr.bf16.mxu0 %v1456
    %1554 = vmatpush1.bf16.msra.mxu0 %v1455
    %1555 = vmatprep.mubr.bf16.mxu0 %v1181
    %1556 = vmatmul.mubr.bf16.gmra.mrb[0].mxu0 %v1180
    %v1557 = vpop.f32.mrb[0].mxu0
    %v1558 = vadd.f32 %v1186, %v1557
    %v1559 = vpop.f32.mrb[0].mxu0
    %v1560 = vadd.f32 %v1190, %v1559
    %v1561 = vpop.f32.mrb[0].mxu0
    %v1562 = vpop.f32.mrb[0].mxu0
    %1563 = vdwg.mxu0
    %1564 = vmatprep.subr.bf16.mxu0 %v1398
    %1565 = vmatpush1.bf16.msra.mxu0 %v1397
    %1566 = vmatprep.subr.bf16.mxu0 %v1402
    %1567 = vmatpush1.bf16.msra.mxu0 %v1401
    %1568 = vmatprep.subr.bf16.mxu0 %v1406
    %1569 = vmatpush1.bf16.msra.mxu0 %v1405
    %1570 = vmatprep.subr.bf16.mxu0 %v1410
    %1571 = vmatpush1.bf16.msra.mxu0 %v1409
    %1572 = vmatprep.subr.bf16.mxu0 %v1414
    %1573 = vmatpush1.bf16.msra.mxu0 %v1413
    %1574 = vmatprep.subr.bf16.mxu0 %v1418
    %1575 = vmatpush1.bf16.msra.mxu0 %v1417
    %1576 = vmatprep.subr.bf16.mxu0 %v1422
    %1577 = vmatpush1.bf16.msra.mxu0 %v1421
    %1578 = vmatprep.subr.bf16.mxu0 %v1426
    %1579 = vmatpush1.bf16.msra.mxu0 %v1425
    %1580 = vmatprep.subr.bf16.mxu0 %v1430
    %1581 = vmatpush1.bf16.msra.mxu0 %v1429
    %1582 = vmatprep.subr.bf16.mxu0 %v1434
    %1583 = vmatpush1.bf16.msra.mxu0 %v1433
    %1584 = vmatprep.subr.bf16.mxu0 %v1438
    %1585 = vmatpush1.bf16.msra.mxu0 %v1437
    %1586 = vmatprep.subr.bf16.mxu0 %v1442
    %1587 = vmatpush1.bf16.msra.mxu0 %v1441
    %1588 = vmatprep.subr.bf16.mxu0 %v1446
    %1589 = vmatpush1.bf16.msra.mxu0 %v1445
    %1590 = vmatprep.subr.bf16.mxu0 %v1450
    %1591 = vmatpush1.bf16.msra.mxu0 %v1449
    %1592 = vmatprep.subr.bf16.mxu0 %v1454
    %1593 = vmatpush1.bf16.msra.mxu0 %v1453
    %1594 = vmatprep.subr.bf16.mxu0 %v1458
    %1595 = vmatpush1.bf16.msra.mxu0 %v1457
    %1596 = vmatprep.mubr.bf16.mxu0 %v1181
    %1597 = vmatmul.mubr.bf16.gmra.mrb[0].mxu0 %v1180
    %v1598 = vpop.f32.mrb[0].mxu0
    %v1599 = vadd.f32 %v1194, %v1598
    %v1600 = vpop.f32.mrb[0].mxu0
    %v1601 = vadd.f32 %v1198, %v1600
    %v1602 = vpop.f32.mrb[0].mxu0
    %v1603 = vpop.f32.mrb[0].mxu0
    %1604 = vdwg.mxu0
    %v1605 = vxor.u32 %v1558, 2147483648
    %v1606 = vmul.f32 %v1605, 1.442695
    %v1607 = vpow.pop %v1606
    %v1608 = vadd.f32 %v1607, 1.0
    %v1609 = vrcp.pop %v1608
    %v1610 = vmul.f32 1.0, %v1609
    %v1611 = vxor.u32 %v1560, 2147483648
    %v1612 = vmul.f32 %v1611, 1.442695
    %v1613 = vpow.pop %v1612
    %v1614 = vadd.f32 %v1613, 1.0
    %v1615 = vrcp.pop %v1614
    %v1616 = vmul.f32 1.0, %v1615
    %v1617 = vtanh.pop %v1599
    %v1618 = vxor.u32 %v1601, 2147483648
    %v1619 = vmul.f32 %v1618, 1.442695
    %v1620 = vpow.pop %v1619
    %v1621 = vadd.f32 %v1620, 1.0
    %v1622 = vrcp.pop %v1621
    %v1623 = vmul.f32 1.0, %v1622
    %v1624 = vmul.f32 %v1616, %v770
    %v1625 = vmul.f32 %v1610, %v1617
    %v1626 = vadd.f32 %v1624, %v1625
    %v1627 = vtanh.pop %v1626
    %v1628 = vmul.f32 %v1623, %v1627
    %v1629 = vpack.c.bf16 %v1162, %v1162
    %v1630 = vpack.c.bf16 %v1163, %v1163
    %v1631 = vpack.c.bf16 %v1164, %v1164
    %v1632 = vpack.c.bf16 %v1165, %v1165
    %v1637 = vunpack.c.l.b16 %v1629
    %v1638 = vunpack.c.l.b16 %v1630
    %v1639 = vunpack.c.l.b16 %v1631
    %v1640 = vunpack.c.l.b16 %v1632
    %v1641 = vrot.slane %v1638, 7
    %v1642 = vsel %vm1171, %v1641, %v1637
    %v1643 = vrot.slane %v1639, 6
    %v1644 = vsel %vm1174, %v1643, %v1642
    %v1645 = vrot.slane %v1640, 5
    %v1646 = vsel %vm1177, %v1645, %v1644
    %v1647 = vpack.c.b16 %v1646, %v1646
    %1649 = vmatprep.subr.bf16.mxu0 %v869
    %1650 = vmatpush1.bf16.msra.mxu0 %v868
    %1651 = vmatprep.subr.bf16.mxu0 %v873
    %1652 = vmatpush1.bf16.msra.mxu0 %v872
    %1653 = vmatprep.subr.bf16.mxu0 %v877
    %1654 = vmatpush1.bf16.msra.mxu0 %v876
    %1655 = vmatprep.subr.bf16.mxu0 %v881
    %1656 = vmatpush1.bf16.msra.mxu0 %v880
    %1657 = vmatprep.subr.bf16.mxu0 %v885
    %1658 = vmatpush1.bf16.msra.mxu0 %v884
    %1659 = vmatprep.subr.bf16.mxu0 %v889
    %1660 = vmatpush1.bf16.msra.mxu0 %v888
    %1661 = vmatprep.subr.bf16.mxu0 %v893
    %1662 = vmatpush1.bf16.msra.mxu0 %v892
    %1663 = vmatprep.subr.bf16.mxu0 %v897
    %1664 = vmatpush1.bf16.msra.mxu0 %v896
    %1665 = vmatprep.subr.bf16.mxu0 0
    %1666 = vmatpush1.bf16.msra.mxu0 0
    %1667 = vmatprep.subr.bf16.mxu0 0
    %1668 = vmatpush1.bf16.msra.mxu0 0
    %1669 = vmatprep.subr.bf16.mxu0 0
    %1670 = vmatpush1.bf16.msra.mxu0 0
    %1671 = vmatprep.subr.bf16.mxu0 0
    %1672 = vmatpush1.bf16.msra.mxu0 0
    %1673 = vmatprep.subr.bf16.mxu0 0
    %1674 = vmatpush1.bf16.msra.mxu0 0
    %1675 = vmatprep.subr.bf16.mxu0 0
    %1676 = vmatpush1.bf16.msra.mxu0 0
    %1677 = vmatprep.subr.bf16.mxu0 0
    %1678 = vmatpush1.bf16.msra.mxu0 0
    %1679 = vmatprep.subr.bf16.mxu0 0
    %1680 = vmatpush1.bf16.msra.mxu0 0
    %1681 = vmatprep.mubr.bf16.mxu0 0
    %1682 = vmatmul.mubr.bf16.gmra.mrb[0].mxu0 %v1647
    %v1683 = vpop.f32.mrb[0].mxu0
    %v1684 = vadd.f32 0.0, %v1683
    %v1685 = vpop.f32.mrb[0].mxu0
    %v1686 = vadd.f32 0.0, %v1685
    %v1687 = vpop.f32.mrb[0].mxu0
    %v1688 = vpop.f32.mrb[0].mxu0
    %1689 = vdwg.mxu0
    %1690 = vmatprep.subr.bf16.mxu0 %v871
    %1691 = vmatpush1.bf16.msra.mxu0 %v870
    %1692 = vmatprep.subr.bf16.mxu0 %v875
    %1693 = vmatpush1.bf16.msra.mxu0 %v874
    %1694 = vmatprep.subr.bf16.mxu0 %v879
    %1695 = vmatpush1.bf16.msra.mxu0 %v878
    %1696 = vmatprep.subr.bf16.mxu0 %v883
    %1697 = vmatpush1.bf16.msra.mxu0 %v882
    %1698 = vmatprep.subr.bf16.mxu0 %v887
    %1699 = vmatpush1.bf16.msra.mxu0 %v886
    %1700 = vmatprep.subr.bf16.mxu0 %v891
    %1701 = vmatpush1.bf16.msra.mxu0 %v890
    %1702 = vmatprep.subr.bf16.mxu0 %v895
    %1703 = vmatpush1.bf16.msra.mxu0 %v894
    %1704 = vmatprep.subr.bf16.mxu0 %v899
    %1705 = vmatpush1.bf16.msra.mxu0 %v898
    %1706 = vmatprep.subr.bf16.mxu0 0
    %1707 = vmatpush1.bf16.msra.mxu0 0
    %1708 = vmatprep.subr.bf16.mxu0 0
    %1709 = vmatpush1.bf16.msra.mxu0 0
    %1710 = vmatprep.subr.bf16.mxu0 0
    %1711 = vmatpush1.bf16.msra.mxu0 0
    %1712 = vmatprep.subr.bf16.mxu0 0
    %1713 = vmatpush1.bf16.msra.mxu0 0
    %1714 = vmatprep.subr.bf16.mxu0 0
    %1715 = vmatpush1.bf16.msra.mxu0 0
    %1716 = vmatprep.subr.bf16.mxu0 0
    %1717 = vmatpush1.bf16.msra.mxu0 0
    %1718 = vmatprep.subr.bf16.mxu0 0
    %1719 = vmatpush1.bf16.msra.mxu0 0
    %1720 = vmatprep.subr.bf16.mxu0 0
    %1721 = vmatpush1.bf16.msra.mxu0 0
    %1722 = vmatprep.mubr.bf16.mxu0 0
    %1723 = vmatmul.mubr.bf16.gmra.mrb[0].mxu0 %v1647
    %v1724 = vpop.f32.mrb[0].mxu0
    %v1725 = vadd.f32 0.0, %v1724
    %v1726 = vpop.f32.mrb[0].mxu0
    %v1727 = vadd.f32 0.0, %v1726
    %v1728 = vpop.f32.mrb[0].mxu0
    %v1729 = vpop.f32.mrb[0].mxu0
    %1730 = vdwg.mxu0
    %v1735 = vrot.slane %v1684, 7
    %v1736 = vrot.slane %v1686, 7
    %v1737 = vrot.slane %v1725, 7
    %v1738 = vrot.slane %v1727, 7
    %v1739 = vrot.slane %v1684, 1
    %v1740 = vrot.slane %v1686, 1
    %v1741 = vrot.slane %v1725, 1
    %v1742 = vrot.slane %v1727, 1
    %v1743 = vrot.slane %v1684, 2
    %v1744 = vrot.slane %v1686, 2
    %v1745 = vrot.slane %v1725, 2
    %v1746 = vrot.slane %v1727, 2
    %v1763 = vadd.f32 %v599, %v1735
    %v1764 = vadd.f32 %v601, %v1736
    %v1765 = vadd.f32 %v652, %v1737
    %v1766 = vadd.f32 %v654, %v1738
    %v1767 = vadd.f32 %v603, %v1684
    %v1768 = vadd.f32 %v605, %v1686
    %v1769 = vadd.f32 %v656, %v1725
    %v1770 = vadd.f32 %v658, %v1727
    %v1771 = vadd.f32 %v609, %v1739
    %v1772 = vadd.f32 %v611, %v1740
    %v1773 = vadd.f32 %v662, %v1741
    %v1774 = vadd.f32 %v664, %v1742
    %v1775 = vadd.f32 %v613, %v1743
    %v1776 = vadd.f32 %v615, %v1744
    %v1777 = vadd.f32 %v666, %v1745
    %v1778 = vadd.f32 %v668, %v1746
    %v1779 = vxor.u32 %v1763, 2147483648
    %v1780 = vxor.u32 %v1767, 2147483648
    %v1781 = vxor.u32 %v1771, 2147483648
    %v1782 = vxor.u32 %v1775, 2147483648
    %v1783 = vmul.f32 %v1779, 1.442695
    %v1784 = vpow.pop %v1783
    %v1785 = vmul.f32 %v1780, 1.442695
    %v1786 = vpow.pop %v1785
    %v1787 = vmul.f32 %v1781, 1.442695
    %v1788 = vpow.pop %v1787
    %v1789 = vmul.f32 %v1782, 1.442695
    %v1790 = vpow.pop %v1789
    %v1791 = vadd.f32 %v1784, 1.0
    %v1792 = vadd.f32 %v1786, 1.0
    %v1793 = vadd.f32 %v1788, 1.0
    %v1794 = vadd.f32 %v1790, 1.0
    %v1795 = vrcp.pop %v1791
    %v1796 = vmul.f32 1.0, %v1795
    %v1797 = vrcp.pop %v1792
    %v1798 = vmul.f32 1.0, %v1797
    %v1799 = vrcp.pop %v1793
    %v1800 = vmul.f32 1.0, %v1799
    %v1801 = vrcp.pop %v1794
    %v1802 = vmul.f32 1.0, %v1801
    %v1803 = vxor.u32 %v1764, 2147483648
    %v1804 = vxor.u32 %v1768, 2147483648
    %v1805 = vxor.u32 %v1772, 2147483648
    %v1806 = vxor.u32 %v1776, 2147483648
    %v1807 = vmul.f32 %v1803, 1.442695
    %v1808 = vpow.pop %v1807
    %v1809 = vmul.f32 %v1804, 1.442695
    %v1810 = vpow.pop %v1809
    %v1811 = vmul.f32 %v1805, 1.442695
    %v1812 = vpow.pop %v1811
    %v1813 = vmul.f32 %v1806, 1.442695
    %v1814 = vpow.pop %v1813
    %v1815 = vadd.f32 %v1808, 1.0
    %v1816 = vadd.f32 %v1810, 1.0
    %v1817 = vadd.f32 %v1812, 1.0
    %v1818 = vadd.f32 %v1814, 1.0
    %v1819 = vrcp.pop %v1815
    %v1820 = vmul.f32 1.0, %v1819
    %v1821 = vrcp.pop %v1816
    %v1822 = vmul.f32 1.0, %v1821
    %v1823 = vrcp.pop %v1817
    %v1824 = vmul.f32 1.0, %v1823
    %v1825 = vrcp.pop %v1818
    %v1826 = vmul.f32 1.0, %v1825
    %v1827 = vtanh.pop %v1765
    %v1828 = vtanh.pop %v1769
    %v1829 = vtanh.pop %v1773
    %v1830 = vtanh.pop %v1777
    %v1831 = vxor.u32 %v1766, 2147483648
    %v1832 = vxor.u32 %v1770, 2147483648
    %v1833 = vxor.u32 %v1774, 2147483648
    %v1834 = vxor.u32 %v1778, 2147483648
    %v1835 = vmul.f32 %v1831, 1.442695
    %v1836 = vpow.pop %v1835
    %v1837 = vmul.f32 %v1832, 1.442695
    %v1838 = vpow.pop %v1837
    %v1839 = vmul.f32 %v1833, 1.442695
    %v1840 = vpow.pop %v1839
    %v1841 = vmul.f32 %v1834, 1.442695
    %v1842 = vpow.pop %v1841
    %v1843 = vadd.f32 %v1836, 1.0
    %v1844 = vadd.f32 %v1838, 1.0
    %v1845 = vadd.f32 %v1840, 1.0
    %v1846 = vadd.f32 %v1842, 1.0
    %v1847 = vrcp.pop %v1843
    %v1848 = vmul.f32 1.0, %v1847
    %v1849 = vrcp.pop %v1844
    %v1850 = vmul.f32 1.0, %v1849
    %v1851 = vrcp.pop %v1845
    %v1852 = vmul.f32 1.0, %v1851
    %v1853 = vrcp.pop %v1846
    %v1854 = vmul.f32 1.0, %v1853
    %v1859 = vrot.slane %v1154, 7
    %v1860 = vrot.slane %v1155, 7
    %v1861 = vrot.slane %v1156, 7
    %v1862 = vrot.slane %v1157, 7
    %v1867 = vmul.f32 %v1820, %v1859
    %v1868 = vmul.f32 %v1822, %v1860
    %v1869 = vmul.f32 %v1824, %v1861
    %v1870 = vmul.f32 %v1826, %v1862
    %v1871 = vmul.f32 %v1796, %v1827
    %v1872 = vmul.f32 %v1798, %v1828
    %v1873 = vmul.f32 %v1800, %v1829
    %v1874 = vmul.f32 %v1802, %v1830
    %v1875 = vadd.f32 %v1867, %v1871
    %v1876 = vadd.f32 %v1868, %v1872
    %v1877 = vadd.f32 %v1869, %v1873
    %v1878 = vadd.f32 %v1870, %v1874
    %v1879 = vtanh.pop %v1875
    %v1880 = vtanh.pop %v1876
    %v1881 = vtanh.pop %v1877
    %v1882 = vtanh.pop %v1878
    %v1883 = vmul.f32 %v1848, %v1879
    %v1884 = vmul.f32 %v1850, %v1880
    %v1885 = vmul.f32 %v1852, %v1881
    %v1886 = vmul.f32 %v1854, %v1882
    %v1891 = vrot.slane %v1884, 7
    %v1892 = vsel %vm1174, %v1891, %v1883
    %v1893 = vrot.slane %v1885, 6
    %v1894 = vsel %vm1177, %v1893, %v1892
    %v1895 = vrot.slane %v1886, 5
    %vm1896 = vcmask 1044484
    %v1897 = vsel %vm1896, %v1895, %v1894
    %v1900 = vrot.slane %v1628, 7
    %v1902 = vpack.c.bf16 %v1897, %v1897
    %v1903 = vpack.c.bf16 %v1900, %v1900
    %v1905 = vshrl.u32 %v1902, 16
    %v1907 = vshll.u32 %v1902, 16
    %v1909 = vrot.slane %v1907, 1
    %v1910 = vor.u32 %v1905, %v1909
    %v1912 = vshrl.u32 %v1903, 16
    %v1914 = vshll.u32 %v1903, 16
    %v1916 = vrot.slane %v1914, 1
    %v1917 = vor.u32 %v1912, %v1916
    %1920 = vmatprep.subr.bf16.mxu0 %v1396
    %1921 = vmatpush1.bf16.msra.mxu0 %v1395
    %1922 = vmatprep.subr.bf16.mxu0 %v1400
    %1923 = vmatpush1.bf16.msra.mxu0 %v1399
    %1924 = vmatprep.subr.bf16.mxu0 %v1404
    %1925 = vmatpush1.bf16.msra.mxu0 %v1403
    %1926 = vmatprep.subr.bf16.mxu0 %v1408
    %1927 = vmatpush1.bf16.msra.mxu0 %v1407
    %1928 = vmatprep.subr.bf16.mxu0 %v1412
    %1929 = vmatpush1.bf16.msra.mxu0 %v1411
    %1930 = vmatprep.subr.bf16.mxu0 %v1416
    %1931 = vmatpush1.bf16.msra.mxu0 %v1415
    %1932 = vmatprep.subr.bf16.mxu0 %v1420
    %1933 = vmatpush1.bf16.msra.mxu0 %v1419
    %1934 = vmatprep.subr.bf16.mxu0 %v1424
    %1935 = vmatpush1.bf16.msra.mxu0 %v1423
    %1936 = vmatprep.subr.bf16.mxu0 %v1428
    %1937 = vmatpush1.bf16.msra.mxu0 %v1427
    %1938 = vmatprep.subr.bf16.mxu0 %v1432
    %1939 = vmatpush1.bf16.msra.mxu0 %v1431
    %1940 = vmatprep.subr.bf16.mxu0 %v1436
    %1941 = vmatpush1.bf16.msra.mxu0 %v1435
    %1942 = vmatprep.subr.bf16.mxu0 %v1440
    %1943 = vmatpush1.bf16.msra.mxu0 %v1439
    %1944 = vmatprep.subr.bf16.mxu0 %v1444
    %1945 = vmatpush1.bf16.msra.mxu0 %v1443
    %1946 = vmatprep.subr.bf16.mxu0 %v1448
    %1947 = vmatpush1.bf16.msra.mxu0 %v1447
    %1948 = vmatprep.subr.bf16.mxu0 %v1452
    %1949 = vmatpush1.bf16.msra.mxu0 %v1451
    %1950 = vmatprep.subr.bf16.mxu0 %v1456
    %1951 = vmatpush1.bf16.msra.mxu0 %v1455
    %1952 = vmatprep.mubr.bf16.mxu0 %v1917
    %1953 = vmatmul.mubr.bf16.gmra.mrb[0].mxu0 %v1910
    %v1954 = vpop.f32.mrb[0].mxu0
    %v1955 = vadd.f32 %v1186, %v1954
    %v1956 = vpop.f32.mrb[0].mxu0
    %v1957 = vadd.f32 %v1190, %v1956
    %v1958 = vpop.f32.mrb[0].mxu0
    %v1959 = vpop.f32.mrb[0].mxu0
    %1960 = vdwg.mxu0
    %1961 = vmatprep.subr.bf16.mxu0 %v1398
    %1962 = vmatpush1.bf16.msra.mxu0 %v1397
    %1963 = vmatprep.subr.bf16.mxu0 %v1402
    %1964 = vmatpush1.bf16.msra.mxu0 %v1401
    %1965 = vmatprep.subr.bf16.mxu0 %v1406
    %1966 = vmatpush1.bf16.msra.mxu0 %v1405
    %1967 = vmatprep.subr.bf16.mxu0 %v1410
    %1968 = vmatpush1.bf16.msra.mxu0 %v1409
    %1969 = vmatprep.subr.bf16.mxu0 %v1414
    %1970 = vmatpush1.bf16.msra.mxu0 %v1413
    %1971 = vmatprep.subr.bf16.mxu0 %v1418
    %1972 = vmatpush1.bf16.msra.mxu0 %v1417
    %1973 = vmatprep.subr.bf16.mxu0 %v1422
    %1974 = vmatpush1.bf16.msra.mxu0 %v1421
    %1975 = vmatprep.subr.bf16.mxu0 %v1426
    %1976 = vmatpush1.bf16.msra.mxu0 %v1425
    %1977 = vmatprep.subr.bf16.mxu0 %v1430
    %1978 = vmatpush1.bf16.msra.mxu0 %v1429
    %1979 = vmatprep.subr.bf16.mxu0 %v1434
    %1980 = vmatpush1.bf16.msra.mxu0 %v1433
    %1981 = vmatprep.subr.bf16.mxu0 %v1438
    %1982 = vmatpush1.bf16.msra.mxu0 %v1437
    %1983 = vmatprep.subr.bf16.mxu0 %v1442
    %1984 = vmatpush1.bf16.msra.mxu0 %v1441
    %1985 = vmatprep.subr.bf16.mxu0 %v1446
    %1986 = vmatpush1.bf16.msra.mxu0 %v1445
    %1987 = vmatprep.subr.bf16.mxu0 %v1450
    %1988 = vmatpush1.bf16.msra.mxu0 %v1449
    %1989 = vmatprep.subr.bf16.mxu0 %v1454
    %1990 = vmatpush1.bf16.msra.mxu0 %v1453
    %1991 = vmatprep.subr.bf16.mxu0 %v1458
    %1992 = vmatpush1.bf16.msra.mxu0 %v1457
    %1993 = vmatprep.mubr.bf16.mxu0 %v1917
    %1994 = vmatmul.mubr.bf16.gmra.mrb[0].mxu0 %v1910
    %v1995 = vpop.f32.mrb[0].mxu0
    %v1996 = vadd.f32 %v1194, %v1995
    %v1997 = vpop.f32.mrb[0].mxu0
    %v1998 = vadd.f32 %v1198, %v1997
    %v1999 = vpop.f32.mrb[0].mxu0
    %v2000 = vpop.f32.mrb[0].mxu0
    %2001 = vdwg.mxu0
    %v2002 = vxor.u32 %v1955, 2147483648
    %v2003 = vmul.f32 %v2002, 1.442695
    %v2004 = vpow.pop %v2003
    %v2005 = vadd.f32 %v2004, 1.0
    %v2006 = vrcp.pop %v2005
    %v2007 = vmul.f32 1.0, %v2006
    %v2008 = vxor.u32 %v1957, 2147483648
    %v2009 = vmul.f32 %v2008, 1.442695
    %v2010 = vpow.pop %v2009
    %v2011 = vadd.f32 %v2010, 1.0
    %v2012 = vrcp.pop %v2011
    %v2013 = vmul.f32 1.0, %v2012
    %v2014 = vtanh.pop %v1996
    %v2015 = vxor.u32 %v1998, 2147483648
    %v2016 = vmul.f32 %v2015, 1.442695
    %v2017 = vpow.pop %v2016
    %v2018 = vadd.f32 %v2017, 1.0
    %v2019 = vrcp.pop %v2018
    %v2020 = vmul.f32 1.0, %v2019
    %v2021 = vmul.f32 %v2013, %v1626
    %v2022 = vmul.f32 %v2007, %v2014
    %v2023 = vadd.f32 %v2021, %v2022
    %v2024 = vtanh.pop %v2023
    %v2025 = vmul.f32 %v2020, %v2024
    %v2026 = vpack.c.bf16 %v1883, %v1883
    %v2027 = vpack.c.bf16 %v1884, %v1884
    %v2028 = vpack.c.bf16 %v1885, %v1885
    %v2029 = vpack.c.bf16 %v1886, %v1886
    %v2034 = vunpack.c.l.b16 %v2026
    %v2035 = vunpack.c.l.b16 %v2027
    %v2036 = vunpack.c.l.b16 %v2028
    %v2037 = vunpack.c.l.b16 %v2029
    %v2038 = vrot.slane %v2034, 1
    %v2039 = vsel %vm1171, %v2035, %v2038
    %v2040 = vrot.slane %v2036, 7
    %v2041 = vsel %vm1174, %v2040, %v2039
    %v2042 = vrot.slane %v2037, 6
    %v2043 = vsel %vm1177, %v2042, %v2041
    %v2044 = vpack.c.b16 %v2043, %v2043
    %2046 = vmatprep.subr.bf16.mxu0 %v869
    %2047 = vmatpush1.bf16.msra.mxu0 %v868
    %2048 = vmatprep.subr.bf16.mxu0 %v873
    %2049 = vmatpush1.bf16.msra.mxu0 %v872
    %2050 = vmatprep.subr.bf16.mxu0 %v877
    %2051 = vmatpush1.bf16.msra.mxu0 %v876
    %2052 = vmatprep.subr.bf16.mxu0 %v881
    %2053 = vmatpush1.bf16.msra.mxu0 %v880
    %2054 = vmatprep.subr.bf16.mxu0 %v885
    %2055 = vmatpush1.bf16.msra.mxu0 %v884
    %2056 = vmatprep.subr.bf16.mxu0 %v889
    %2057 = vmatpush1.bf16.msra.mxu0 %v888
    %2058 = vmatprep.subr.bf16.mxu0 %v893
    %2059 = vmatpush1.bf16.msra.mxu0 %v892
    %2060 = vmatprep.subr.bf16.mxu0 %v897
    %2061 = vmatpush1.bf16.msra.mxu0 %v896
    %2062 = vmatprep.subr.bf16.mxu0 0
    %2063 = vmatpush1.bf16.msra.mxu0 0
    %2064 = vmatprep.subr.bf16.mxu0 0
    %2065 = vmatpush1.bf16.msra.mxu0 0
    %2066 = vmatprep.subr.bf16.mxu0 0
    %2067 = vmatpush1.bf16.msra.mxu0 0
    %2068 = vmatprep.subr.bf16.mxu0 0
    %2069 = vmatpush1.bf16.msra.mxu0 0
    %2070 = vmatprep.subr.bf16.mxu0 0
    %2071 = vmatpush1.bf16.msra.mxu0 0
    %2072 = vmatprep.subr.bf16.mxu0 0
    %2073 = vmatpush1.bf16.msra.mxu0 0
    %2074 = vmatprep.subr.bf16.mxu0 0
    %2075 = vmatpush1.bf16.msra.mxu0 0
    %2076 = vmatprep.subr.bf16.mxu0 0
    %2077 = vmatpush1.bf16.msra.mxu0 0
    %2078 = vmatprep.mubr.bf16.mxu0 0
    %2079 = vmatmul.mubr.bf16.gmra.mrb[0].mxu0 %v2044
    %v2080 = vpop.f32.mrb[0].mxu0
    %v2081 = vadd.f32 0.0, %v2080
    %v2082 = vpop.f32.mrb[0].mxu0
    %v2083 = vadd.f32 0.0, %v2082
    %v2084 = vpop.f32.mrb[0].mxu0
    %v2085 = vpop.f32.mrb[0].mxu0
    %2086 = vdwg.mxu0
    %2087 = vmatprep.subr.bf16.mxu0 %v871
    %2088 = vmatpush1.bf16.msra.mxu0 %v870
    %2089 = vmatprep.subr.bf16.mxu0 %v875
    %2090 = vmatpush1.bf16.msra.mxu0 %v874
    %2091 = vmatprep.subr.bf16.mxu0 %v879
    %2092 = vmatpush1.bf16.msra.mxu0 %v878
    %2093 = vmatprep.subr.bf16.mxu0 %v883
    %2094 = vmatpush1.bf16.msra.mxu0 %v882
    %2095 = vmatprep.subr.bf16.mxu0 %v887
    %2096 = vmatpush1.bf16.msra.mxu0 %v886
    %2097 = vmatprep.subr.bf16.mxu0 %v891
    %2098 = vmatpush1.bf16.msra.mxu0 %v890
    %2099 = vmatprep.subr.bf16.mxu0 %v895
    %2100 = vmatpush1.bf16.msra.mxu0 %v894
    %2101 = vmatprep.subr.bf16.mxu0 %v899
    %2102 = vmatpush1.bf16.msra.mxu0 %v898
    %2103 = vmatprep.subr.bf16.mxu0 0
    %2104 = vmatpush1.bf16.msra.mxu0 0
    %2105 = vmatprep.subr.bf16.mxu0 0
    %2106 = vmatpush1.bf16.msra.mxu0 0
    %2107 = vmatprep.subr.bf16.mxu0 0
    %2108 = vmatpush1.bf16.msra.mxu0 0
    %2109 = vmatprep.subr.bf16.mxu0 0
    %2110 = vmatpush1.bf16.msra.mxu0 0
    %2111 = vmatprep.subr.bf16.mxu0 0
    %2112 = vmatpush1.bf16.msra.mxu0 0
    %2113 = vmatprep.subr.bf16.mxu0 0
    %2114 = vmatpush1.bf16.msra.mxu0 0
    %2115 = vmatprep.subr.bf16.mxu0 0
    %2116 = vmatpush1.bf16.msra.mxu0 0
    %2117 = vmatprep.subr.bf16.mxu0 0
    %2118 = vmatpush1.bf16.msra.mxu0 0
    %2119 = vmatprep.mubr.bf16.mxu0 0
    %2120 = vmatmul.mubr.bf16.gmra.mrb[0].mxu0 %v2044
    %v2121 = vpop.f32.mrb[0].mxu0
    %v2122 = vadd.f32 0.0, %v2121
    %v2123 = vpop.f32.mrb[0].mxu0
    %v2124 = vadd.f32 0.0, %v2123
    %v2125 = vpop.f32.mrb[0].mxu0
    %v2126 = vpop.f32.mrb[0].mxu0
    %2127 = vdwg.mxu0
    %v2132 = vrot.slane %v2081, 6
    %v2133 = vrot.slane %v2083, 6
    %v2134 = vrot.slane %v2122, 6
    %v2135 = vrot.slane %v2124, 6
    %v2136 = vrot.slane %v2081, 7
    %v2137 = vrot.slane %v2083, 7
    %v2138 = vrot.slane %v2122, 7
    %v2139 = vrot.slane %v2124, 7
    %v2140 = vrot.slane %v2081, 1
    %v2141 = vrot.slane %v2083, 1
    %v2142 = vrot.slane %v2122, 1
    %v2143 = vrot.slane %v2124, 1
    %v2160 = vadd.f32 %v599, %v2132
    %v2161 = vadd.f32 %v601, %v2133
    %v2162 = vadd.f32 %v652, %v2134
    %v2163 = vadd.f32 %v654, %v2135
    %v2164 = vadd.f32 %v603, %v2136
    %v2165 = vadd.f32 %v605, %v2137
    %v2166 = vadd.f32 %v656, %v2138
    %v2167 = vadd.f32 %v658, %v2139
    %v2168 = vadd.f32 %v609, %v2081
    %v2169 = vadd.f32 %v611, %v2083
    %v2170 = vadd.f32 %v662, %v2122
    %v2171 = vadd.f32 %v664, %v2124
    %v2172 = vadd.f32 %v613, %v2140
    %v2173 = vadd.f32 %v615, %v2141
    %v2174 = vadd.f32 %v666, %v2142
    %v2175 = vadd.f32 %v668, %v2143
    %v2176 = vxor.u32 %v2160, 2147483648
    %v2177 = vxor.u32 %v2164, 2147483648
    %v2178 = vxor.u32 %v2168, 2147483648
    %v2179 = vxor.u32 %v2172, 2147483648
    %v2180 = vmul.f32 %v2176, 1.442695
    %v2181 = vpow.pop %v2180
    %v2182 = vmul.f32 %v2177, 1.442695
    %v2183 = vpow.pop %v2182
    %v2184 = vmul.f32 %v2178, 1.442695
    %v2185 = vpow.pop %v2184
    %v2186 = vmul.f32 %v2179, 1.442695
    %v2187 = vpow.pop %v2186
    %v2188 = vadd.f32 %v2181, 1.0
    %v2189 = vadd.f32 %v2183, 1.0
    %v2190 = vadd.f32 %v2185, 1.0
    %v2191 = vadd.f32 %v2187, 1.0
    %v2192 = vrcp.pop %v2188
    %v2193 = vmul.f32 1.0, %v2192
    %v2194 = vrcp.pop %v2189
    %v2195 = vmul.f32 1.0, %v2194
    %v2196 = vrcp.pop %v2190
    %v2197 = vmul.f32 1.0, %v2196
    %v2198 = vrcp.pop %v2191
    %v2199 = vmul.f32 1.0, %v2198
    %v2200 = vxor.u32 %v2161, 2147483648
    %v2201 = vxor.u32 %v2165, 2147483648
    %v2202 = vxor.u32 %v2169, 2147483648
    %v2203 = vxor.u32 %v2173, 2147483648
    %v2204 = vmul.f32 %v2200, 1.442695
    %v2205 = vpow.pop %v2204
    %v2206 = vmul.f32 %v2201, 1.442695
    %v2207 = vpow.pop %v2206
    %v2208 = vmul.f32 %v2202, 1.442695
    %v2209 = vpow.pop %v2208
    %v2210 = vmul.f32 %v2203, 1.442695
    %v2211 = vpow.pop %v2210
    %v2212 = vadd.f32 %v2205, 1.0
    %v2213 = vadd.f32 %v2207, 1.0
    %v2214 = vadd.f32 %v2209, 1.0
    %v2215 = vadd.f32 %v2211, 1.0
    %v2216 = vrcp.pop %v2212
    %v2217 = vmul.f32 1.0, %v2216
    %v2218 = vrcp.pop %v2213
    %v2219 = vmul.f32 1.0, %v2218
    %v2220 = vrcp.pop %v2214
    %v2221 = vmul.f32 1.0, %v2220
    %v2222 = vrcp.pop %v2215
    %v2223 = vmul.f32 1.0, %v2222
    %v2224 = vtanh.pop %v2162
    %v2225 = vtanh.pop %v2166
    %v2226 = vtanh.pop %v2170
    %v2227 = vtanh.pop %v2174
    %v2228 = vxor.u32 %v2163, 2147483648
    %v2229 = vxor.u32 %v2167, 2147483648
    %v2230 = vxor.u32 %v2171, 2147483648
    %v2231 = vxor.u32 %v2175, 2147483648
    %v2232 = vmul.f32 %v2228, 1.442695
    %v2233 = vpow.pop %v2232
    %v2234 = vmul.f32 %v2229, 1.442695
    %v2235 = vpow.pop %v2234
    %v2236 = vmul.f32 %v2230, 1.442695
    %v2237 = vpow.pop %v2236
    %v2238 = vmul.f32 %v2231, 1.442695
    %v2239 = vpow.pop %v2238
    %v2240 = vadd.f32 %v2233, 1.0
    %v2241 = vadd.f32 %v2235, 1.0
    %v2242 = vadd.f32 %v2237, 1.0
    %v2243 = vadd.f32 %v2239, 1.0
    %v2244 = vrcp.pop %v2240
    %v2245 = vmul.f32 1.0, %v2244
    %v2246 = vrcp.pop %v2241
    %v2247 = vmul.f32 1.0, %v2246
    %v2248 = vrcp.pop %v2242
    %v2249 = vmul.f32 1.0, %v2248
    %v2250 = vrcp.pop %v2243
    %v2251 = vmul.f32 1.0, %v2250
    %v2256 = vrot.slane %v1875, 7
    %v2257 = vrot.slane %v1876, 7
    %v2258 = vrot.slane %v1877, 7
    %v2259 = vrot.slane %v1878, 7
    %v2264 = vmul.f32 %v2217, %v2256
    %v2265 = vmul.f32 %v2219, %v2257
    %v2266 = vmul.f32 %v2221, %v2258
    %v2267 = vmul.f32 %v2223, %v2259
    %v2268 = vmul.f32 %v2193, %v2224
    %v2269 = vmul.f32 %v2195, %v2225
    %v2270 = vmul.f32 %v2197, %v2226
    %v2271 = vmul.f32 %v2199, %v2227
    %v2272 = vadd.f32 %v2264, %v2268
    %v2273 = vadd.f32 %v2265, %v2269
    %v2274 = vadd.f32 %v2266, %v2270
    %v2275 = vadd.f32 %v2267, %v2271
    %v2276 = vtanh.pop %v2272
    %v2277 = vtanh.pop %v2273
    %v2278 = vtanh.pop %v2274
    %v2279 = vtanh.pop %v2275
    %v2280 = vmul.f32 %v2245, %v2276
    %v2281 = vmul.f32 %v2247, %v2277
    %v2282 = vmul.f32 %v2249, %v2278
    %v2283 = vmul.f32 %v2251, %v2279
    %v2288 = vrot.slane %v2281, 7
    %v2289 = vsel %vm1177, %v2288, %v2280
    %v2290 = vrot.slane %v2282, 6
    %v2291 = vsel %vm1896, %v2290, %v2289
    %v2292 = vrot.slane %v2283, 5
    %vm2293 = vcmask 1045509
    %v2294 = vsel %vm2293, %v2292, %v2291
    %v2297 = vrot.slane %v2025, 6
    %v2299 = vpack.c.bf16 %v2294, %v2294
    %v2300 = vpack.c.bf16 %v2297, %v2297
    %v2303 = vrot.slane %v2299, 1
    %v2304 = vrot.slane %v2300, 1
    %2307 = vmatprep.subr.bf16.mxu0 %v1396
    %2308 = vmatpush1.bf16.msra.mxu0 %v1395
    %2309 = vmatprep.subr.bf16.mxu0 %v1400
    %2310 = vmatpush1.bf16.msra.mxu0 %v1399
    %2311 = vmatprep.subr.bf16.mxu0 %v1404
    %2312 = vmatpush1.bf16.msra.mxu0 %v1403
    %2313 = vmatprep.subr.bf16.mxu0 %v1408
    %2314 = vmatpush1.bf16.msra.mxu0 %v1407
    %2315 = vmatprep.subr.bf16.mxu0 %v1412
    %2316 = vmatpush1.bf16.msra.mxu0 %v1411
    %2317 = vmatprep.subr.bf16.mxu0 %v1416
    %2318 = vmatpush1.bf16.msra.mxu0 %v1415
    %2319 = vmatprep.subr.bf16.mxu0 %v1420
    %2320 = vmatpush1.bf16.msra.mxu0 %v1419
    %2321 = vmatprep.subr.bf16.mxu0 %v1424
    %2322 = vmatpush1.bf16.msra.mxu0 %v1423
    %2323 = vmatprep.subr.bf16.mxu0 %v1428
    %2324 = vmatpush1.bf16.msra.mxu0 %v1427
    %2325 = vmatprep.subr.bf16.mxu0 %v1432
    %2326 = vmatpush1.bf16.msra.mxu0 %v1431
    %2327 = vmatprep.subr.bf16.mxu0 %v1436
    %2328 = vmatpush1.bf16.msra.mxu0 %v1435
    %2329 = vmatprep.subr.bf16.mxu0 %v1440
    %2330 = vmatpush1.bf16.msra.mxu0 %v1439
    %2331 = vmatprep.subr.bf16.mxu0 %v1444
    %2332 = vmatpush1.bf16.msra.mxu0 %v1443
    %2333 = vmatprep.subr.bf16.mxu0 %v1448
    %2334 = vmatpush1.bf16.msra.mxu0 %v1447
    %2335 = vmatprep.subr.bf16.mxu0 %v1452
    %2336 = vmatpush1.bf16.msra.mxu0 %v1451
    %2337 = vmatprep.subr.bf16.mxu0 %v1456
    %2338 = vmatpush1.bf16.msra.mxu0 %v1455
    %2339 = vmatprep.mubr.bf16.mxu0 %v2304
    %2340 = vmatmul.mubr.bf16.gmra.mrb[0].mxu0 %v2303
    %v2341 = vpop.f32.mrb[0].mxu0
    %v2342 = vadd.f32 %v1186, %v2341
    %v2343 = vpop.f32.mrb[0].mxu0
    %v2344 = vadd.f32 %v1190, %v2343
    %v2345 = vpop.f32.mrb[0].mxu0
    %v2346 = vpop.f32.mrb[0].mxu0
    %2347 = vdwg.mxu0
    %2348 = vmatprep.subr.bf16.mxu0 %v1398
    %2349 = vmatpush1.bf16.msra.mxu0 %v1397
    %2350 = vmatprep.subr.bf16.mxu0 %v1402
    %2351 = vmatpush1.bf16.msra.mxu0 %v1401
    %2352 = vmatprep.subr.bf16.mxu0 %v1406
    %2353 = vmatpush1.bf16.msra.mxu0 %v1405
    %2354 = vmatprep.subr.bf16.mxu0 %v1410
    %2355 = vmatpush1.bf16.msra.mxu0 %v1409
    %2356 = vmatprep.subr.bf16.mxu0 %v1414
    %2357 = vmatpush1.bf16.msra.mxu0 %v1413
    %2358 = vmatprep.subr.bf16.mxu0 %v1418
    %2359 = vmatpush1.bf16.msra.mxu0 %v1417
    %2360 = vmatprep.subr.bf16.mxu0 %v1422
    %2361 = vmatpush1.bf16.msra.mxu0 %v1421
    %2362 = vmatprep.subr.bf16.mxu0 %v1426
    %2363 = vmatpush1.bf16.msra.mxu0 %v1425
    %2364 = vmatprep.subr.bf16.mxu0 %v1430
    %2365 = vmatpush1.bf16.msra.mxu0 %v1429
    %2366 = vmatprep.subr.bf16.mxu0 %v1434
    %2367 = vmatpush1.bf16.msra.mxu0 %v1433
    %2368 = vmatprep.subr.bf16.mxu0 %v1438
    %2369 = vmatpush1.bf16.msra.mxu0 %v1437
    %2370 = vmatprep.subr.bf16.mxu0 %v1442
    %2371 = vmatpush1.bf16.msra.mxu0 %v1441
    %2372 = vmatprep.subr.bf16.mxu0 %v1446
    %2373 = vmatpush1.bf16.msra.mxu0 %v1445
    %2374 = vmatprep.subr.bf16.mxu0 %v1450
    %2375 = vmatpush1.bf16.msra.mxu0 %v1449
    %2376 = vmatprep.subr.bf16.mxu0 %v1454
    %2377 = vmatpush1.bf16.msra.mxu0 %v1453
    %2378 = vmatprep.subr.bf16.mxu0 %v1458
    %2379 = vmatpush1.bf16.msra.mxu0 %v1457
    %2380 = vmatprep.mubr.bf16.mxu0 %v2304
    %2381 = vmatmul.mubr.bf16.gmra.mrb[0].mxu0 %v2303
    %v2382 = vpop.f32.mrb[0].mxu0
    %v2383 = vadd.f32 %v1194, %v2382
    %v2384 = vpop.f32.mrb[0].mxu0
    %v2385 = vadd.f32 %v1198, %v2384
    %v2386 = vpop.f32.mrb[0].mxu0
    %v2387 = vpop.f32.mrb[0].mxu0
    %2388 = vdwg.mxu0
    %v2389 = vxor.u32 %v2342, 2147483648
    %v2390 = vmul.f32 %v2389, 1.442695
    %v2391 = vpow.pop %v2390
    %v2392 = vadd.f32 %v2391, 1.0
    %v2393 = vrcp.pop %v2392
    %v2394 = vmul.f32 1.0, %v2393
    %v2395 = vxor.u32 %v2344, 2147483648
    %v2396 = vmul.f32 %v2395, 1.442695
    %v2397 = vpow.pop %v2396
    %v2398 = vadd.f32 %v2397, 1.0
    %v2399 = vrcp.pop %v2398
    %v2400 = vmul.f32 1.0, %v2399
    %v2401 = vtanh.pop %v2383
    %v2402 = vxor.u32 %v2385, 2147483648
    %v2403 = vmul.f32 %v2402, 1.442695
    %v2404 = vpow.pop %v2403
    %v2405 = vadd.f32 %v2404, 1.0
    %v2406 = vrcp.pop %v2405
    %v2407 = vmul.f32 1.0, %v2406
    %v2408 = vmul.f32 %v2400, %v2023
    %v2409 = vmul.f32 %v2394, %v2401
    %v2410 = vadd.f32 %v2408, %v2409
    %v2411 = vtanh.pop %v2410
    %v2412 = vmul.f32 %v2407, %v2411
    %v2413 = vpack.c.bf16 %v2280, %v2280
    %v2414 = vpack.c.bf16 %v2281, %v2281
    %v2415 = vpack.c.bf16 %v2282, %v2282
    %v2416 = vpack.c.bf16 %v2283, %v2283
    %v2421 = vunpack.c.l.b16 %v2413
    %v2422 = vunpack.c.l.b16 %v2414
    %v2423 = vunpack.c.l.b16 %v2415
    %v2424 = vunpack.c.l.b16 %v2416
    %v2425 = vrot.slane %v2421, 2
    %v2426 = vrot.slane %v2422, 1
    %v2427 = vsel %vm1171, %v2426, %v2425
    %v2428 = vsel %vm1174, %v2423, %v2427
    %v2429 = vrot.slane %v2424, 7
    %v2430 = vsel %vm1177, %v2429, %v2428
    %v2431 = vpack.c.b16 %v2430, %v2430
    %2433 = vmatprep.subr.bf16.mxu0 %v869
    %2434 = vmatpush1.bf16.msra.mxu0 %v868
    %2435 = vmatprep.subr.bf16.mxu0 %v873
    %2436 = vmatpush1.bf16.msra.mxu0 %v872
    %2437 = vmatprep.subr.bf16.mxu0 %v877
    %2438 = vmatpush1.bf16.msra.mxu0 %v876
    %2439 = vmatprep.subr.bf16.mxu0 %v881
    %2440 = vmatpush1.bf16.msra.mxu0 %v880
    %2441 = vmatprep.subr.bf16.mxu0 %v885
    %2442 = vmatpush1.bf16.msra.mxu0 %v884
    %2443 = vmatprep.subr.bf16.mxu0 %v889
    %2444 = vmatpush1.bf16.msra.mxu0 %v888
    %2445 = vmatprep.subr.bf16.mxu0 %v893
    %2446 = vmatpush1.bf16.msra.mxu0 %v892
    %2447 = vmatprep.subr.bf16.mxu0 %v897
    %2448 = vmatpush1.bf16.msra.mxu0 %v896
    %2449 = vmatprep.subr.bf16.mxu0 0
    %2450 = vmatpush1.bf16.msra.mxu0 0
    %2451 = vmatprep.subr.bf16.mxu0 0
    %2452 = vmatpush1.bf16.msra.mxu0 0
    %2453 = vmatprep.subr.bf16.mxu0 0
    %2454 = vmatpush1.bf16.msra.mxu0 0
    %2455 = vmatprep.subr.bf16.mxu0 0
    %2456 = vmatpush1.bf16.msra.mxu0 0
    %2457 = vmatprep.subr.bf16.mxu0 0
    %2458 = vmatpush1.bf16.msra.mxu0 0
    %2459 = vmatprep.subr.bf16.mxu0 0
    %2460 = vmatpush1.bf16.msra.mxu0 0
    %2461 = vmatprep.subr.bf16.mxu0 0
    %2462 = vmatpush1.bf16.msra.mxu0 0
    %2463 = vmatprep.subr.bf16.mxu0 0
    %2464 = vmatpush1.bf16.msra.mxu0 0
    %2465 = vmatprep.mubr.bf16.mxu0 0
    %2466 = vmatmul.mubr.bf16.gmra.mrb[0].mxu0 %v2431
    %v2467 = vpop.f32.mrb[0].mxu0
    %v2468 = vadd.f32 0.0, %v2467
    %v2469 = vpop.f32.mrb[0].mxu0
    %v2470 = vadd.f32 0.0, %v2469
    %v2471 = vpop.f32.mrb[0].mxu0
    %v2472 = vpop.f32.mrb[0].mxu0
    %2473 = vdwg.mxu0
    %2474 = vmatprep.subr.bf16.mxu0 %v871
    %2475 = vmatpush1.bf16.msra.mxu0 %v870
    %2476 = vmatprep.subr.bf16.mxu0 %v875
    %2477 = vmatpush1.bf16.msra.mxu0 %v874
    %2478 = vmatprep.subr.bf16.mxu0 %v879
    %2479 = vmatpush1.bf16.msra.mxu0 %v878
    %2480 = vmatprep.subr.bf16.mxu0 %v883
    %2481 = vmatpush1.bf16.msra.mxu0 %v882
    %2482 = vmatprep.subr.bf16.mxu0 %v887
    %2483 = vmatpush1.bf16.msra.mxu0 %v886
    %2484 = vmatprep.subr.bf16.mxu0 %v891
    %2485 = vmatpush1.bf16.msra.mxu0 %v890
    %2486 = vmatprep.subr.bf16.mxu0 %v895
    %2487 = vmatpush1.bf16.msra.mxu0 %v894
    %2488 = vmatprep.subr.bf16.mxu0 %v899
    %2489 = vmatpush1.bf16.msra.mxu0 %v898
    %2490 = vmatprep.subr.bf16.mxu0 0
    %2491 = vmatpush1.bf16.msra.mxu0 0
    %2492 = vmatprep.subr.bf16.mxu0 0
    %2493 = vmatpush1.bf16.msra.mxu0 0
    %2494 = vmatprep.subr.bf16.mxu0 0
    %2495 = vmatpush1.bf16.msra.mxu0 0
    %2496 = vmatprep.subr.bf16.mxu0 0
    %2497 = vmatpush1.bf16.msra.mxu0 0
    %2498 = vmatprep.subr.bf16.mxu0 0
    %2499 = vmatpush1.bf16.msra.mxu0 0
    %2500 = vmatprep.subr.bf16.mxu0 0
    %2501 = vmatpush1.bf16.msra.mxu0 0
    %2502 = vmatprep.subr.bf16.mxu0 0
    %2503 = vmatpush1.bf16.msra.mxu0 0
    %2504 = vmatprep.subr.bf16.mxu0 0
    %2505 = vmatpush1.bf16.msra.mxu0 0
    %2506 = vmatprep.mubr.bf16.mxu0 0
    %2507 = vmatmul.mubr.bf16.gmra.mrb[0].mxu0 %v2431
    %v2508 = vpop.f32.mrb[0].mxu0
    %v2509 = vadd.f32 0.0, %v2508
    %v2510 = vpop.f32.mrb[0].mxu0
    %v2511 = vadd.f32 0.0, %v2510
    %v2512 = vpop.f32.mrb[0].mxu0
    %v2513 = vpop.f32.mrb[0].mxu0
    %2514 = vdwg.mxu0
    %v2519 = vrot.slane %v2468, 5
    %v2520 = vrot.slane %v2470, 5
    %v2521 = vrot.slane %v2509, 5
    %v2522 = vrot.slane %v2511, 5
    %v2523 = vrot.slane %v2468, 6
    %v2524 = vrot.slane %v2470, 6
    %v2525 = vrot.slane %v2509, 6
    %v2526 = vrot.slane %v2511, 6
    %v2527 = vrot.slane %v2468, 7
    %v2528 = vrot.slane %v2470, 7
    %v2529 = vrot.slane %v2509, 7
    %v2530 = vrot.slane %v2511, 7
    %v2547 = vadd.f32 %v599, %v2519
    %v2548 = vadd.f32 %v601, %v2520
    %v2549 = vadd.f32 %v652, %v2521
    %v2550 = vadd.f32 %v654, %v2522
    %v2551 = vadd.f32 %v603, %v2523
    %v2552 = vadd.f32 %v605, %v2524
    %v2553 = vadd.f32 %v656, %v2525
    %v2554 = vadd.f32 %v658, %v2526
    %v2555 = vadd.f32 %v609, %v2527
    %v2556 = vadd.f32 %v611, %v2528
    %v2557 = vadd.f32 %v662, %v2529
    %v2558 = vadd.f32 %v664, %v2530
    %v2559 = vadd.f32 %v613, %v2468
    %v2560 = vadd.f32 %v615, %v2470
    %v2561 = vadd.f32 %v666, %v2509
    %v2562 = vadd.f32 %v668, %v2511
    %v2563 = vxor.u32 %v2547, 2147483648
    %v2564 = vxor.u32 %v2551, 2147483648
    %v2565 = vxor.u32 %v2555, 2147483648
    %v2566 = vxor.u32 %v2559, 2147483648
    %v2567 = vmul.f32 %v2563, 1.442695
    %v2568 = vpow.pop %v2567
    %v2569 = vmul.f32 %v2564, 1.442695
    %v2570 = vpow.pop %v2569
    %v2571 = vmul.f32 %v2565, 1.442695
    %v2572 = vpow.pop %v2571
    %v2573 = vmul.f32 %v2566, 1.442695
    %v2574 = vpow.pop %v2573
    %v2575 = vadd.f32 %v2568, 1.0
    %v2576 = vadd.f32 %v2570, 1.0
    %v2577 = vadd.f32 %v2572, 1.0
    %v2578 = vadd.f32 %v2574, 1.0
    %v2579 = vrcp.pop %v2575
    %v2580 = vmul.f32 1.0, %v2579
    %v2581 = vrcp.pop %v2576
    %v2582 = vmul.f32 1.0, %v2581
    %v2583 = vrcp.pop %v2577
    %v2584 = vmul.f32 1.0, %v2583
    %v2585 = vrcp.pop %v2578
    %v2586 = vmul.f32 1.0, %v2585
    %v2587 = vxor.u32 %v2548, 2147483648
    %v2588 = vxor.u32 %v2552, 2147483648
    %v2589 = vxor.u32 %v2556, 2147483648
    %v2590 = vxor.u32 %v2560, 2147483648
    %v2591 = vmul.f32 %v2587, 1.442695
    %v2592 = vpow.pop %v2591
    %v2593 = vmul.f32 %v2588, 1.442695
    %v2594 = vpow.pop %v2593
    %v2595 = vmul.f32 %v2589, 1.442695
    %v2596 = vpow.pop %v2595
    %v2597 = vmul.f32 %v2590, 1.442695
    %v2598 = vpow.pop %v2597
    %v2599 = vadd.f32 %v2592, 1.0
    %v2600 = vadd.f32 %v2594, 1.0
    %v2601 = vadd.f32 %v2596, 1.0
    %v2602 = vadd.f32 %v2598, 1.0
    %v2603 = vrcp.pop %v2599
    %v2604 = vmul.f32 1.0, %v2603
    %v2605 = vrcp.pop %v2600
    %v2606 = vmul.f32 1.0, %v2605
    %v2607 = vrcp.pop %v2601
    %v2608 = vmul.f32 1.0, %v2607
    %v2609 = vrcp.pop %v2602
    %v2610 = vmul.f32 1.0, %v2609
    %v2611 = vtanh.pop %v2549
    %v2612 = vtanh.pop %v2553
    %v2613 = vtanh.pop %v2557
    %v2614 = vtanh.pop %v2561
    %v2615 = vxor.u32 %v2550, 2147483648
    %v2616 = vxor.u32 %v2554, 2147483648
    %v2617 = vxor.u32 %v2558, 2147483648
    %v2618 = vxor.u32 %v2562, 2147483648
    %v2619 = vmul.f32 %v2615, 1.442695
    %v2620 = vpow.pop %v2619
    %v2621 = vmul.f32 %v2616, 1.442695
    %v2622 = vpow.pop %v2621
    %v2623 = vmul.f32 %v2617, 1.442695
    %v2624 = vpow.pop %v2623
    %v2625 = vmul.f32 %v2618, 1.442695
    %v2626 = vpow.pop %v2625
    %v2627 = vadd.f32 %v2620, 1.0
    %v2628 = vadd.f32 %v2622, 1.0
    %v2629 = vadd.f32 %v2624, 1.0
    %v2630 = vadd.f32 %v2626, 1.0
    %v2631 = vrcp.pop %v2627
    %v2632 = vmul.f32 1.0, %v2631
    %v2633 = vrcp.pop %v2628
    %v2634 = vmul.f32 1.0, %v2633
    %v2635 = vrcp.pop %v2629
    %v2636 = vmul.f32 1.0, %v2635
    %v2637 = vrcp.pop %v2630
    %v2638 = vmul.f32 1.0, %v2637
    %v2643 = vrot.slane %v2272, 7
    %v2644 = vrot.slane %v2273, 7
    %v2645 = vrot.slane %v2274, 7
    %v2646 = vrot.slane %v2275, 7
    %v2651 = vmul.f32 %v2604, %v2643
    %v2652 = vmul.f32 %v2606, %v2644
    %v2653 = vmul.f32 %v2608, %v2645
    %v2654 = vmul.f32 %v2610, %v2646
    %v2655 = vmul.f32 %v2580, %v2611
    %v2656 = vmul.f32 %v2582, %v2612
    %v2657 = vmul.f32 %v2584, %v2613
    %v2658 = vmul.f32 %v2586, %v2614
    %v2659 = vadd.f32 %v2651, %v2655
    %v2660 = vadd.f32 %v2652, %v2656
    %v2661 = vadd.f32 %v2653, %v2657
    %v2662 = vadd.f32 %v2654, %v2658
    %v2663 = vtanh.pop %v2659
    %v2664 = vtanh.pop %v2660
    %v2665 = vtanh.pop %v2661
    %v2666 = vtanh.pop %v2662
    %v2667 = vmul.f32 %v2632, %v2663
    %v2668 = vmul.f32 %v2634, %v2664
    %v2669 = vmul.f32 %v2636, %v2665
    %v2670 = vmul.f32 %v2638, %v2666
    %v2675 = vrot.slane %v2668, 7
    %v2676 = vsel %vm1896, %v2675, %v2667
    %v2677 = vrot.slane %v2669, 6
    %v2678 = vsel %vm2293, %v2677, %v2676
    %v2679 = vrot.slane %v2670, 5
    %vm2680 = vcmask 1046534
    %v2681 = vsel %vm2680, %v2679, %v2678
    %v2684 = vrot.slane %v2412, 5
    %v2686 = vpack.c.bf16 %v2681, %v2681
    %v2687 = vpack.c.bf16 %v2684, %v2684
    %v2689 = vshrl.u32 %v2686, 16
    %v2691 = vrot.slane %v2689, 1
    %v2692 = vshll.u32 %v2686, 16
    %v2694 = vrot.slane %v2692, 2
    %v2695 = vor.u32 %v2691, %v2694
    %v2697 = vshrl.u32 %v2687, 16
    %v2699 = vrot.slane %v2697, 1
    %v2700 = vshll.u32 %v2687, 16
    %v2702 = vrot.slane %v2700, 2
    %v2703 = vor.u32 %v2699, %v2702
    %2706 = vmatprep.subr.bf16.mxu0 %v1396
    %2707 = vmatpush1.bf16.msra.mxu0 %v1395
    %2708 = vmatprep.subr.bf16.mxu0 %v1400
    %2709 = vmatpush1.bf16.msra.mxu0 %v1399
    %2710 = vmatprep.subr.bf16.mxu0 %v1404
    %2711 = vmatpush1.bf16.msra.mxu0 %v1403
    %2712 = vmatprep.subr.bf16.mxu0 %v1408
    %2713 = vmatpush1.bf16.msra.mxu0 %v1407
    %2714 = vmatprep.subr.bf16.mxu0 %v1412
    %2715 = vmatpush1.bf16.msra.mxu0 %v1411
    %2716 = vmatprep.subr.bf16.mxu0 %v1416
    %2717 = vmatpush1.bf16.msra.mxu0 %v1415
    %2718 = vmatprep.subr.bf16.mxu0 %v1420
    %2719 = vmatpush1.bf16.msra.mxu0 %v1419
    %2720 = vmatprep.subr.bf16.mxu0 %v1424
    %2721 = vmatpush1.bf16.msra.mxu0 %v1423
    %2722 = vmatprep.subr.bf16.mxu0 %v1428
    %2723 = vmatpush1.bf16.msra.mxu0 %v1427
    %2724 = vmatprep.subr.bf16.mxu0 %v1432
    %2725 = vmatpush1.bf16.msra.mxu0 %v1431
    %2726 = vmatprep.subr.bf16.mxu0 %v1436
    %2727 = vmatpush1.bf16.msra.mxu0 %v1435
    %2728 = vmatprep.subr.bf16.mxu0 %v1440
    %2729 = vmatpush1.bf16.msra.mxu0 %v1439
    %2730 = vmatprep.subr.bf16.mxu0 %v1444
    %2731 = vmatpush1.bf16.msra.mxu0 %v1443
    %2732 = vmatprep.subr.bf16.mxu0 %v1448
    %2733 = vmatpush1.bf16.msra.mxu0 %v1447
    %2734 = vmatprep.subr.bf16.mxu0 %v1452
    %2735 = vmatpush1.bf16.msra.mxu0 %v1451
    %2736 = vmatprep.subr.bf16.mxu0 %v1456
    %2737 = vmatpush1.bf16.msra.mxu0 %v1455
    %2738 = vmatprep.mubr.bf16.mxu0 %v2703
    %2739 = vmatmul.mubr.bf16.gmra.mrb[0].mxu0 %v2695
    %v2740 = vpop.f32.mrb[0].mxu0
    %v2741 = vadd.f32 %v1186, %v2740
    %v2742 = vpop.f32.mrb[0].mxu0
    %v2743 = vadd.f32 %v1190, %v2742
    %v2744 = vpop.f32.mrb[0].mxu0
    %v2745 = vpop.f32.mrb[0].mxu0
    %2746 = vdwg.mxu0
    %2747 = vmatprep.subr.bf16.mxu0 %v1398
    %2748 = vmatpush1.bf16.msra.mxu0 %v1397
    %2749 = vmatprep.subr.bf16.mxu0 %v1402
    %2750 = vmatpush1.bf16.msra.mxu0 %v1401
    %2751 = vmatprep.subr.bf16.mxu0 %v1406
    %2752 = vmatpush1.bf16.msra.mxu0 %v1405
    %2753 = vmatprep.subr.bf16.mxu0 %v1410
    %2754 = vmatpush1.bf16.msra.mxu0 %v1409
    %2755 = vmatprep.subr.bf16.mxu0 %v1414
    %2756 = vmatpush1.bf16.msra.mxu0 %v1413
    %2757 = vmatprep.subr.bf16.mxu0 %v1418
    %2758 = vmatpush1.bf16.msra.mxu0 %v1417
    %2759 = vmatprep.subr.bf16.mxu0 %v1422
    %2760 = vmatpush1.bf16.msra.mxu0 %v1421
    %2761 = vmatprep.subr.bf16.mxu0 %v1426
    %2762 = vmatpush1.bf16.msra.mxu0 %v1425
    %2763 = vmatprep.subr.bf16.mxu0 %v1430
    %2764 = vmatpush1.bf16.msra.mxu0 %v1429
    %2765 = vmatprep.subr.bf16.mxu0 %v1434
    %2766 = vmatpush1.bf16.msra.mxu0 %v1433
    %2767 = vmatprep.subr.bf16.mxu0 %v1438
    %2768 = vmatpush1.bf16.msra.mxu0 %v1437
    %2769 = vmatprep.subr.bf16.mxu0 %v1442
    %2770 = vmatpush1.bf16.msra.mxu0 %v1441
    %2771 = vmatprep.subr.bf16.mxu0 %v1446
    %2772 = vmatpush1.bf16.msra.mxu0 %v1445
    %2773 = vmatprep.subr.bf16.mxu0 %v1450
    %2774 = vmatpush1.bf16.msra.mxu0 %v1449
    %2775 = vmatprep.subr.bf16.mxu0 %v1454
    %2776 = vmatpush1.bf16.msra.mxu0 %v1453
    %2777 = vmatprep.subr.bf16.mxu0 %v1458
    %2778 = vmatpush1.bf16.msra.mxu0 %v1457
    %2779 = vmatprep.mubr.bf16.mxu0 %v2703
    %2780 = vmatmul.mubr.bf16.gmra.mrb[0].mxu0 %v2695
    %v2781 = vpop.f32.mrb[0].mxu0
    %v2782 = vadd.f32 %v1194, %v2781
    %v2783 = vpop.f32.mrb[0].mxu0
    %v2784 = vadd.f32 %v1198, %v2783
    %v2785 = vpop.f32.mrb[0].mxu0
    %v2786 = vpop.f32.mrb[0].mxu0
    %2787 = vdwg.mxu0
    %v2788 = vxor.u32 %v2741, 2147483648
    %v2789 = vmul.f32 %v2788, 1.442695
    %v2790 = vpow.pop %v2789
    %v2791 = vadd.f32 %v2790, 1.0
    %v2792 = vrcp.pop %v2791
    %v2793 = vmul.f32 1.0, %v2792
    %v2794 = vxor.u32 %v2743, 2147483648
    %v2795 = vmul.f32 %v2794, 1.442695
    %v2796 = vpow.pop %v2795
    %v2797 = vadd.f32 %v2796, 1.0
    %v2798 = vrcp.pop %v2797
    %v2799 = vmul.f32 1.0, %v2798
    %v2800 = vtanh.pop %v2782
    %v2801 = vxor.u32 %v2784, 2147483648
    %v2802 = vmul.f32 %v2801, 1.442695
    %v2803 = vpow.pop %v2802
    %v2804 = vadd.f32 %v2803, 1.0
    %v2805 = vrcp.pop %v2804
    %v2806 = vmul.f32 1.0, %v2805
    %v2807 = vmul.f32 %v2799, %v2410
    %v2808 = vmul.f32 %v2793, %v2800
    %v2809 = vadd.f32 %v2807, %v2808
    %v2810 = vtanh.pop %v2809
    %v2811 = vmul.f32 %v2806, %v2810
    %v2812 = vpack.c.bf16 %v2667, %v2667
    %v2813 = vpack.c.bf16 %v2668, %v2668
    %v2814 = vpack.c.bf16 %v2669, %v2669
    %v2815 = vpack.c.bf16 %v2670, %v2670
    %v2820 = vunpack.c.l.b16 %v2812
    %v2821 = vunpack.c.l.b16 %v2813
    %v2822 = vunpack.c.l.b16 %v2814
    %v2823 = vunpack.c.l.b16 %v2815
    %v2824 = vrot.slane %v2820, 3
    %v2825 = vrot.slane %v2821, 2
    %v2826 = vsel %vm1171, %v2825, %v2824
    %v2827 = vrot.slane %v2822, 1
    %v2828 = vsel %vm1174, %v2827, %v2826
    %v2829 = vsel %vm1177, %v2823, %v2828
    %v2830 = vpack.c.b16 %v2829, %v2829
    %2832 = vmatprep.subr.bf16.mxu0 %v869
    %2833 = vmatpush1.bf16.msra.mxu0 %v868
    %2834 = vmatprep.subr.bf16.mxu0 %v873
    %2835 = vmatpush1.bf16.msra.mxu0 %v872
    %2836 = vmatprep.subr.bf16.mxu0 %v877
    %2837 = vmatpush1.bf16.msra.mxu0 %v876
    %2838 = vmatprep.subr.bf16.mxu0 %v881
    %2839 = vmatpush1.bf16.msra.mxu0 %v880
    %2840 = vmatprep.subr.bf16.mxu0 %v885
    %2841 = vmatpush1.bf16.msra.mxu0 %v884
    %2842 = vmatprep.subr.bf16.mxu0 %v889
    %2843 = vmatpush1.bf16.msra.mxu0 %v888
    %2844 = vmatprep.subr.bf16.mxu0 %v893
    %2845 = vmatpush1.bf16.msra.mxu0 %v892
    %2846 = vmatprep.subr.bf16.mxu0 %v897
    %2847 = vmatpush1.bf16.msra.mxu0 %v896
    %2848 = vmatprep.subr.bf16.mxu0 0
    %2849 = vmatpush1.bf16.msra.mxu0 0
    %2850 = vmatprep.subr.bf16.mxu0 0
    %2851 = vmatpush1.bf16.msra.mxu0 0
    %2852 = vmatprep.subr.bf16.mxu0 0
    %2853 = vmatpush1.bf16.msra.mxu0 0
    %2854 = vmatprep.subr.bf16.mxu0 0
    %2855 = vmatpush1.bf16.msra.mxu0 0
    %2856 = vmatprep.subr.bf16.mxu0 0
    %2857 = vmatpush1.bf16.msra.mxu0 0
    %2858 = vmatprep.subr.bf16.mxu0 0
    %2859 = vmatpush1.bf16.msra.mxu0 0
    %2860 = vmatprep.subr.bf16.mxu0 0
    %2861 = vmatpush1.bf16.msra.mxu0 0
    %2862 = vmatprep.subr.bf16.mxu0 0
    %2863 = vmatpush1.bf16.msra.mxu0 0
    %2864 = vmatprep.mubr.bf16.mxu0 0
    %2865 = vmatmul.mubr.bf16.gmra.mrb[0].mxu0 %v2830
    %v2866 = vpop.f32.mrb[0].mxu0
    %v2867 = vadd.f32 0.0, %v2866
    %v2868 = vpop.f32.mrb[0].mxu0
    %v2869 = vadd.f32 0.0, %v2868
    %v2870 = vpop.f32.mrb[0].mxu0
    %v2871 = vpop.f32.mrb[0].mxu0
    %2872 = vdwg.mxu0
    %2873 = vmatprep.subr.bf16.mxu0 %v871
    %2874 = vmatpush1.bf16.msra.mxu0 %v870
    %2875 = vmatprep.subr.bf16.mxu0 %v875
    %2876 = vmatpush1.bf16.msra.mxu0 %v874
    %2877 = vmatprep.subr.bf16.mxu0 %v879
    %2878 = vmatpush1.bf16.msra.mxu0 %v878
    %2879 = vmatprep.subr.bf16.mxu0 %v883
    %2880 = vmatpush1.bf16.msra.mxu0 %v882
    %2881 = vmatprep.subr.bf16.mxu0 %v887
    %2882 = vmatpush1.bf16.msra.mxu0 %v886
    %2883 = vmatprep.subr.bf16.mxu0 %v891
    %2884 = vmatpush1.bf16.msra.mxu0 %v890
    %2885 = vmatprep.subr.bf16.mxu0 %v895
    %2886 = vmatpush1.bf16.msra.mxu0 %v894
    %2887 = vmatprep.subr.bf16.mxu0 %v899
    %2888 = vmatpush1.bf16.msra.mxu0 %v898
    %2889 = vmatprep.subr.bf16.mxu0 0
    %2890 = vmatpush1.bf16.msra.mxu0 0
    %2891 = vmatprep.subr.bf16.mxu0 0
    %2892 = vmatpush1.bf16.msra.mxu0 0
    %2893 = vmatprep.subr.bf16.mxu0 0
    %2894 = vmatpush1.bf16.msra.mxu0 0
    %2895 = vmatprep.subr.bf16.mxu0 0
    %2896 = vmatpush1.bf16.msra.mxu0 0
    %2897 = vmatprep.subr.bf16.mxu0 0
    %2898 = vmatpush1.bf16.msra.mxu0 0
    %2899 = vmatprep.subr.bf16.mxu0 0
    %2900 = vmatpush1.bf16.msra.mxu0 0
    %2901 = vmatprep.subr.bf16.mxu0 0
    %2902 = vmatpush1.bf16.msra.mxu0 0
    %2903 = vmatprep.subr.bf16.mxu0 0
    %2904 = vmatpush1.bf16.msra.mxu0 0
    %2905 = vmatprep.mubr.bf16.mxu0 0
    %2906 = vmatmul.mubr.bf16.gmra.mrb[0].mxu0 %v2830
    %v2907 = vpop.f32.mrb[0].mxu0
    %v2908 = vadd.f32 0.0, %v2907
    %v2909 = vpop.f32.mrb[0].mxu0
    %v2910 = vadd.f32 0.0, %v2909
    %v2911 = vpop.f32.mrb[0].mxu0
    %v2912 = vpop.f32.mrb[0].mxu0
    %2913 = vdwg.mxu0
    %v2918 = vrot.slane %v2867, 4
    %v2919 = vrot.slane %v2869, 4
    %v2920 = vrot.slane %v2908, 4
    %v2921 = vrot.slane %v2910, 4
    %v2922 = vrot.slane %v2867, 5
    %v2923 = vrot.slane %v2869, 5
    %v2924 = vrot.slane %v2908, 5
    %v2925 = vrot.slane %v2910, 5
    %v2926 = vrot.slane %v2867, 6
    %v2927 = vrot.slane %v2869, 6
    %v2928 = vrot.slane %v2908, 6
    %v2929 = vrot.slane %v2910, 6
    %v2930 = vrot.slane %v2867, 7
    %v2931 = vrot.slane %v2869, 7
    %v2932 = vrot.slane %v2908, 7
    %v2933 = vrot.slane %v2910, 7
    %v2950 = vadd.f32 %v599, %v2918
    %v2951 = vadd.f32 %v601, %v2919
    %v2952 = vadd.f32 %v652, %v2920
    %v2953 = vadd.f32 %v654, %v2921
    %v2954 = vadd.f32 %v603, %v2922
    %v2955 = vadd.f32 %v605, %v2923
    %v2956 = vadd.f32 %v656, %v2924
    %v2957 = vadd.f32 %v658, %v2925
    %v2958 = vadd.f32 %v609, %v2926
    %v2959 = vadd.f32 %v611, %v2927
    %v2960 = vadd.f32 %v662, %v2928
    %v2961 = vadd.f32 %v664, %v2929
    %v2962 = vadd.f32 %v613, %v2930
    %v2963 = vadd.f32 %v615, %v2931
    %v2964 = vadd.f32 %v666, %v2932
    %v2965 = vadd.f32 %v668, %v2933
    %v2966 = vxor.u32 %v2950, 2147483648
    %v2967 = vxor.u32 %v2954, 2147483648
    %v2968 = vxor.u32 %v2958, 2147483648
    %v2969 = vxor.u32 %v2962, 2147483648
    %v2970 = vmul.f32 %v2966, 1.442695
    %v2971 = vpow.pop %v2970
    %v2972 = vmul.f32 %v2967, 1.442695
    %v2973 = vpow.pop %v2972
    %v2974 = vmul.f32 %v2968, 1.442695
    %v2975 = vpow.pop %v2974
    %v2976 = vmul.f32 %v2969, 1.442695
    %v2977 = vpow.pop %v2976
    %v2978 = vadd.f32 %v2971, 1.0
    %v2979 = vadd.f32 %v2973, 1.0
    %v2980 = vadd.f32 %v2975, 1.0
    %v2981 = vadd.f32 %v2977, 1.0
    %v2982 = vrcp.pop %v2978
    %v2983 = vmul.f32 1.0, %v2982
    %v2984 = vrcp.pop %v2979
    %v2985 = vmul.f32 1.0, %v2984
    %v2986 = vrcp.pop %v2980
    %v2987 = vmul.f32 1.0, %v2986
    %v2988 = vrcp.pop %v2981
    %v2989 = vmul.f32 1.0, %v2988
    %v2990 = vxor.u32 %v2951, 2147483648
    %v2991 = vxor.u32 %v2955, 2147483648
    %v2992 = vxor.u32 %v2959, 2147483648
    %v2993 = vxor.u32 %v2963, 2147483648
    %v2994 = vmul.f32 %v2990, 1.442695
    %v2995 = vpow.pop %v2994
    %v2996 = vmul.f32 %v2991, 1.442695
    %v2997 = vpow.pop %v2996
    %v2998 = vmul.f32 %v2992, 1.442695
    %v2999 = vpow.pop %v2998
    %v3000 = vmul.f32 %v2993, 1.442695
    %v3001 = vpow.pop %v3000
    %v3002 = vadd.f32 %v2995, 1.0
    %v3003 = vadd.f32 %v2997, 1.0
    %v3004 = vadd.f32 %v2999, 1.0
    %v3005 = vadd.f32 %v3001, 1.0
    %v3006 = vrcp.pop %v3002
    %v3007 = vmul.f32 1.0, %v3006
    %v3008 = vrcp.pop %v3003
    %v3009 = vmul.f32 1.0, %v3008
    %v3010 = vrcp.pop %v3004
    %v3011 = vmul.f32 1.0, %v3010
    %v3012 = vrcp.pop %v3005
    %v3013 = vmul.f32 1.0, %v3012
    %v3014 = vtanh.pop %v2952
    %v3015 = vtanh.pop %v2956
    %v3016 = vtanh.pop %v2960
    %v3017 = vtanh.pop %v2964
    %v3018 = vxor.u32 %v2953, 2147483648
    %v3019 = vxor.u32 %v2957, 2147483648
    %v3020 = vxor.u32 %v2961, 2147483648
    %v3021 = vxor.u32 %v2965, 2147483648
    %v3022 = vmul.f32 %v3018, 1.442695
    %v3023 = vpow.pop %v3022
    %v3024 = vmul.f32 %v3019, 1.442695
    %v3025 = vpow.pop %v3024
    %v3026 = vmul.f32 %v3020, 1.442695
    %v3027 = vpow.pop %v3026
    %v3028 = vmul.f32 %v3021, 1.442695
    %v3029 = vpow.pop %v3028
    %v3030 = vadd.f32 %v3023, 1.0
    %v3031 = vadd.f32 %v3025, 1.0
    %v3032 = vadd.f32 %v3027, 1.0
    %v3033 = vadd.f32 %v3029, 1.0
    %v3034 = vrcp.pop %v3030
    %v3035 = vmul.f32 1.0, %v3034
    %v3036 = vrcp.pop %v3031
    %v3037 = vmul.f32 1.0, %v3036
    %v3038 = vrcp.pop %v3032
    %v3039 = vmul.f32 1.0, %v3038
    %v3040 = vrcp.pop %v3033
    %v3041 = vmul.f32 1.0, %v3040
    %v3046 = vrot.slane %v2659, 7
    %v3047 = vrot.slane %v2660, 7
    %v3048 = vrot.slane %v2661, 7
    %v3049 = vrot.slane %v2662, 7
    %v3054 = vmul.f32 %v3007, %v3046
    %v3055 = vmul.f32 %v3009, %v3047
    %v3056 = vmul.f32 %v3011, %v3048
    %v3057 = vmul.f32 %v3013, %v3049
    %v3058 = vmul.f32 %v2983, %v3014
    %v3059 = vmul.f32 %v2985, %v3015
    %v3060 = vmul.f32 %v2987, %v3016
    %v3061 = vmul.f32 %v2989, %v3017
    %v3062 = vadd.f32 %v3054, %v3058
    %v3063 = vadd.f32 %v3055, %v3059
    %v3064 = vadd.f32 %v3056, %v3060
    %v3065 = vadd.f32 %v3057, %v3061
    %v3066 = vtanh.pop %v3062
    %v3067 = vtanh.pop %v3063
    %v3068 = vtanh.pop %v3064
    %v3069 = vtanh.pop %v3065
    %v3070 = vmul.f32 %v3035, %v3066
    %v3071 = vmul.f32 %v3037, %v3067
    %v3072 = vmul.f32 %v3039, %v3068
    %v3073 = vmul.f32 %v3041, %v3069
    %v3078 = vrot.slane %v3071, 7
    %v3079 = vsel %vm2293, %v3078, %v3070
    %v3080 = vrot.slane %v3072, 6
    %v3081 = vsel %vm2680, %v3080, %v3079
    %v3082 = vrot.slane %v3073, 5
    %vm3083 = vcmask 1047559
    %v3084 = vsel %vm3083, %v3082, %v3081
    %v3087 = vrot.slane %v2811, 4
    %v3089 = vpack.c.bf16 %v3084, %v3084
    %v3090 = vpack.c.bf16 %v3087, %v3087
    %v3093 = vrot.slane %v3089, 2
    %v3094 = vrot.slane %v3090, 2
    %3097 = vmatprep.subr.bf16.mxu0 %v1396
    %3098 = vmatpush1.bf16.msra.mxu0 %v1395
    %3099 = vmatprep.subr.bf16.mxu0 %v1400
    %3100 = vmatpush1.bf16.msra.mxu0 %v1399
    %3101 = vmatprep.subr.bf16.mxu0 %v1404
    %3102 = vmatpush1.bf16.msra.mxu0 %v1403
    %3103 = vmatprep.subr.bf16.mxu0 %v1408
    %3104 = vmatpush1.bf16.msra.mxu0 %v1407
    %3105 = vmatprep.subr.bf16.mxu0 %v1412
    %3106 = vmatpush1.bf16.msra.mxu0 %v1411
    %3107 = vmatprep.subr.bf16.mxu0 %v1416
    %3108 = vmatpush1.bf16.msra.mxu0 %v1415
    %3109 = vmatprep.subr.bf16.mxu0 %v1420
    %3110 = vmatpush1.bf16.msra.mxu0 %v1419
    %3111 = vmatprep.subr.bf16.mxu0 %v1424
    %3112 = vmatpush1.bf16.msra.mxu0 %v1423
    %3113 = vmatprep.subr.bf16.mxu0 %v1428
    %3114 = vmatpush1.bf16.msra.mxu0 %v1427
    %3115 = vmatprep.subr.bf16.mxu0 %v1432
    %3116 = vmatpush1.bf16.msra.mxu0 %v1431
    %3117 = vmatprep.subr.bf16.mxu0 %v1436
    %3118 = vmatpush1.bf16.msra.mxu0 %v1435
    %3119 = vmatprep.subr.bf16.mxu0 %v1440
    %3120 = vmatpush1.bf16.msra.mxu0 %v1439
    %3121 = vmatprep.subr.bf16.mxu0 %v1444
    %3122 = vmatpush1.bf16.msra.mxu0 %v1443
    %3123 = vmatprep.subr.bf16.mxu0 %v1448
    %3124 = vmatpush1.bf16.msra.mxu0 %v1447
    %3125 = vmatprep.subr.bf16.mxu0 %v1452
    %3126 = vmatpush1.bf16.msra.mxu0 %v1451
    %3127 = vmatprep.subr.bf16.mxu0 %v1456
    %3128 = vmatpush1.bf16.msra.mxu0 %v1455
    %3129 = vmatprep.mubr.bf16.mxu0 %v3094
    %3130 = vmatmul.mubr.bf16.gmra.mrb[0].mxu0 %v3093
    %v3131 = vpop.f32.mrb[0].mxu0
    %v3132 = vadd.f32 %v1186, %v3131
    %v3133 = vpop.f32.mrb[0].mxu0
    %v3134 = vadd.f32 %v1190, %v3133
    %v3135 = vpop.f32.mrb[0].mxu0
    %v3136 = vpop.f32.mrb[0].mxu0
    %3137 = vdwg.mxu0
    %3138 = vmatprep.subr.bf16.mxu0 %v1398
    %3139 = vmatpush1.bf16.msra.mxu0 %v1397
    %3140 = vmatprep.subr.bf16.mxu0 %v1402
    %3141 = vmatpush1.bf16.msra.mxu0 %v1401
    %3142 = vmatprep.subr.bf16.mxu0 %v1406
    %3143 = vmatpush1.bf16.msra.mxu0 %v1405
    %3144 = vmatprep.subr.bf16.mxu0 %v1410
    %3145 = vmatpush1.bf16.msra.mxu0 %v1409
    %3146 = vmatprep.subr.bf16.mxu0 %v1414
    %3147 = vmatpush1.bf16.msra.mxu0 %v1413
    %3148 = vmatprep.subr.bf16.mxu0 %v1418
    %3149 = vmatpush1.bf16.msra.mxu0 %v1417
    %3150 = vmatprep.subr.bf16.mxu0 %v1422
    %3151 = vmatpush1.bf16.msra.mxu0 %v1421
    %3152 = vmatprep.subr.bf16.mxu0 %v1426
    %3153 = vmatpush1.bf16.msra.mxu0 %v1425
    %3154 = vmatprep.subr.bf16.mxu0 %v1430
    %3155 = vmatpush1.bf16.msra.mxu0 %v1429
    %3156 = vmatprep.subr.bf16.mxu0 %v1434
    %3157 = vmatpush1.bf16.msra.mxu0 %v1433
    %3158 = vmatprep.subr.bf16.mxu0 %v1438
    %3159 = vmatpush1.bf16.msra.mxu0 %v1437
    %3160 = vmatprep.subr.bf16.mxu0 %v1442
    %3161 = vmatpush1.bf16.msra.mxu0 %v1441
    %3162 = vmatprep.subr.bf16.mxu0 %v1446
    %3163 = vmatpush1.bf16.msra.mxu0 %v1445
    %3164 = vmatprep.subr.bf16.mxu0 %v1450
    %3165 = vmatpush1.bf16.msra.mxu0 %v1449
    %3166 = vmatprep.subr.bf16.mxu0 %v1454
    %3167 = vmatpush1.bf16.msra.mxu0 %v1453
    %3168 = vmatprep.subr.bf16.mxu0 %v1458
    %3169 = vmatpush1.bf16.msra.mxu0 %v1457
    %3170 = vmatprep.mubr.bf16.mxu0 %v3094
    %3171 = vmatmul.mubr.bf16.gmra.mrb[0].mxu0 %v3093
    %v3172 = vpop.f32.mrb[0].mxu0
    %v3173 = vadd.f32 %v1194, %v3172
    %v3174 = vpop.f32.mrb[0].mxu0
    %v3175 = vadd.f32 %v1198, %v3174
    %v3176 = vpop.f32.mrb[0].mxu0
    %v3177 = vpop.f32.mrb[0].mxu0
    %3178 = vdwg.mxu0
    %v3179 = vxor.u32 %v3132, 2147483648
    %v3180 = vmul.f32 %v3179, 1.442695
    %v3181 = vpow.pop %v3180
    %v3182 = vadd.f32 %v3181, 1.0
    %v3183 = vrcp.pop %v3182
    %v3184 = vmul.f32 1.0, %v3183
    %v3185 = vxor.u32 %v3134, 2147483648
    %v3186 = vmul.f32 %v3185, 1.442695
    %v3187 = vpow.pop %v3186
    %v3188 = vadd.f32 %v3187, 1.0
    %v3189 = vrcp.pop %v3188
    %v3190 = vmul.f32 1.0, %v3189
    %v3191 = vtanh.pop %v3173
    %v3192 = vxor.u32 %v3175, 2147483648
    %v3193 = vmul.f32 %v3192, 1.442695
    %v3194 = vpow.pop %v3193
    %v3195 = vadd.f32 %v3194, 1.0
    %v3196 = vrcp.pop %v3195
    %v3197 = vmul.f32 1.0, %v3196
    %v3198 = vmul.f32 %v3190, %v2809
    %v3199 = vmul.f32 %v3184, %v3191
    %v3200 = vadd.f32 %v3198, %v3199
    %v3201 = vtanh.pop %v3200
    %v3202 = vmul.f32 %v3197, %v3201
    %v3203 = vpack.c.bf16 %v3070, %v3070
    %v3204 = vpack.c.bf16 %v3071, %v3071
    %v3205 = vpack.c.bf16 %v3072, %v3072
    %v3206 = vpack.c.bf16 %v3073, %v3073
    %v3211 = vunpack.c.l.b16 %v3203
    %v3212 = vunpack.c.l.b16 %v3204
    %v3213 = vunpack.c.l.b16 %v3205
    %v3214 = vunpack.c.l.b16 %v3206
    %v3215 = vrot.slane %v3211, 4
    %v3216 = vrot.slane %v3212, 3
    %v3217 = vsel %vm1171, %v3216, %v3215
    %v3218 = vrot.slane %v3213, 2
    %v3219 = vsel %vm1174, %v3218, %v3217
    %v3220 = vrot.slane %v3214, 1
    %v3221 = vsel %vm1177, %v3220, %v3219
    %v3222 = vpack.c.b16 %v3221, %v3221
    %3224 = vmatprep.subr.bf16.mxu0 %v869
    %3225 = vmatpush1.bf16.msra.mxu0 %v868
    %3226 = vmatprep.subr.bf16.mxu0 %v873
    %3227 = vmatpush1.bf16.msra.mxu0 %v872
    %3228 = vmatprep.subr.bf16.mxu0 %v877
    %3229 = vmatpush1.bf16.msra.mxu0 %v876
    %3230 = vmatprep.subr.bf16.mxu0 %v881
    %3231 = vmatpush1.bf16.msra.mxu0 %v880
    %3232 = vmatprep.subr.bf16.mxu0 %v885
    %3233 = vmatpush1.bf16.msra.mxu0 %v884
    %3234 = vmatprep.subr.bf16.mxu0 %v889
    %3235 = vmatpush1.bf16.msra.mxu0 %v888
    %3236 = vmatprep.subr.bf16.mxu0 %v893
    %3237 = vmatpush1.bf16.msra.mxu0 %v892
    %3238 = vmatprep.subr.bf16.mxu0 %v897
    %3239 = vmatpush1.bf16.msra.mxu0 %v896
    %3240 = vmatprep.subr.bf16.mxu0 0
    %3241 = vmatpush1.bf16.msra.mxu0 0
    %3242 = vmatprep.subr.bf16.mxu0 0
    %3243 = vmatpush1.bf16.msra.mxu0 0
    %3244 = vmatprep.subr.bf16.mxu0 0
    %3245 = vmatpush1.bf16.msra.mxu0 0
    %3246 = vmatprep.subr.bf16.mxu0 0
    %3247 = vmatpush1.bf16.msra.mxu0 0
    %3248 = vmatprep.subr.bf16.mxu0 0
    %3249 = vmatpush1.bf16.msra.mxu0 0
    %3250 = vmatprep.subr.bf16.mxu0 0
    %3251 = vmatpush1.bf16.msra.mxu0 0
    %3252 = vmatprep.subr.bf16.mxu0 0
    %3253 = vmatpush1.bf16.msra.mxu0 0
    %3254 = vmatprep.subr.bf16.mxu0 0
    %3255 = vmatpush1.bf16.msra.mxu0 0
    %3256 = vmatprep.mubr.bf16.mxu0 0
    %3257 = vmatmul.mubr.bf16.gmra.mrb[0].mxu0 %v3222
    %v3258 = vpop.f32.mrb[0].mxu0
    %v3259 = vadd.f32 0.0, %v3258
    %v3260 = vpop.f32.mrb[0].mxu0
    %v3261 = vadd.f32 0.0, %v3260
    %v3262 = vpop.f32.mrb[0].mxu0
    %v3263 = vpop.f32.mrb[0].mxu0
    %3264 = vdwg.mxu0
    %3265 = vmatprep.subr.bf16.mxu0 %v871
    %3266 = vmatpush1.bf16.msra.mxu0 %v870
    %3267 = vmatprep.subr.bf16.mxu0 %v875
    %3268 = vmatpush1.bf16.msra.mxu0 %v874
    %3269 = vmatprep.subr.bf16.mxu0 %v879
    %3270 = vmatpush1.bf16.msra.mxu0 %v878
    %3271 = vmatprep.subr.bf16.mxu0 %v883
    %3272 = vmatpush1.bf16.msra.mxu0 %v882
    %3273 = vmatprep.subr.bf16.mxu0 %v887
    %3274 = vmatpush1.bf16.msra.mxu0 %v886
    %3275 = vmatprep.subr.bf16.mxu0 %v891
    %3276 = vmatpush1.bf16.msra.mxu0 %v890
    %3277 = vmatprep.subr.bf16.mxu0 %v895
    %3278 = vmatpush1.bf16.msra.mxu0 %v894
    %3279 = vmatprep.subr.bf16.mxu0 %v899
    %3280 = vmatpush1.bf16.msra.mxu0 %v898
    %3281 = vmatprep.subr.bf16.mxu0 0
    %3282 = vmatpush1.bf16.msra.mxu0 0
    %3283 = vmatprep.subr.bf16.mxu0 0
    %3284 = vmatpush1.bf16.msra.mxu0 0
    %3285 = vmatprep.subr.bf16.mxu0 0
    %3286 = vmatpush1.bf16.msra.mxu0 0
    %3287 = vmatprep.subr.bf16.mxu0 0
    %3288 = vmatpush1.bf16.msra.mxu0 0
    %3289 = vmatprep.subr.bf16.mxu0 0
    %3290 = vmatpush1.bf16.msra.mxu0 0
    %3291 = vmatprep.subr.bf16.mxu0 0
    %3292 = vmatpush1.bf16.msra.mxu0 0
    %3293 = vmatprep.subr.bf16.mxu0 0
    %3294 = vmatpush1.bf16.msra.mxu0 0
    %3295 = vmatprep.subr.bf16.mxu0 0
    %3296 = vmatpush1.bf16.msra.mxu0 0
    %3297 = vmatprep.mubr.bf16.mxu0 0
    %3298 = vmatmul.mubr.bf16.gmra.mrb[0].mxu0 %v3222
    %v3299 = vpop.f32.mrb[0].mxu0
    %v3300 = vadd.f32 0.0, %v3299
    %v3301 = vpop.f32.mrb[0].mxu0
    %v3302 = vadd.f32 0.0, %v3301
    %v3303 = vpop.f32.mrb[0].mxu0
    %v3304 = vpop.f32.mrb[0].mxu0
    %3305 = vdwg.mxu0
    %v3310 = vrot.slane %v3259, 3
    %v3311 = vrot.slane %v3261, 3
    %v3312 = vrot.slane %v3300, 3
    %v3313 = vrot.slane %v3302, 3
    %v3314 = vrot.slane %v3259, 4
    %v3315 = vrot.slane %v3261, 4
    %v3316 = vrot.slane %v3300, 4
    %v3317 = vrot.slane %v3302, 4
    %v3318 = vrot.slane %v3259, 5
    %v3319 = vrot.slane %v3261, 5
    %v3320 = vrot.slane %v3300, 5
    %v3321 = vrot.slane %v3302, 5
    %v3322 = vrot.slane %v3259, 6
    %v3323 = vrot.slane %v3261, 6
    %v3324 = vrot.slane %v3300, 6
    %v3325 = vrot.slane %v3302, 6
    %v3342 = vadd.f32 %v599, %v3310
    %v3343 = vadd.f32 %v601, %v3311
    %v3344 = vadd.f32 %v652, %v3312
    %v3345 = vadd.f32 %v654, %v3313
    %v3346 = vadd.f32 %v603, %v3314
    %v3347 = vadd.f32 %v605, %v3315
    %v3348 = vadd.f32 %v656, %v3316
    %v3349 = vadd.f32 %v658, %v3317
    %v3350 = vadd.f32 %v609, %v3318
    %v3351 = vadd.f32 %v611, %v3319
    %v3352 = vadd.f32 %v662, %v3320
    %v3353 = vadd.f32 %v664, %v3321
    %v3354 = vadd.f32 %v613, %v3322
    %v3355 = vadd.f32 %v615, %v3323
    %v3356 = vadd.f32 %v666, %v3324
    %v3357 = vadd.f32 %v668, %v3325
    %v3358 = vxor.u32 %v3342, 2147483648
    %v3359 = vxor.u32 %v3346, 2147483648
    %v3360 = vxor.u32 %v3350, 2147483648
    %v3361 = vxor.u32 %v3354, 2147483648
    %v3362 = vmul.f32 %v3358, 1.442695
    %v3363 = vpow.pop %v3362
    %v3364 = vmul.f32 %v3359, 1.442695
    %v3365 = vpow.pop %v3364
    %v3366 = vmul.f32 %v3360, 1.442695
    %v3367 = vpow.pop %v3366
    %v3368 = vmul.f32 %v3361, 1.442695
    %v3369 = vpow.pop %v3368
    %v3370 = vadd.f32 %v3363, 1.0
    %v3371 = vadd.f32 %v3365, 1.0
    %v3372 = vadd.f32 %v3367, 1.0
    %v3373 = vadd.f32 %v3369, 1.0
    %v3374 = vrcp.pop %v3370
    %v3375 = vmul.f32 1.0, %v3374
    %v3376 = vrcp.pop %v3371
    %v3377 = vmul.f32 1.0, %v3376
    %v3378 = vrcp.pop %v3372
    %v3379 = vmul.f32 1.0, %v3378
    %v3380 = vrcp.pop %v3373
    %v3381 = vmul.f32 1.0, %v3380
    %v3382 = vxor.u32 %v3343, 2147483648
    %v3383 = vxor.u32 %v3347, 2147483648
    %v3384 = vxor.u32 %v3351, 2147483648
    %v3385 = vxor.u32 %v3355, 2147483648
    %v3386 = vmul.f32 %v3382, 1.442695
    %v3387 = vpow.pop %v3386
    %v3388 = vmul.f32 %v3383, 1.442695
    %v3389 = vpow.pop %v3388
    %v3390 = vmul.f32 %v3384, 1.442695
    %v3391 = vpow.pop %v3390
    %v3392 = vmul.f32 %v3385, 1.442695
    %v3393 = vpow.pop %v3392
    %v3394 = vadd.f32 %v3387, 1.0
    %v3395 = vadd.f32 %v3389, 1.0
    %v3396 = vadd.f32 %v3391, 1.0
    %v3397 = vadd.f32 %v3393, 1.0
    %v3398 = vrcp.pop %v3394
    %v3399 = vmul.f32 1.0, %v3398
    %v3400 = vrcp.pop %v3395
    %v3401 = vmul.f32 1.0, %v3400
    %v3402 = vrcp.pop %v3396
    %v3403 = vmul.f32 1.0, %v3402
    %v3404 = vrcp.pop %v3397
    %v3405 = vmul.f32 1.0, %v3404
    %v3406 = vtanh.pop %v3344
    %v3407 = vtanh.pop %v3348
    %v3408 = vtanh.pop %v3352
    %v3409 = vtanh.pop %v3356
    %v3410 = vxor.u32 %v3345, 2147483648
    %v3411 = vxor.u32 %v3349, 2147483648
    %v3412 = vxor.u32 %v3353, 2147483648
    %v3413 = vxor.u32 %v3357, 2147483648
    %v3414 = vmul.f32 %v3410, 1.442695
    %v3415 = vpow.pop %v3414
    %v3416 = vmul.f32 %v3411, 1.442695
    %v3417 = vpow.pop %v3416
    %v3418 = vmul.f32 %v3412, 1.442695
    %v3419 = vpow.pop %v3418
    %v3420 = vmul.f32 %v3413, 1.442695
    %v3421 = vpow.pop %v3420
    %v3422 = vadd.f32 %v3415, 1.0
    %v3423 = vadd.f32 %v3417, 1.0
    %v3424 = vadd.f32 %v3419, 1.0
    %v3425 = vadd.f32 %v3421, 1.0
    %v3426 = vrcp.pop %v3422
    %v3427 = vmul.f32 1.0, %v3426
    %v3428 = vrcp.pop %v3423
    %v3429 = vmul.f32 1.0, %v3428
    %v3430 = vrcp.pop %v3424
    %v3431 = vmul.f32 1.0, %v3430
    %v3432 = vrcp.pop %v3425
    %v3433 = vmul.f32 1.0, %v3432
    %v3438 = vrot.slane %v3062, 7
    %v3439 = vrot.slane %v3063, 7
    %v3440 = vrot.slane %v3064, 7
    %v3441 = vrot.slane %v3065, 7
    %v3446 = vmul.f32 %v3399, %v3438
    %v3447 = vmul.f32 %v3401, %v3439
    %v3448 = vmul.f32 %v3403, %v3440
    %v3449 = vmul.f32 %v3405, %v3441
    %v3450 = vmul.f32 %v3375, %v3406
    %v3451 = vmul.f32 %v3377, %v3407
    %v3452 = vmul.f32 %v3379, %v3408
    %v3453 = vmul.f32 %v3381, %v3409
    %v3454 = vadd.f32 %v3446, %v3450
    %v3455 = vadd.f32 %v3447, %v3451
    %v3456 = vadd.f32 %v3448, %v3452
    %v3457 = vadd.f32 %v3449, %v3453
    %v3458 = vtanh.pop %v3454
    %v3459 = vtanh.pop %v3455
    %v3460 = vtanh.pop %v3456
    %v3461 = vtanh.pop %v3457
    %v3462 = vmul.f32 %v3427, %v3458
    %v3463 = vmul.f32 %v3429, %v3459
    %v3464 = vmul.f32 %v3431, %v3460
    %v3465 = vmul.f32 %v3433, %v3461
    %v3470 = vrot.slane %v3463, 7
    %v3471 = vsel %vm2680, %v3470, %v3462
    %v3472 = vrot.slane %v3464, 6
    %v3473 = vsel %vm3083, %v3472, %v3471
    %v3474 = vrot.slane %v3465, 5
    %v3478 = vrot.slane %v3202, 3
    %v3480 = vpack.c.bf16 %v3474, %v3473
    %v3481 = vpack.c.bf16 %v3478, %v3478
    %v3483 = vshrl.u32 %v3480, 16
    %v3485 = vrot.slane %v3483, 2
    %v3486 = vshll.u32 %v3480, 16
    %v3488 = vrot.slane %v3486, 3
    %v3489 = vor.u32 %v3485, %v3488
    %v3491 = vshrl.u32 %v3481, 16
    %v3493 = vrot.slane %v3491, 2
    %v3494 = vshll.u32 %v3481, 16
    %v3496 = vrot.slane %v3494, 3
    %v3497 = vor.u32 %v3493, %v3496
    %3500 = vmatprep.subr.bf16.mxu0 %v1396
    %3501 = vmatpush1.bf16.msra.mxu0 %v1395
    %3502 = vmatprep.subr.bf16.mxu0 %v1400
    %3503 = vmatpush1.bf16.msra.mxu0 %v1399
    %3504 = vmatprep.subr.bf16.mxu0 %v1404
    %3505 = vmatpush1.bf16.msra.mxu0 %v1403
    %3506 = vmatprep.subr.bf16.mxu0 %v1408
    %3507 = vmatpush1.bf16.msra.mxu0 %v1407
    %3508 = vmatprep.subr.bf16.mxu0 %v1412
    %3509 = vmatpush1.bf16.msra.mxu0 %v1411
    %3510 = vmatprep.subr.bf16.mxu0 %v1416
    %3511 = vmatpush1.bf16.msra.mxu0 %v1415
    %3512 = vmatprep.subr.bf16.mxu0 %v1420
    %3513 = vmatpush1.bf16.msra.mxu0 %v1419
    %3514 = vmatprep.subr.bf16.mxu0 %v1424
    %3515 = vmatpush1.bf16.msra.mxu0 %v1423
    %3516 = vmatprep.subr.bf16.mxu0 %v1428
    %3517 = vmatpush1.bf16.msra.mxu0 %v1427
    %3518 = vmatprep.subr.bf16.mxu0 %v1432
    %3519 = vmatpush1.bf16.msra.mxu0 %v1431
    %3520 = vmatprep.subr.bf16.mxu0 %v1436
    %3521 = vmatpush1.bf16.msra.mxu0 %v1435
    %3522 = vmatprep.subr.bf16.mxu0 %v1440
    %3523 = vmatpush1.bf16.msra.mxu0 %v1439
    %3524 = vmatprep.subr.bf16.mxu0 %v1444
    %3525 = vmatpush1.bf16.msra.mxu0 %v1443
    %3526 = vmatprep.subr.bf16.mxu0 %v1448
    %3527 = vmatpush1.bf16.msra.mxu0 %v1447
    %3528 = vmatprep.subr.bf16.mxu0 %v1452
    %3529 = vmatpush1.bf16.msra.mxu0 %v1451
    %3530 = vmatprep.subr.bf16.mxu0 %v1456
    %3531 = vmatpush1.bf16.msra.mxu0 %v1455
    %3532 = vmatprep.mubr.bf16.mxu0 %v3497
    %3533 = vmatmul.mubr.bf16.gmra.mrb[0].mxu0 %v3489
    %v3534 = vpop.f32.mrb[0].mxu0
    %v3535 = vadd.f32 %v1186, %v3534
    %v3536 = vpop.f32.mrb[0].mxu0
    %v3537 = vadd.f32 %v1190, %v3536
    %v3538 = vpop.f32.mrb[0].mxu0
    %v3539 = vpop.f32.mrb[0].mxu0
    %3540 = vdwg.mxu0
    %3541 = vmatprep.subr.bf16.mxu0 %v1398
    %3542 = vmatpush1.bf16.msra.mxu0 %v1397
    %3543 = vmatprep.subr.bf16.mxu0 %v1402
    %3544 = vmatpush1.bf16.msra.mxu0 %v1401
    %3545 = vmatprep.subr.bf16.mxu0 %v1406
    %3546 = vmatpush1.bf16.msra.mxu0 %v1405
    %3547 = vmatprep.subr.bf16.mxu0 %v1410
    %3548 = vmatpush1.bf16.msra.mxu0 %v1409
    %3549 = vmatprep.subr.bf16.mxu0 %v1414
    %3550 = vmatpush1.bf16.msra.mxu0 %v1413
    %3551 = vmatprep.subr.bf16.mxu0 %v1418
    %3552 = vmatpush1.bf16.msra.mxu0 %v1417
    %3553 = vmatprep.subr.bf16.mxu0 %v1422
    %3554 = vmatpush1.bf16.msra.mxu0 %v1421
    %3555 = vmatprep.subr.bf16.mxu0 %v1426
    %3556 = vmatpush1.bf16.msra.mxu0 %v1425
    %3557 = vmatprep.subr.bf16.mxu0 %v1430
    %3558 = vmatpush1.bf16.msra.mxu0 %v1429
    %3559 = vmatprep.subr.bf16.mxu0 %v1434
    %3560 = vmatpush1.bf16.msra.mxu0 %v1433
    %3561 = vmatprep.subr.bf16.mxu0 %v1438
    %3562 = vmatpush1.bf16.msra.mxu0 %v1437
    %3563 = vmatprep.subr.bf16.mxu0 %v1442
    %3564 = vmatpush1.bf16.msra.mxu0 %v1441
    %3565 = vmatprep.subr.bf16.mxu0 %v1446
    %3566 = vmatpush1.bf16.msra.mxu0 %v1445
    %3567 = vmatprep.subr.bf16.mxu0 %v1450
    %3568 = vmatpush1.bf16.msra.mxu0 %v1449
    %3569 = vmatprep.subr.bf16.mxu0 %v1454
    %3570 = vmatpush1.bf16.msra.mxu0 %v1453
    %3571 = vmatprep.subr.bf16.mxu0 %v1458
    %3572 = vmatpush1.bf16.msra.mxu0 %v1457
    %3573 = vmatprep.mubr.bf16.mxu0 %v3497
    %3574 = vmatmul.mubr.bf16.gmra.mrb[0].mxu0 %v3489
    %v3575 = vpop.f32.mrb[0].mxu0
    %v3576 = vadd.f32 %v1194, %v3575
    %v3577 = vpop.f32.mrb[0].mxu0
    %v3578 = vadd.f32 %v1198, %v3577
    %v3579 = vpop.f32.mrb[0].mxu0
    %v3580 = vpop.f32.mrb[0].mxu0
    %3581 = vdwg.mxu0
    %v3582 = vxor.u32 %v3535, 2147483648
    %v3583 = vmul.f32 %v3582, 1.442695
    %v3584 = vpow.pop %v3583
    %v3585 = vadd.f32 %v3584, 1.0
    %v3586 = vrcp.pop %v3585
    %v3587 = vmul.f32 1.0, %v3586
    %v3588 = vxor.u32 %v3537, 2147483648
    %v3589 = vmul.f32 %v3588, 1.442695
    %v3590 = vpow.pop %v3589
    %v3591 = vadd.f32 %v3590, 1.0
    %v3592 = vrcp.pop %v3591
    %v3593 = vmul.f32 1.0, %v3592
    %v3594 = vtanh.pop %v3576
    %v3595 = vxor.u32 %v3578, 2147483648
    %v3596 = vmul.f32 %v3595, 1.442695
    %v3597 = vpow.pop %v3596
    %v3598 = vadd.f32 %v3597, 1.0
    %v3599 = vrcp.pop %v3598
    %v3600 = vmul.f32 1.0, %v3599
    %v3601 = vmul.f32 %v3593, %v3200
    %v3602 = vmul.f32 %v3587, %v3594
    %v3603 = vadd.f32 %v3601, %v3602
    %v3604 = vtanh.pop %v3603
    %v3605 = vmul.f32 %v3600, %v3604
    %v3606 = vpack.c.bf16 %v3462, %v3462
    %v3607 = vpack.c.bf16 %v3463, %v3463
    %v3608 = vpack.c.bf16 %v3464, %v3464
    %v3609 = vpack.c.bf16 %v3465, %v3465
    %v3614 = vunpack.c.l.b16 %v3606
    %v3615 = vunpack.c.l.b16 %v3607
    %v3616 = vunpack.c.l.b16 %v3608
    %v3617 = vunpack.c.l.b16 %v3609
    %v3618 = vrot.slane %v3614, 5
    %v3619 = vrot.slane %v3615, 4
    %v3620 = vsel %vm1171, %v3619, %v3618
    %v3621 = vrot.slane %v3616, 3
    %v3622 = vsel %vm1174, %v3621, %v3620
    %v3623 = vrot.slane %v3617, 2
    %v3624 = vsel %vm1177, %v3623, %v3622
    %v3625 = vpack.c.b16 %v3624, %v3624
    %3627 = vmatprep.subr.bf16.mxu0 %v869
    %3628 = vmatpush1.bf16.msra.mxu0 %v868
    %3629 = vmatprep.subr.bf16.mxu0 %v873
    %3630 = vmatpush1.bf16.msra.mxu0 %v872
    %3631 = vmatprep.subr.bf16.mxu0 %v877
    %3632 = vmatpush1.bf16.msra.mxu0 %v876
    %3633 = vmatprep.subr.bf16.mxu0 %v881
    %3634 = vmatpush1.bf16.msra.mxu0 %v880
    %3635 = vmatprep.subr.bf16.mxu0 %v885
    %3636 = vmatpush1.bf16.msra.mxu0 %v884
    %3637 = vmatprep.subr.bf16.mxu0 %v889
    %3638 = vmatpush1.bf16.msra.mxu0 %v888
    %3639 = vmatprep.subr.bf16.mxu0 %v893
    %3640 = vmatpush1.bf16.msra.mxu0 %v892
    %3641 = vmatprep.subr.bf16.mxu0 %v897
    %3642 = vmatpush1.bf16.msra.mxu0 %v896
    %3643 = vmatprep.subr.bf16.mxu0 0
    %3644 = vmatpush1.bf16.msra.mxu0 0
    %3645 = vmatprep.subr.bf16.mxu0 0
    %3646 = vmatpush1.bf16.msra.mxu0 0
    %3647 = vmatprep.subr.bf16.mxu0 0
    %3648 = vmatpush1.bf16.msra.mxu0 0
    %3649 = vmatprep.subr.bf16.mxu0 0
    %3650 = vmatpush1.bf16.msra.mxu0 0
    %3651 = vmatprep.subr.bf16.mxu0 0
    %3652 = vmatpush1.bf16.msra.mxu0 0
    %3653 = vmatprep.subr.bf16.mxu0 0
    %3654 = vmatpush1.bf16.msra.mxu0 0
    %3655 = vmatprep.subr.bf16.mxu0 0
    %3656 = vmatpush1.bf16.msra.mxu0 0
    %3657 = vmatprep.subr.bf16.mxu0 0
    %3658 = vmatpush1.bf16.msra.mxu0 0
    %3659 = vmatprep.mubr.bf16.mxu0 0
    %3660 = vmatmul.mubr.bf16.gmra.mrb[0].mxu0 %v3625
    %v3661 = vpop.f32.mrb[0].mxu0
    %v3662 = vadd.f32 0.0, %v3661
    %v3663 = vpop.f32.mrb[0].mxu0
    %v3664 = vadd.f32 0.0, %v3663
    %v3665 = vpop.f32.mrb[0].mxu0
    %v3666 = vpop.f32.mrb[0].mxu0
    %3667 = vdwg.mxu0
    %3668 = vmatprep.subr.bf16.mxu0 %v871
    %3669 = vmatpush1.bf16.msra.mxu0 %v870
    %3670 = vmatprep.subr.bf16.mxu0 %v875
    %3671 = vmatpush1.bf16.msra.mxu0 %v874
    %3672 = vmatprep.subr.bf16.mxu0 %v879
    %3673 = vmatpush1.bf16.msra.mxu0 %v878
    %3674 = vmatprep.subr.bf16.mxu0 %v883
    %3675 = vmatpush1.bf16.msra.mxu0 %v882
    %3676 = vmatprep.subr.bf16.mxu0 %v887
    %3677 = vmatpush1.bf16.msra.mxu0 %v886
    %3678 = vmatprep.subr.bf16.mxu0 %v891
    %3679 = vmatpush1.bf16.msra.mxu0 %v890
    %3680 = vmatprep.subr.bf16.mxu0 %v895
    %3681 = vmatpush1.bf16.msra.mxu0 %v894
    %3682 = vmatprep.subr.bf16.mxu0 %v899
    %3683 = vmatpush1.bf16.msra.mxu0 %v898
    %3684 = vmatprep.subr.bf16.mxu0 0
    %3685 = vmatpush1.bf16.msra.mxu0 0
    %3686 = vmatprep.subr.bf16.mxu0 0
    %3687 = vmatpush1.bf16.msra.mxu0 0
    %3688 = vmatprep.subr.bf16.mxu0 0
    %3689 = vmatpush1.bf16.msra.mxu0 0
    %3690 = vmatprep.subr.bf16.mxu0 0
    %3691 = vmatpush1.bf16.msra.mxu0 0
    %3692 = vmatprep.subr.bf16.mxu0 0
    %3693 = vmatpush1.bf16.msra.mxu0 0
    %3694 = vmatprep.subr.bf16.mxu0 0
    %3695 = vmatpush1.bf16.msra.mxu0 0
    %3696 = vmatprep.subr.bf16.mxu0 0
    %3697 = vmatpush1.bf16.msra.mxu0 0
    %3698 = vmatprep.subr.bf16.mxu0 0
    %3699 = vmatpush1.bf16.msra.mxu0 0
    %3700 = vmatprep.mubr.bf16.mxu0 0
    %3701 = vmatmul.mubr.bf16.gmra.mrb[0].mxu0 %v3625
    %v3702 = vpop.f32.mrb[0].mxu0
    %v3703 = vadd.f32 0.0, %v3702
    %v3704 = vpop.f32.mrb[0].mxu0
    %v3705 = vadd.f32 0.0, %v3704
    %v3706 = vpop.f32.mrb[0].mxu0
    %v3707 = vpop.f32.mrb[0].mxu0
    %3708 = vdwg.mxu0
    %v3713 = vrot.slane %v3662, 2
    %v3714 = vrot.slane %v3664, 2
    %v3715 = vrot.slane %v3703, 2
    %v3716 = vrot.slane %v3705, 2
    %v3717 = vrot.slane %v3662, 3
    %v3718 = vrot.slane %v3664, 3
    %v3719 = vrot.slane %v3703, 3
    %v3720 = vrot.slane %v3705, 3
    %v3721 = vrot.slane %v3662, 4
    %v3722 = vrot.slane %v3664, 4
    %v3723 = vrot.slane %v3703, 4
    %v3724 = vrot.slane %v3705, 4
    %v3725 = vrot.slane %v3662, 5
    %v3726 = vrot.slane %v3664, 5
    %v3727 = vrot.slane %v3703, 5
    %v3728 = vrot.slane %v3705, 5
    %v3745 = vadd.f32 %v599, %v3713
    %v3746 = vadd.f32 %v601, %v3714
    %v3747 = vadd.f32 %v652, %v3715
    %v3748 = vadd.f32 %v654, %v3716
    %v3749 = vadd.f32 %v603, %v3717
    %v3750 = vadd.f32 %v605, %v3718
    %v3751 = vadd.f32 %v656, %v3719
    %v3752 = vadd.f32 %v658, %v3720
    %v3753 = vadd.f32 %v609, %v3721
    %v3754 = vadd.f32 %v611, %v3722
    %v3755 = vadd.f32 %v662, %v3723
    %v3756 = vadd.f32 %v664, %v3724
    %v3757 = vadd.f32 %v613, %v3725
    %v3758 = vadd.f32 %v615, %v3726
    %v3759 = vadd.f32 %v666, %v3727
    %v3760 = vadd.f32 %v668, %v3728
    %v3761 = vxor.u32 %v3745, 2147483648
    %v3762 = vxor.u32 %v3749, 2147483648
    %v3763 = vxor.u32 %v3753, 2147483648
    %v3764 = vxor.u32 %v3757, 2147483648
    %v3765 = vmul.f32 %v3761, 1.442695
    %v3766 = vpow.pop %v3765
    %v3767 = vmul.f32 %v3762, 1.442695
    %v3768 = vpow.pop %v3767
    %v3769 = vmul.f32 %v3763, 1.442695
    %v3770 = vpow.pop %v3769
    %v3771 = vmul.f32 %v3764, 1.442695
    %v3772 = vpow.pop %v3771
    %v3773 = vadd.f32 %v3766, 1.0
    %v3774 = vadd.f32 %v3768, 1.0
    %v3775 = vadd.f32 %v3770, 1.0
    %v3776 = vadd.f32 %v3772, 1.0
    %v3777 = vrcp.pop %v3773
    %v3778 = vmul.f32 1.0, %v3777
    %v3779 = vrcp.pop %v3774
    %v3780 = vmul.f32 1.0, %v3779
    %v3781 = vrcp.pop %v3775
    %v3782 = vmul.f32 1.0, %v3781
    %v3783 = vrcp.pop %v3776
    %v3784 = vmul.f32 1.0, %v3783
    %v3785 = vxor.u32 %v3746, 2147483648
    %v3786 = vxor.u32 %v3750, 2147483648
    %v3787 = vxor.u32 %v3754, 2147483648
    %v3788 = vxor.u32 %v3758, 2147483648
    %v3789 = vmul.f32 %v3785, 1.442695
    %v3790 = vpow.pop %v3789
    %v3791 = vmul.f32 %v3786, 1.442695
    %v3792 = vpow.pop %v3791
    %v3793 = vmul.f32 %v3787, 1.442695
    %v3794 = vpow.pop %v3793
    %v3795 = vmul.f32 %v3788, 1.442695
    %v3796 = vpow.pop %v3795
    %v3797 = vadd.f32 %v3790, 1.0
    %v3798 = vadd.f32 %v3792, 1.0
    %v3799 = vadd.f32 %v3794, 1.0
    %v3800 = vadd.f32 %v3796, 1.0
    %v3801 = vrcp.pop %v3797
    %v3802 = vmul.f32 1.0, %v3801
    %v3803 = vrcp.pop %v3798
    %v3804 = vmul.f32 1.0, %v3803
    %v3805 = vrcp.pop %v3799
    %v3806 = vmul.f32 1.0, %v3805
    %v3807 = vrcp.pop %v3800
    %v3808 = vmul.f32 1.0, %v3807
    %v3809 = vtanh.pop %v3747
    %v3810 = vtanh.pop %v3751
    %v3811 = vtanh.pop %v3755
    %v3812 = vtanh.pop %v3759
    %v3813 = vxor.u32 %v3748, 2147483648
    %v3814 = vxor.u32 %v3752, 2147483648
    %v3815 = vxor.u32 %v3756, 2147483648
    %v3816 = vxor.u32 %v3760, 2147483648
    %v3817 = vmul.f32 %v3813, 1.442695
    %v3818 = vpow.pop %v3817
    %v3819 = vmul.f32 %v3814, 1.442695
    %v3820 = vpow.pop %v3819
    %v3821 = vmul.f32 %v3815, 1.442695
    %v3822 = vpow.pop %v3821
    %v3823 = vmul.f32 %v3816, 1.442695
    %v3824 = vpow.pop %v3823
    %v3825 = vadd.f32 %v3818, 1.0
    %v3826 = vadd.f32 %v3820, 1.0
    %v3827 = vadd.f32 %v3822, 1.0
    %v3828 = vadd.f32 %v3824, 1.0
    %v3829 = vrcp.pop %v3825
    %v3830 = vmul.f32 1.0, %v3829
    %v3831 = vrcp.pop %v3826
    %v3832 = vmul.f32 1.0, %v3831
    %v3833 = vrcp.pop %v3827
    %v3834 = vmul.f32 1.0, %v3833
    %v3835 = vrcp.pop %v3828
    %v3836 = vmul.f32 1.0, %v3835
    %v3841 = vrot.slane %v3454, 7
    %v3842 = vrot.slane %v3455, 7
    %v3843 = vrot.slane %v3456, 7
    %v3844 = vrot.slane %v3457, 7
    %v3849 = vmul.f32 %v3802, %v3841
    %v3850 = vmul.f32 %v3804, %v3842
    %v3851 = vmul.f32 %v3806, %v3843
    %v3852 = vmul.f32 %v3808, %v3844
    %v3853 = vmul.f32 %v3778, %v3809
    %v3854 = vmul.f32 %v3780, %v3810
    %v3855 = vmul.f32 %v3782, %v3811
    %v3856 = vmul.f32 %v3784, %v3812
    %v3857 = vadd.f32 %v3849, %v3853
    %v3858 = vadd.f32 %v3850, %v3854
    %v3859 = vadd.f32 %v3851, %v3855
    %v3860 = vadd.f32 %v3852, %v3856
    %v3861 = vtanh.pop %v3857
    %v3862 = vtanh.pop %v3858
    %v3863 = vtanh.pop %v3859
    %v3864 = vtanh.pop %v3860
    %v3865 = vmul.f32 %v3830, %v3861
    %v3866 = vmul.f32 %v3832, %v3862
    %v3867 = vmul.f32 %v3834, %v3863
    %v3868 = vmul.f32 %v3836, %v3864
    %v3873 = vrot.slane %v3866, 7
    %v3874 = vsel %vm3083, %v3873, %v3865
    %v3875 = vrot.slane %v3867, 6
    %v3876 = vrot.slane %v3868, 5
    %v3877 = vsel %vm1171, %v3876, %v3875
    %v3881 = vrot.slane %v3605, 2
    %v3883 = vpack.c.bf16 %v3877, %v3874
    %v3884 = vpack.c.bf16 %v3881, %v3881
    %v3887 = vrot.slane %v3883, 3
    %v3888 = vrot.slane %v3884, 3
    %3891 = vmatprep.subr.bf16.mxu0 %v1396
    %3892 = vmatpush1.bf16.msra.mxu0 %v1395
    %3893 = vmatprep.subr.bf16.mxu0 %v1400
    %3894 = vmatpush1.bf16.msra.mxu0 %v1399
    %3895 = vmatprep.subr.bf16.mxu0 %v1404
    %3896 = vmatpush1.bf16.msra.mxu0 %v1403
    %3897 = vmatprep.subr.bf16.mxu0 %v1408
    %3898 = vmatpush1.bf16.msra.mxu0 %v1407
    %3899 = vmatprep.subr.bf16.mxu0 %v1412
    %3900 = vmatpush1.bf16.msra.mxu0 %v1411
    %3901 = vmatprep.subr.bf16.mxu0 %v1416
    %3902 = vmatpush1.bf16.msra.mxu0 %v1415
    %3903 = vmatprep.subr.bf16.mxu0 %v1420
    %3904 = vmatpush1.bf16.msra.mxu0 %v1419
    %3905 = vmatprep.subr.bf16.mxu0 %v1424
    %3906 = vmatpush1.bf16.msra.mxu0 %v1423
    %3907 = vmatprep.subr.bf16.mxu0 %v1428
    %3908 = vmatpush1.bf16.msra.mxu0 %v1427
    %3909 = vmatprep.subr.bf16.mxu0 %v1432
    %3910 = vmatpush1.bf16.msra.mxu0 %v1431
    %3911 = vmatprep.subr.bf16.mxu0 %v1436
    %3912 = vmatpush1.bf16.msra.mxu0 %v1435
    %3913 = vmatprep.subr.bf16.mxu0 %v1440
    %3914 = vmatpush1.bf16.msra.mxu0 %v1439
    %3915 = vmatprep.subr.bf16.mxu0 %v1444
    %3916 = vmatpush1.bf16.msra.mxu0 %v1443
    %3917 = vmatprep.subr.bf16.mxu0 %v1448
    %3918 = vmatpush1.bf16.msra.mxu0 %v1447
    %3919 = vmatprep.subr.bf16.mxu0 %v1452
    %3920 = vmatpush1.bf16.msra.mxu0 %v1451
    %3921 = vmatprep.subr.bf16.mxu0 %v1456
    %3922 = vmatpush1.bf16.msra.mxu0 %v1455
    %3923 = vmatprep.mubr.bf16.mxu0 %v3888
    %3924 = vmatmul.mubr.bf16.gmra.mrb[0].mxu0 %v3887
    %v3925 = vpop.f32.mrb[0].mxu0
    %v3926 = vadd.f32 %v1186, %v3925
    %v3927 = vpop.f32.mrb[0].mxu0
    %v3928 = vadd.f32 %v1190, %v3927
    %v3929 = vpop.f32.mrb[0].mxu0
    %v3930 = vpop.f32.mrb[0].mxu0
    %3931 = vdwg.mxu0
    %3932 = vmatprep.subr.bf16.mxu0 %v1398
    %3933 = vmatpush1.bf16.msra.mxu0 %v1397
    %3934 = vmatprep.subr.bf16.mxu0 %v1402
    %3935 = vmatpush1.bf16.msra.mxu0 %v1401
    %3936 = vmatprep.subr.bf16.mxu0 %v1406
    %3937 = vmatpush1.bf16.msra.mxu0 %v1405
    %3938 = vmatprep.subr.bf16.mxu0 %v1410
    %3939 = vmatpush1.bf16.msra.mxu0 %v1409
    %3940 = vmatprep.subr.bf16.mxu0 %v1414
    %3941 = vmatpush1.bf16.msra.mxu0 %v1413
    %3942 = vmatprep.subr.bf16.mxu0 %v1418
    %3943 = vmatpush1.bf16.msra.mxu0 %v1417
    %3944 = vmatprep.subr.bf16.mxu0 %v1422
    %3945 = vmatpush1.bf16.msra.mxu0 %v1421
    %3946 = vmatprep.subr.bf16.mxu0 %v1426
    %3947 = vmatpush1.bf16.msra.mxu0 %v1425
    %3948 = vmatprep.subr.bf16.mxu0 %v1430
    %3949 = vmatpush1.bf16.msra.mxu0 %v1429
    %3950 = vmatprep.subr.bf16.mxu0 %v1434
    %3951 = vmatpush1.bf16.msra.mxu0 %v1433
    %3952 = vmatprep.subr.bf16.mxu0 %v1438
    %3953 = vmatpush1.bf16.msra.mxu0 %v1437
    %3954 = vmatprep.subr.bf16.mxu0 %v1442
    %3955 = vmatpush1.bf16.msra.mxu0 %v1441
    %3956 = vmatprep.subr.bf16.mxu0 %v1446
    %3957 = vmatpush1.bf16.msra.mxu0 %v1445
    %3958 = vmatprep.subr.bf16.mxu0 %v1450
    %3959 = vmatpush1.bf16.msra.mxu0 %v1449
    %3960 = vmatprep.subr.bf16.mxu0 %v1454
    %3961 = vmatpush1.bf16.msra.mxu0 %v1453
    %3962 = vmatprep.subr.bf16.mxu0 %v1458
    %3963 = vmatpush1.bf16.msra.mxu0 %v1457
    %3964 = vmatprep.mubr.bf16.mxu0 %v3888
    %3965 = vmatmul.mubr.bf16.gmra.mrb[0].mxu0 %v3887
    %v3966 = vpop.f32.mrb[0].mxu0
    %v3967 = vadd.f32 %v1194, %v3966
    %v3968 = vpop.f32.mrb[0].mxu0
    %v3969 = vadd.f32 %v1198, %v3968
    %v3970 = vpop.f32.mrb[0].mxu0
    %v3971 = vpop.f32.mrb[0].mxu0
    %3972 = vdwg.mxu0
    %v3973 = vxor.u32 %v3926, 2147483648
    %v3974 = vmul.f32 %v3973, 1.442695
    %v3975 = vpow.pop %v3974
    %v3976 = vadd.f32 %v3975, 1.0
    %v3977 = vrcp.pop %v3976
    %v3978 = vmul.f32 1.0, %v3977
    %v3979 = vxor.u32 %v3928, 2147483648
    %v3980 = vmul.f32 %v3979, 1.442695
    %v3981 = vpow.pop %v3980
    %v3982 = vadd.f32 %v3981, 1.0
    %v3983 = vrcp.pop %v3982
    %v3984 = vmul.f32 1.0, %v3983
    %v3985 = vtanh.pop %v3967
    %v3986 = vxor.u32 %v3969, 2147483648
    %v3987 = vmul.f32 %v3986, 1.442695
    %v3988 = vpow.pop %v3987
    %v3989 = vadd.f32 %v3988, 1.0
    %v3990 = vrcp.pop %v3989
    %v3991 = vmul.f32 1.0, %v3990
    %v3992 = vmul.f32 %v3984, %v3603
    %v3993 = vmul.f32 %v3978, %v3985
    %v3994 = vadd.f32 %v3992, %v3993
    %v3995 = vtanh.pop %v3994
    %v3996 = vmul.f32 %v3991, %v3995
    %v3997 = vpack.c.bf16 %v3865, %v3865
    %v3998 = vpack.c.bf16 %v3866, %v3866
    %v3999 = vpack.c.bf16 %v3867, %v3867
    %v4000 = vpack.c.bf16 %v3868, %v3868
    %v4005 = vunpack.c.l.b16 %v3997
    %v4006 = vunpack.c.l.b16 %v3998
    %v4007 = vunpack.c.l.b16 %v3999
    %v4008 = vunpack.c.l.b16 %v4000
    %v4009 = vrot.slane %v4005, 6
    %v4010 = vrot.slane %v4006, 5
    %v4011 = vsel %vm1171, %v4010, %v4009
    %v4012 = vrot.slane %v4007, 4
    %v4013 = vsel %vm1174, %v4012, %v4011
    %v4014 = vrot.slane %v4008, 3
    %v4015 = vsel %vm1177, %v4014, %v4013
    %v4016 = vpack.c.b16 %v4015, %v4015
    %4018 = vmatprep.subr.bf16.mxu0 %v869
    %4019 = vmatpush1.bf16.msra.mxu0 %v868
    %4020 = vmatprep.subr.bf16.mxu0 %v873
    %4021 = vmatpush1.bf16.msra.mxu0 %v872
    %4022 = vmatprep.subr.bf16.mxu0 %v877
    %4023 = vmatpush1.bf16.msra.mxu0 %v876
    %4024 = vmatprep.subr.bf16.mxu0 %v881
    %4025 = vmatpush1.bf16.msra.mxu0 %v880
    %4026 = vmatprep.subr.bf16.mxu0 %v885
    %4027 = vmatpush1.bf16.msra.mxu0 %v884
    %4028 = vmatprep.subr.bf16.mxu0 %v889
    %4029 = vmatpush1.bf16.msra.mxu0 %v888
    %4030 = vmatprep.subr.bf16.mxu0 %v893
    %4031 = vmatpush1.bf16.msra.mxu0 %v892
    %4032 = vmatprep.subr.bf16.mxu0 %v897
    %4033 = vmatpush1.bf16.msra.mxu0 %v896
    %4034 = vmatprep.subr.bf16.mxu0 0
    %4035 = vmatpush1.bf16.msra.mxu0 0
    %4036 = vmatprep.subr.bf16.mxu0 0
    %4037 = vmatpush1.bf16.msra.mxu0 0
    %4038 = vmatprep.subr.bf16.mxu0 0
    %4039 = vmatpush1.bf16.msra.mxu0 0
    %4040 = vmatprep.subr.bf16.mxu0 0
    %4041 = vmatpush1.bf16.msra.mxu0 0
    %4042 = vmatprep.subr.bf16.mxu0 0
    %4043 = vmatpush1.bf16.msra.mxu0 0
    %4044 = vmatprep.subr.bf16.mxu0 0
    %4045 = vmatpush1.bf16.msra.mxu0 0
    %4046 = vmatprep.subr.bf16.mxu0 0
    %4047 = vmatpush1.bf16.msra.mxu0 0
    %4048 = vmatprep.subr.bf16.mxu0 0
    %4049 = vmatpush1.bf16.msra.mxu0 0
    %4050 = vmatprep.mubr.bf16.mxu0 0
    %4051 = vmatmul.mubr.bf16.gmra.mrb[0].mxu0 %v4016
    %v4052 = vpop.f32.mrb[0].mxu0
    %v4053 = vadd.f32 0.0, %v4052
    %v4054 = vpop.f32.mrb[0].mxu0
    %v4055 = vadd.f32 0.0, %v4054
    %v4056 = vpop.f32.mrb[0].mxu0
    %v4057 = vpop.f32.mrb[0].mxu0
    %4058 = vdwg.mxu0
    %4059 = vmatprep.subr.bf16.mxu0 %v871
    %4060 = vmatpush1.bf16.msra.mxu0 %v870
    %4061 = vmatprep.subr.bf16.mxu0 %v875
    %4062 = vmatpush1.bf16.msra.mxu0 %v874
    %4063 = vmatprep.subr.bf16.mxu0 %v879
    %4064 = vmatpush1.bf16.msra.mxu0 %v878
    %4065 = vmatprep.subr.bf16.mxu0 %v883
    %4066 = vmatpush1.bf16.msra.mxu0 %v882
    %4067 = vmatprep.subr.bf16.mxu0 %v887
    %4068 = vmatpush1.bf16.msra.mxu0 %v886
    %4069 = vmatprep.subr.bf16.mxu0 %v891
    %4070 = vmatpush1.bf16.msra.mxu0 %v890
    %4071 = vmatprep.subr.bf16.mxu0 %v895
    %4072 = vmatpush1.bf16.msra.mxu0 %v894
    %4073 = vmatprep.subr.bf16.mxu0 %v899
    %4074 = vmatpush1.bf16.msra.mxu0 %v898
    %4075 = vmatprep.subr.bf16.mxu0 0
    %4076 = vmatpush1.bf16.msra.mxu0 0
    %4077 = vmatprep.subr.bf16.mxu0 0
    %4078 = vmatpush1.bf16.msra.mxu0 0
    %4079 = vmatprep.subr.bf16.mxu0 0
    %4080 = vmatpush1.bf16.msra.mxu0 0
    %4081 = vmatprep.subr.bf16.mxu0 0
    %4082 = vmatpush1.bf16.msra.mxu0 0
    %4083 = vmatprep.subr.bf16.mxu0 0
    %4084 = vmatpush1.bf16.msra.mxu0 0
    %4085 = vmatprep.subr.bf16.mxu0 0
    %4086 = vmatpush1.bf16.msra.mxu0 0
    %4087 = vmatprep.subr.bf16.mxu0 0
    %4088 = vmatpush1.bf16.msra.mxu0 0
    %4089 = vmatprep.subr.bf16.mxu0 0
    %4090 = vmatpush1.bf16.msra.mxu0 0
    %4091 = vmatprep.mubr.bf16.mxu0 0
    %4092 = vmatmul.mubr.bf16.gmra.mrb[0].mxu0 %v4016
    %v4093 = vpop.f32.mrb[0].mxu0
    %v4094 = vadd.f32 0.0, %v4093
    %v4095 = vpop.f32.mrb[0].mxu0
    %v4096 = vadd.f32 0.0, %v4095
    %v4097 = vpop.f32.mrb[0].mxu0
    %v4098 = vpop.f32.mrb[0].mxu0
    %4099 = vdwg.mxu0
    %v4104 = vrot.slane %v4053, 1
    %v4105 = vrot.slane %v4055, 1
    %v4106 = vrot.slane %v4094, 1
    %v4107 = vrot.slane %v4096, 1
    %v4108 = vrot.slane %v4053, 2
    %v4109 = vrot.slane %v4055, 2
    %v4110 = vrot.slane %v4094, 2
    %v4111 = vrot.slane %v4096, 2
    %v4112 = vrot.slane %v4053, 3
    %v4113 = vrot.slane %v4055, 3
    %v4114 = vrot.slane %v4094, 3
    %v4115 = vrot.slane %v4096, 3
    %v4116 = vrot.slane %v4053, 4
    %v4117 = vrot.slane %v4055, 4
    %v4118 = vrot.slane %v4094, 4
    %v4119 = vrot.slane %v4096, 4
    %v4136 = vadd.f32 %v599, %v4104
    %v4137 = vadd.f32 %v601, %v4105
    %v4138 = vadd.f32 %v652, %v4106
    %v4139 = vadd.f32 %v654, %v4107
    %v4140 = vadd.f32 %v603, %v4108
    %v4141 = vadd.f32 %v605, %v4109
    %v4142 = vadd.f32 %v656, %v4110
    %v4143 = vadd.f32 %v658, %v4111
    %v4144 = vadd.f32 %v609, %v4112
    %v4145 = vadd.f32 %v611, %v4113
    %v4146 = vadd.f32 %v662, %v4114
    %v4147 = vadd.f32 %v664, %v4115
    %v4148 = vadd.f32 %v613, %v4116
    %v4149 = vadd.f32 %v615, %v4117
    %v4150 = vadd.f32 %v666, %v4118
    %v4151 = vadd.f32 %v668, %v4119
    %v4152 = vxor.u32 %v4136, 2147483648
    %v4153 = vxor.u32 %v4140, 2147483648
    %v4154 = vxor.u32 %v4144, 2147483648
    %v4155 = vxor.u32 %v4148, 2147483648
    %v4156 = vmul.f32 %v4152, 1.442695
    %v4157 = vpow.pop %v4156
    %v4158 = vmul.f32 %v4153, 1.442695
    %v4159 = vpow.pop %v4158
    %v4160 = vmul.f32 %v4154, 1.442695
    %v4161 = vpow.pop %v4160
    %v4162 = vmul.f32 %v4155, 1.442695
    %v4163 = vpow.pop %v4162
    %v4164 = vadd.f32 %v4157, 1.0
    %v4165 = vadd.f32 %v4159, 1.0
    %v4166 = vadd.f32 %v4161, 1.0
    %v4167 = vadd.f32 %v4163, 1.0
    %v4168 = vrcp.pop %v4164
    %v4169 = vmul.f32 1.0, %v4168
    %v4170 = vrcp.pop %v4165
    %v4171 = vmul.f32 1.0, %v4170
    %v4172 = vrcp.pop %v4166
    %v4173 = vmul.f32 1.0, %v4172
    %v4174 = vrcp.pop %v4167
    %v4175 = vmul.f32 1.0, %v4174
    %v4176 = vxor.u32 %v4137, 2147483648
    %v4177 = vxor.u32 %v4141, 2147483648
    %v4178 = vxor.u32 %v4145, 2147483648
    %v4179 = vxor.u32 %v4149, 2147483648
    %v4180 = vmul.f32 %v4176, 1.442695
    %v4181 = vpow.pop %v4180
    %v4182 = vmul.f32 %v4177, 1.442695
    %v4183 = vpow.pop %v4182
    %v4184 = vmul.f32 %v4178, 1.442695
    %v4185 = vpow.pop %v4184
    %v4186 = vmul.f32 %v4179, 1.442695
    %v4187 = vpow.pop %v4186
    %v4188 = vadd.f32 %v4181, 1.0
    %v4189 = vadd.f32 %v4183, 1.0
    %v4190 = vadd.f32 %v4185, 1.0
    %v4191 = vadd.f32 %v4187, 1.0
    %v4192 = vrcp.pop %v4188
    %v4193 = vmul.f32 1.0, %v4192
    %v4194 = vrcp.pop %v4189
    %v4195 = vmul.f32 1.0, %v4194
    %v4196 = vrcp.pop %v4190
    %v4197 = vmul.f32 1.0, %v4196
    %v4198 = vrcp.pop %v4191
    %v4199 = vmul.f32 1.0, %v4198
    %v4200 = vtanh.pop %v4138
    %v4201 = vtanh.pop %v4142
    %v4202 = vtanh.pop %v4146
    %v4203 = vtanh.pop %v4150
    %v4204 = vxor.u32 %v4139, 2147483648
    %v4205 = vxor.u32 %v4143, 2147483648
    %v4206 = vxor.u32 %v4147, 2147483648
    %v4207 = vxor.u32 %v4151, 2147483648
    %v4208 = vmul.f32 %v4204, 1.442695
    %v4209 = vpow.pop %v4208
    %v4210 = vmul.f32 %v4205, 1.442695
    %v4211 = vpow.pop %v4210
    %v4212 = vmul.f32 %v4206, 1.442695
    %v4213 = vpow.pop %v4212
    %v4214 = vmul.f32 %v4207, 1.442695
    %v4215 = vpow.pop %v4214
    %v4216 = vadd.f32 %v4209, 1.0
    %v4217 = vadd.f32 %v4211, 1.0
    %v4218 = vadd.f32 %v4213, 1.0
    %v4219 = vadd.f32 %v4215, 1.0
    %v4220 = vrcp.pop %v4216
    %v4221 = vmul.f32 1.0, %v4220
    %v4222 = vrcp.pop %v4217
    %v4223 = vmul.f32 1.0, %v4222
    %v4224 = vrcp.pop %v4218
    %v4225 = vmul.f32 1.0, %v4224
    %v4226 = vrcp.pop %v4219
    %v4227 = vmul.f32 1.0, %v4226
    %v4232 = vrot.slane %v3857, 7
    %v4233 = vrot.slane %v3858, 7
    %v4234 = vrot.slane %v3859, 7
    %v4235 = vrot.slane %v3860, 7
    %v4240 = vmul.f32 %v4193, %v4232
    %v4241 = vmul.f32 %v4195, %v4233
    %v4242 = vmul.f32 %v4197, %v4234
    %v4243 = vmul.f32 %v4199, %v4235
    %v4244 = vmul.f32 %v4169, %v4200
    %v4245 = vmul.f32 %v4171, %v4201
    %v4246 = vmul.f32 %v4173, %v4202
    %v4247 = vmul.f32 %v4175, %v4203
    %v4248 = vadd.f32 %v4240, %v4244
    %v4249 = vadd.f32 %v4241, %v4245
    %v4250 = vadd.f32 %v4242, %v4246
    %v4251 = vadd.f32 %v4243, %v4247
    %v4252 = vtanh.pop %v4248
    %v4253 = vtanh.pop %v4249
    %v4254 = vtanh.pop %v4250
    %v4255 = vtanh.pop %v4251
    %v4256 = vmul.f32 %v4221, %v4252
    %v4257 = vmul.f32 %v4223, %v4253
    %v4258 = vmul.f32 %v4225, %v4254
    %v4259 = vmul.f32 %v4227, %v4255
    %v4264 = vrot.slane %v4257, 7
    %v4265 = vrot.slane %v4258, 6
    %v4266 = vsel %vm1171, %v4265, %v4264
    %v4267 = vrot.slane %v4259, 5
    %v4268 = vsel %vm1174, %v4267, %v4266
    %v4272 = vrot.slane %v3996, 1
    %v4274 = vpack.c.bf16 %v4268, %v4256
    %v4275 = vpack.c.bf16 %v4272, %v4272
    %v4277 = vshrl.u32 %v4274, 16
    %v4279 = vrot.slane %v4277, 3
    %v4280 = vshll.u32 %v4274, 16
    %v4282 = vrot.slane %v4280, 4
    %v4283 = vor.u32 %v4279, %v4282
    %v4285 = vshrl.u32 %v4275, 16
    %v4287 = vrot.slane %v4285, 3
    %v4288 = vshll.u32 %v4275, 16
    %v4290 = vrot.slane %v4288, 4
    %v4291 = vor.u32 %v4287, %v4290
    %4294 = vmatprep.subr.bf16.mxu0 %v1396
    %4295 = vmatpush1.bf16.msra.mxu0 %v1395
    %4296 = vmatprep.subr.bf16.mxu0 %v1400
    %4297 = vmatpush1.bf16.msra.mxu0 %v1399
    %4298 = vmatprep.subr.bf16.mxu0 %v1404
    %4299 = vmatpush1.bf16.msra.mxu0 %v1403
    %4300 = vmatprep.subr.bf16.mxu0 %v1408
    %4301 = vmatpush1.bf16.msra.mxu0 %v1407
    %4302 = vmatprep.subr.bf16.mxu0 %v1412
    %4303 = vmatpush1.bf16.msra.mxu0 %v1411
    %4304 = vmatprep.subr.bf16.mxu0 %v1416
    %4305 = vmatpush1.bf16.msra.mxu0 %v1415
    %4306 = vmatprep.subr.bf16.mxu0 %v1420
    %4307 = vmatpush1.bf16.msra.mxu0 %v1419
    %4308 = vmatprep.subr.bf16.mxu0 %v1424
    %4309 = vmatpush1.bf16.msra.mxu0 %v1423
    %4310 = vmatprep.subr.bf16.mxu0 %v1428
    %4311 = vmatpush1.bf16.msra.mxu0 %v1427
    %4312 = vmatprep.subr.bf16.mxu0 %v1432
    %4313 = vmatpush1.bf16.msra.mxu0 %v1431
    %4314 = vmatprep.subr.bf16.mxu0 %v1436
    %4315 = vmatpush1.bf16.msra.mxu0 %v1435
    %4316 = vmatprep.subr.bf16.mxu0 %v1440
    %4317 = vmatpush1.bf16.msra.mxu0 %v1439
    %4318 = vmatprep.subr.bf16.mxu0 %v1444
    %4319 = vmatpush1.bf16.msra.mxu0 %v1443
    %4320 = vmatprep.subr.bf16.mxu0 %v1448
    %4321 = vmatpush1.bf16.msra.mxu0 %v1447
    %4322 = vmatprep.subr.bf16.mxu0 %v1452
    %4323 = vmatpush1.bf16.msra.mxu0 %v1451
    %4324 = vmatprep.subr.bf16.mxu0 %v1456
    %4325 = vmatpush1.bf16.msra.mxu0 %v1455
    %4326 = vmatprep.mubr.bf16.mxu0 %v4291
    %4327 = vmatmul.mubr.bf16.gmra.mrb[0].mxu0 %v4283
    %v4328 = vpop.f32.mrb[0].mxu0
    %v4329 = vadd.f32 %v1186, %v4328
    %v4330 = vpop.f32.mrb[0].mxu0
    %v4331 = vadd.f32 %v1190, %v4330
    %v4332 = vpop.f32.mrb[0].mxu0
    %v4333 = vpop.f32.mrb[0].mxu0
    %4334 = vdwg.mxu0
    %4335 = vmatprep.subr.bf16.mxu0 %v1398
    %4336 = vmatpush1.bf16.msra.mxu0 %v1397
    %4337 = vmatprep.subr.bf16.mxu0 %v1402
    %4338 = vmatpush1.bf16.msra.mxu0 %v1401
    %4339 = vmatprep.subr.bf16.mxu0 %v1406
    %4340 = vmatpush1.bf16.msra.mxu0 %v1405
    %4341 = vmatprep.subr.bf16.mxu0 %v1410
    %4342 = vmatpush1.bf16.msra.mxu0 %v1409
    %4343 = vmatprep.subr.bf16.mxu0 %v1414
    %4344 = vmatpush1.bf16.msra.mxu0 %v1413
    %4345 = vmatprep.subr.bf16.mxu0 %v1418
    %4346 = vmatpush1.bf16.msra.mxu0 %v1417
    %4347 = vmatprep.subr.bf16.mxu0 %v1422
    %4348 = vmatpush1.bf16.msra.mxu0 %v1421
    %4349 = vmatprep.subr.bf16.mxu0 %v1426
    %4350 = vmatpush1.bf16.msra.mxu0 %v1425
    %4351 = vmatprep.subr.bf16.mxu0 %v1430
    %4352 = vmatpush1.bf16.msra.mxu0 %v1429
    %4353 = vmatprep.subr.bf16.mxu0 %v1434
    %4354 = vmatpush1.bf16.msra.mxu0 %v1433
    %4355 = vmatprep.subr.bf16.mxu0 %v1438
    %4356 = vmatpush1.bf16.msra.mxu0 %v1437
    %4357 = vmatprep.subr.bf16.mxu0 %v1442
    %4358 = vmatpush1.bf16.msra.mxu0 %v1441
    %4359 = vmatprep.subr.bf16.mxu0 %v1446
    %4360 = vmatpush1.bf16.msra.mxu0 %v1445
    %4361 = vmatprep.subr.bf16.mxu0 %v1450
    %4362 = vmatpush1.bf16.msra.mxu0 %v1449
    %4363 = vmatprep.subr.bf16.mxu0 %v1454
    %4364 = vmatpush1.bf16.msra.mxu0 %v1453
    %4365 = vmatprep.subr.bf16.mxu0 %v1458
    %4366 = vmatpush1.bf16.msra.mxu0 %v1457
    %4367 = vmatprep.mubr.bf16.mxu0 %v4291
    %4368 = vmatmul.mubr.bf16.gmra.mrb[0].mxu0 %v4283
    %v4369 = vpop.f32.mrb[0].mxu0
    %v4370 = vadd.f32 %v1194, %v4369
    %v4371 = vpop.f32.mrb[0].mxu0
    %v4372 = vadd.f32 %v1198, %v4371
    %v4373 = vpop.f32.mrb[0].mxu0
    %v4374 = vpop.f32.mrb[0].mxu0
    %4375 = vdwg.mxu0
    %v4376 = vxor.u32 %v4329, 2147483648
    %v4377 = vmul.f32 %v4376, 1.442695
    %v4378 = vpow.pop %v4377
    %v4379 = vadd.f32 %v4378, 1.0
    %v4380 = vrcp.pop %v4379
    %v4381 = vmul.f32 1.0, %v4380
    %v4382 = vxor.u32 %v4331, 2147483648
    %v4383 = vmul.f32 %v4382, 1.442695
    %v4384 = vpow.pop %v4383
    %v4385 = vadd.f32 %v4384, 1.0
    %v4386 = vrcp.pop %v4385
    %v4387 = vmul.f32 1.0, %v4386
    %v4388 = vtanh.pop %v4370
    %v4389 = vxor.u32 %v4372, 2147483648
    %v4390 = vmul.f32 %v4389, 1.442695
    %v4391 = vpow.pop %v4390
    %v4392 = vadd.f32 %v4391, 1.0
    %v4393 = vrcp.pop %v4392
    %v4394 = vmul.f32 1.0, %v4393
    %v4395 = vmul.f32 %v4387, %v3994
    %v4396 = vmul.f32 %v4381, %v4388
    %v4397 = vadd.f32 %v4395, %v4396
    %v4398 = vtanh.pop %v4397
    %v4399 = vmul.f32 %v4394, %v4398
    %4400 = vst [vmem:[#allocation2 - $0x7] sm:$0x80] %v4256
    %4401 = vst [vmem:[#allocation2 + $0x1] sm:$0x7] %v4268
    %v4406 = vrot.slane %v4249, 7
    %v4407 = vrot.slane %v4250, 6
    %v4408 = vsel %vm1171, %v4407, %v4406
    %v4409 = vrot.slane %v4251, 5
    %v4410 = vsel %vm1174, %v4409, %v4408
    %4413 = vst [vmem:[#allocation3 - $0x7] sm:$0x80] %v4248
    %4414 = vst [vmem:[#allocation3 + $0x1] sm:$0x7] %v4410
    %4415 = vst [vmem:[#allocation4] sm:$0xf] %v4399
    %4416 = vst [vmem:[#allocation5] sm:$0xf] %v4397
    // Predicated region
    $region74: #{caputo_encoder_forward.1} parent=1 // pred_check
      %p4417 = pneg %p122
    $region75: #{caputo_encoder_forward.1} parent=1 // pred_check_branch
      %4419 = sbr.rel (%p4417) target = $region77
    $region76: #{caputo_encoder_forward.1} parent=1 // pred_region
      %v4420 = vpack.c.bf16 %v4399, %v4399
      %v4421 = vld [vmem:[#allocation15] sm:$0xff]
      %v4422 = vld [vmem:[#allocation15 + $0x8] sm:$0xff]
      %v4423 = vld [vmem:[#allocation15 + $0x10] sm:$0xff]
      %v4424 = vld [vmem:[#allocation15 + $0x18] sm:$0xff]
      %v4425 = vld [vmem:[#allocation15 + $0x20] sm:$0xff]
      %v4426 = vld [vmem:[#allocation15 + $0x28] sm:$0xff]
      %v4427 = vld [vmem:[#allocation15 + $0x30] sm:$0xff]
      %v4428 = vld [vmem:[#allocation15 + $0x38] sm:$0xff]
      %v4429 = vld [vmem:[#allocation15 + $0x40] sm:$0xff]
      %v4430 = vld [vmem:[#allocation15 + $0x48] sm:$0xff]
      %v4431 = vld [vmem:[#allocation15 + $0x50] sm:$0xff]
      %v4432 = vld [vmem:[#allocation15 + $0x58] sm:$0xff]
      %v4433 = vld [vmem:[#allocation15 + $0x60] sm:$0xff]
      %v4434 = vld [vmem:[#allocation15 + $0x68] sm:$0xff]
      %v4435 = vld [vmem:[#allocation15 + $0x70] sm:$0xff]
      %v4436 = vld [vmem:[#allocation15 + $0x78] sm:$0xff]
      %v4437 = vld [vmem:[%s10] sm:$0x3]
      %v4439 = vlaneseq
      %v4440 = vshrl.u32 %v4439, 7
      %v4441 = vsub.s32 0, %v4440
      %v4442 = vrot.slane %v4437, %v4441
      %v4443 = vlaneseq
      %v4444 = vshrl.u32 %v4443, 7
      %v4445 = vsub.s32 1, %v4444
      %v4446 = vrot.slane %v4437, %v4445
      %v4465 = vunpack.c.l.b16 %v4421
      %v4466 = vunpack.c.h.b16 %v4421
      %v4467 = vunpack.c.l.b16 %v4422
      %v4468 = vunpack.c.h.b16 %v4422
      %v4469 = vunpack.c.l.b16 %v4423
      %v4470 = vunpack.c.h.b16 %v4423
      %v4471 = vunpack.c.l.b16 %v4424
      %v4472 = vunpack.c.h.b16 %v4424
      %v4473 = vunpack.c.l.b16 %v4425
      %v4474 = vunpack.c.h.b16 %v4425
      %v4475 = vunpack.c.l.b16 %v4426
      %v4476 = vunpack.c.h.b16 %v4426
      %v4477 = vunpack.c.l.b16 %v4427
      %v4478 = vunpack.c.h.b16 %v4427
      %v4479 = vunpack.c.l.b16 %v4428
      %v4480 = vunpack.c.h.b16 %v4428
      %v4481 = vunpack.c.l.b16 %v4429
      %v4482 = vunpack.c.h.b16 %v4429
      %v4483 = vunpack.c.l.b16 %v4430
      %v4484 = vunpack.c.h.b16 %v4430
      %v4485 = vunpack.c.l.b16 %v4431
      %v4486 = vunpack.c.h.b16 %v4431
      %v4487 = vunpack.c.l.b16 %v4432
      %v4488 = vunpack.c.h.b16 %v4432
      %v4489 = vunpack.c.l.b16 %v4433
      %v4490 = vunpack.c.h.b16 %v4433
      %v4491 = vunpack.c.l.b16 %v4434
      %v4492 = vunpack.c.h.b16 %v4434
      %v4493 = vunpack.c.l.b16 %v4435
      %v4494 = vunpack.c.h.b16 %v4435
      %v4495 = vunpack.c.l.b16 %v4436
      %v4496 = vunpack.c.h.b16 %v4436
      %v4497 = vpack.c.b16 %v4467, %v4465
      %v4498 = vpack.c.b16 %v4468, %v4466
      %v4499 = vpack.c.b16 %v4471, %v4469
      %v4500 = vpack.c.b16 %v4472, %v4470
      %v4501 = vpack.c.b16 %v4475, %v4473
      %v4502 = vpack.c.b16 %v4476, %v4474
      %v4503 = vpack.c.b16 %v4479, %v4477
      %v4504 = vpack.c.b16 %v4480, %v4478
      %v4505 = vpack.c.b16 %v4483, %v4481
      %v4506 = vpack.c.b16 %v4484, %v4482
      %v4507 = vpack.c.b16 %v4487, %v4485
      %v4508 = vpack.c.b16 %v4488, %v4486
      %v4509 = vpack.c.b16 %v4491, %v4489
      %v4510 = vpack.c.b16 %v4492, %v4490
      %v4511 = vpack.c.b16 %v4495, %v4493
      %v4512 = vpack.c.b16 %v4496, %v4494
      %4529 = vmatprep.subr.bf16.mxu0 %v4498
      %4530 = vmatpush1.bf16.msra.mxu0 %v4497
      %4531 = vmatprep.subr.bf16.mxu0 %v4500
      %4532 = vmatpush1.bf16.msra.mxu0 %v4499
      %4533 = vmatprep.subr.bf16.mxu0 %v4502
      %4534 = vmatpush1.bf16.msra.mxu0 %v4501
      %4535 = vmatprep.subr.bf16.mxu0 %v4504
      %4536 = vmatpush1.bf16.msra.mxu0 %v4503
      %4537 = vmatprep.subr.bf16.mxu0 %v4506
      %4538 = vmatpush1.bf16.msra.mxu0 %v4505
      %4539 = vmatprep.subr.bf16.mxu0 %v4508
      %4540 = vmatpush1.bf16.msra.mxu0 %v4507
      %4541 = vmatprep.subr.bf16.mxu0 %v4510
      %4542 = vmatpush1.bf16.msra.mxu0 %v4509
      %4543 = vmatprep.subr.bf16.mxu0 %v4512
      %4544 = vmatpush1.bf16.msra.mxu0 %v4511
      %4545 = vmatprep.subr.bf16.mxu0 0
      %4546 = vmatpush1.bf16.msra.mxu0 0
      %4547 = vmatprep.subr.bf16.mxu0 0
      %4548 = vmatpush1.bf16.msra.mxu0 0
      %4549 = vmatprep.subr.bf16.mxu0 0
      %4550 = vmatpush1.bf16.msra.mxu0 0
      %4551 = vmatprep.subr.bf16.mxu0 0
      %4552 = vmatpush1.bf16.msra.mxu0 0
      %4553 = vmatprep.subr.bf16.mxu0 0
      %4554 = vmatpush1.bf16.msra.mxu0 0
      %4555 = vmatprep.subr.bf16.mxu0 0
      %4556 = vmatpush1.bf16.msra.mxu0 0
      %4557 = vmatprep.subr.bf16.mxu0 0
      %4558 = vmatpush1.bf16.msra.mxu0 0
      %4559 = vmatprep.subr.bf16.mxu0 0
      %4560 = vmatpush1.bf16.msra.mxu0 0
      %4561 = vmatprep.mubr.bf16.mxu0 0
      %4562 = vmatmul.mubr.bf16.gmra.mrb[0].mxu0 %v4420
      %v4563 = vpop.f32.mrb[0].mxu0
      %v4564 = vadd.f32 %v4442, %v4563
      %v4565 = vpop.f32.mrb[0].mxu0
      %v4566 = vadd.f32 %v4446, %v4565
      %v4567 = vpop.f32.mrb[0].mxu0
      %v4568 = vpop.f32.mrb[0].mxu0
      %4569 = vdwg.mxu0
      %v4570 = vmax.f32 %v4564, 0.0
      %v4571 = vmax.f32 %v4566, 0.0
      %v4574 = vcombine.low %v4570, %v4571
      %4576 = vst [vmem:[#allocation17] sm:$0xff] %v4574
    $region77: #{caputo_encoder_forward.1} parent=1 // pred_fallthru
      _
    // Predicated region
    $region78: #{caputo_encoder_forward.1} parent=1 // pred_check
      _
    $region79: #{caputo_encoder_forward.1} parent=1 // pred_check_branch
      %4578 = sbr.rel (0) target = $region81
    $region80: #{caputo_encoder_forward.1} parent=1 // pred_region
      %s4580 = ssub.s32 128, 128
      %4581 = vsyncadd [#allocation8], %s4580
      %s4583 = sshll.u32 [#allocation17], 4
      %s4584 = int_to_ptr.vmem [resolvable:$true] %s4583
      %4586 = dma.vmem_to_hbm [thread:$0]  %s4584, 128, %s11, [#allocation8]
    $region81: #{caputo_encoder_forward.1} parent=1 // pred_fallthru
      _
    // Predicated region
    $region82: #{caputo_encoder_forward.1} parent=1 // pred_check
      _
    $region83: #{caputo_encoder_forward.1} parent=1 // pred_check_branch
      %4588 = sbr.rel (0) target = $region85
    $region84: #{caputo_encoder_forward.1} parent=1 // pred_region
      %4589 = dma.done [#allocation8], 128
    $region85: #{caputo_encoder_forward.1} parent=1 // pred_fallthru
      _
    %4590 = vsyncpa [#allocation7], 1
    %4591 = vsyncpa [#allocation10], 1
    %4592 = vsyncpa [#allocation13], 1
    %4593 = vsyncpa [#allocation16], 1
    %4594 = vsyncpa [#allocation8], 1

</llo_original>
